<compile_context>
chip_gen: v5e
topology: v5e:2x2
jax: 0.10.0
libtpu: 0.0.40
codegen_flags: <defaults>
</compile_context>

<pallas_src>
import functools
import math

import jax
import jax.numpy as jnp
from jax.experimental import pallas as pl
from jax.experimental.pallas import tpu as pltpu

LANE = 128                                   # lane width; feature dims padded to this
X_RESIDENT_BYTE_LIMIT = 16 * 1024 * 1024     # keep layer-input slab VMEM-resident below this


def _round_up(x, m):
    return (x + m - 1) // m * m


# ---------------------------------------------------------------------------
# Kernels (one UnitaryGCNConvLayer per pallas_call)
# ---------------------------------------------------------------------------
def _aggregate(x_ref, a_ref, hacc_ref, k, *, x_resident):
    """hacc += A_hat[i, k] @ x[k]  (bf16 operands, f32 accumulation)."""
    @pl.when(k == 0)
    def _init():
        hacc_ref[...] = jnp.zeros_like(hacc_ref)

    if x_resident:
        # Whole layer-input slab is VMEM-resident; slice the k-th row block.
        tk = a_ref.shape[1]
        x_blk = x_ref[pl.ds(pl.multiple_of(k * tk, tk), tk), :]
    else:
        x_blk = x_ref[...]
    hacc_ref[...] += jnp.dot(a_ref[...], x_blk,
                             preferred_element_type=jnp.float32)


def conv_layer_kernel(x_ref, a_ref, wr_ref, wi_ref, wrpwi_ref, y_ref, hacc_ref,
                      *, first_layer, x_resident):
    """Hidden UnitaryGCNConvLayer: y = (A_hat @ x) @ (Wr + i*Wi), stored as [yr | yi] bf16."""
    k = pl.program_id(1)
    _aggregate(x_ref, a_ref, hacc_ref, k, x_resident=x_resident)

    @pl.when(k == pl.num_programs(1) - 1)
    def _epilogue():
        # TODO(synk): UnitaryGCNConvLayer's source (bias/activation/norm, if any) is not
        # provided; only aggregation + complex unitary transform are implemented.
        f_out = wr_ref.shape[1]
        if first_layer:
            # imag(x) == 0 -> h is real; two plain matmuls, no Gauss product needed.
            h_bf = hacc_ref[...].astype(jnp.bfloat16)
            y_ref[:, :f_out] = jnp.dot(
                h_bf, wr_ref[...],
                preferred_element_type=jnp.float32).astype(y_ref.dtype)
            y_ref[:, f_out:] = jnp.dot(
                h_bf, wi_ref[...],
                preferred_element_type=jnp.float32).astype(y_ref.dtype)
        else:
            f_in = hacc_ref.shape[1] // 2
            hr = hacc_ref[:, :f_in]          # slice the accumulator directly
            hi = hacc_ref[:, f_in:]
            # Gauss 3-multiply complex product; (wr + wi) precomputed in f32 host-side.
            t1 = jnp.dot(hr.astype(jnp.bfloat16), wr_ref[...],
                         preferred_element_type=jnp.float32)
            t2 = jnp.dot(hi.astype(jnp.bfloat16), wi_ref[...],
                         preferred_element_type=jnp.float32)
            y_ref[:, :f_out] = (t1 - t2).astype(y_ref.dtype)     # store yr early
            t3 = jnp.dot((hr + hi).astype(jnp.bfloat16), wrpwi_ref[...],
                         preferred_element_type=jnp.float32)
            y_ref[:, f_out:] = ((t3 - t1) - t2).astype(y_ref.dtype)
        # TODO(synk): nn.Dropout on graph.x.real/imag between layers is identity in
        # eval mode, reproduced as a no-op.


def last_layer_kernel(x_ref, a_ref, wr_ref, wi_ref, wo_ref, bo_ref, out_ref,
                      hacc_ref, *, first_layer, x_resident):
    """Last conv layer fused with the real output Linear:
       out = real((A_hat @ x) @ (Wr + i*Wi)) @ W_out + b_out
       (the imaginary part is never needed: only .real feeds output_layer)."""
    k = pl.program_id(1)
    _aggregate(x_ref, a_ref, hacc_ref, k, x_resident=x_resident)

    @pl.when(k == pl.num_programs(1) - 1)
    def _epilogue():
        if first_layer:                      # num_conv == 1: real input, yr = h @ Wr
            yr = jnp.dot(hacc_ref[...].astype(jnp.bfloat16), wr_ref[...],
                         preferred_element_type=jnp.float32)
        else:
            f_in = hacc_ref.shape[1] // 2
            yr = (jnp.dot(hacc_ref[:, :f_in].astype(jnp.bfloat16), wr_ref[...],
                          preferred_element_type=jnp.float32)
                  - jnp.dot(hacc_ref[:, f_in:].astype(jnp.bfloat16), wi_ref[...],
                            preferred_element_type=jnp.float32))
        out_ref[...] = (jnp.dot(yr.astype(jnp.bfloat16), wo_ref[...],
                                preferred_element_type=jnp.float32)
                        + bo_ref[...])


# ---------------------------------------------------------------------------
# Wrapper
# ---------------------------------------------------------------------------
def _vmem_limit(x_buf_bytes, tm, tk, in_w, out_w, out_elt_bytes, w_bytes):
    est = (x_buf_bytes                        # layer-input slab buffer(s)
           + 2 * tm * tk * 2                  # A_hat tile double buffer (bf16)
           + 2 * tm * out_w * out_elt_bytes   # output tile double buffer
           + 2 * w_bytes                      # weights (resident, double-buffered)
           + tm * in_w * 4)                   # f32 aggregation accumulator scratch
    # Explicit budget: raises v5e's 16 MiB scoped default, stays within v7x's 64 MiB VMEM.
    return int(min(max(2 * est, 32 * 1024 * 1024), 64 * 1024 * 1024))


def unitary_gcn_forward(a_hat, x, conv_weights, w_out, b_out,
                        *, row_tile=256, k_tile=256):
    """Fused UnitaryGCN forward (eval mode). Returns [N, output_dim] f32."""
    n, input_dim = x.shape
    hidden_dim, output_dim = w_out.shape
    num_conv = len(conv_weights)

    # TODO(synk): self.norm (LayerNorm) and gcn_{in,mid,out}_layer are created in
    # __init__ but never used in forward(); intentionally not implemented.

    n128 = _round_up(n, LANE)
    tm = min(row_tile, n128)
    tk = min(k_tile, n128)
    n_pad = _round_up(n, math.lcm(tm, tk))

    f_in_pad = _round_up(input_dim, LANE)
    f_pad = _round_up(hidden_dim, LANE)
    o_pad = _round_up(output_dim, LANE)

    # --- pad / cast operands (zero padding keeps the math exact) ------------------
    a_pad = (jnp.zeros((n_pad, n_pad), jnp.float32).at[:n, :n].set(a_hat)
             .astype(jnp.bfloat16))           # bf16 A stream, f32 accumulation
    # Layer-0 input: REAL half only (imag == 0) -> half the slab bytes.
    act = (jnp.zeros((n_pad, f_in_pad), jnp.float32).at[:n, :input_dim].set(x)
           .astype(jnp.bfloat16))

    wo_pad = (jnp.zeros((f_pad, o_pad), jnp.float32)
              .at[:hidden_dim, :output_dim].set(w_out).astype(jnp.bfloat16))
    bo_pad = jnp.zeros((1, o_pad), jnp.float32).at[0, :output_dim].set(b_out)

    grid = (n_pad // tm, n_pad // tk)
    a_spec = pl.BlockSpec((tm, tk), lambda i, k: (i, k))
    sem = ("parallel", "arbitrary")   # row tiles megacore-parallel; k is the reduction

    out = None
    for l, (wr, wi) in enumerate(conv_weights):
        first = (l == 0)
        last = (l == num_conv - 1)
        fi_pad = f_in_pad if first else f_pad
        in_w = fi_pad if first else 2 * f_pad

        def pad_w(w, rows=fi_pad):
            return (jnp.zeros((rows, f_pad), jnp.float32)
                    .at[:w.shape[0], :w.shape[1]].set(w).astype(jnp.bfloat16))

        wr_p, wi_p = pad_w(wr), pad_w(wi)

        # Keep the whole layer-input slab VMEM-resident (fetched once per layer) unless it
        # blows the VMEM budget, in which case stream (tk, in_w) blocks from HBM instead.
        x_resident = 2 * n_pad * in_w * 2 <= X_RESIDENT_BYTE_LIMIT
        if x_resident:
            x_spec = pl.BlockSpec((n_pad, in_w), lambda i, k: (0, 0))
            x_buf_bytes = 2 * n_pad * in_w * 2
        else:
            x_spec = pl.BlockSpec((tk, in_w), lambda i, k: (k, 0))
            x_buf_bytes = 2 * tk * in_w * 2
        w_spec = pl.BlockSpec((fi_pad, f_pad), lambda i, k: (0, 0))
        scratch = [pltpu.VMEM((tm, in_w), jnp.float32)]

        if last:
            w_bytes = 2 * fi_pad * f_pad * 2 + f_pad * o_pad * 2 + o_pad * 4
            out = pl.pallas_call(
                functools.partial(last_layer_kernel,
                                  first_layer=first, x_resident=x_resident),
                out_shape=jax.ShapeDtypeStruct((n_pad, o_pad), jnp.float32),
                grid_spec=pltpu.PrefetchScalarGridSpec(
                    num_scalar_prefetch=0, grid=grid,
                    in_specs=[x_spec, a_spec, w_spec, w_spec,
                              pl.BlockSpec((f_pad, o_pad), lambda i, k: (0, 0)),
                              pl.BlockSpec((1, o_pad), lambda i, k: (0, 0))],
                    out_specs=pl.BlockSpec((tm, o_pad), lambda i, k: (i, 0)),
                    scratch_shapes=scratch),
                compiler_params=pltpu.CompilerParams(
                    dimension_semantics=sem,
                    vmem_limit_bytes=_vmem_limit(x_buf_bytes, tm, tk, in_w,
                                                 o_pad, 4, w_bytes)),
            )(act, a_pad, wr_p, wi_p, wo_pad, bo_pad)
        else:
            wrpwi_p = pad_w(wr + wi)   # f32 host-side add -> better yi precision
            w_bytes = 3 * fi_pad * f_pad * 2
            act = pl.pallas_call(
                functools.partial(conv_layer_kernel,
                                  first_layer=first, x_resident=x_resident),
                out_shape=jax.ShapeDtypeStruct((n_pad, 2 * f_pad), jnp.bfloat16),
                grid_spec=pltpu.PrefetchScalarGridSpec(
                    num_scalar_prefetch=0, grid=grid,
                    in_specs=[x_spec, a_spec, w_spec, w_spec, w_spec],
                    out_specs=pl.BlockSpec((tm, 2 * f_pad), lambda i, k: (i, 0)),
                    scratch_shapes=scratch),
                compiler_params=pltpu.CompilerParams(
                    dimension_semantics=sem,
                    vmem_limit_bytes=_vmem_limit(x_buf_bytes, tm, tk, in_w,
                                                 2 * f_pad, 2, w_bytes)),
            )(act, a_pad, wr_p, wi_p, wrpwi_p)

    return out[:n, :output_dim]


# ---------------------------------------------------------------------------
# Pure-JAX reference (mirrors the kernel's numerics; 4-multiply complex product)
# ---------------------------------------------------------------------------
def reference_forward(a_hat, x, conv_weights, w_out, b_out):
    a_bf = a_hat.astype(jnp.bfloat16)
    xr = x.astype(jnp.bfloat16)
    xi = None
    for wr, wi in conv_weights:
        wr_bf, wi_bf = wr.astype(jnp.bfloat16), wi.astype(jnp.bfloat16)
        hr = jnp.dot(a_bf, xr, preferred_element_type=jnp.float32).astype(jnp.bfloat16)
        if xi is None:
            yr = jnp.dot(hr, wr_bf, preferred_element_type=jnp.float32)
            yi = jnp.dot(hr, wi_bf, preferred_element_type=jnp.float32)
        else:
            hi = jnp.dot(a_bf, xi, preferred_element_type=jnp.float32).astype(jnp.bfloat16)
            yr = (jnp.dot(hr, wr_bf, preferred_element_type=jnp.float32)
                  - jnp.dot(hi, wi_bf, preferred_element_type=jnp.float32))
            yi = (jnp.dot(hr, wi_bf, preferred_element_type=jnp.float32)
                  + jnp.dot(hi, wr_bf, preferred_element_type=jnp.float32))
        xr, xi = yr.astype(jnp.bfloat16), yi.astype(jnp.bfloat16)
    return (jnp.dot(xr, w_out.astype(jnp.bfloat16),
                    preferred_element_type=jnp.float32) + b_out)


# ---------------------------------------------------------------------------
# Parameter / graph construction (plain JAX glue, deterministic)
# ---------------------------------------------------------------------------
def build_norm_adj(key, n):
    """Random symmetric graph; GCN normalization D^-1/2 (A + I) D^-1/2."""
    logits = jax.random.uniform(key, (n, n))
    adj = ((logits + logits.T) > 1.2).astype(jnp.float32)
    adj = adj * (1.0 - jnp.eye(n, dtype=jnp.float32))
    adj = adj + jnp.eye(n, dtype=jnp.float32)
    deg = adj.sum(axis=1)
    dinv = 1.0 / jnp.sqrt(deg)
    return (adj * dinv[:, None]) * dinv[None, :]


def make_unitary_weight(key, dim, t_terms):
    """U ~= exp(i H) for Hermitian H, T-term Taylor series (hermitian layer)."""
    kr, ki = jax.random.split(key)
    b = (jax.random.normal(kr, (dim, dim), jnp.float32)
         + 1j * jax.random.normal(ki, (dim, dim), jnp.float32)) / jnp.sqrt(dim)
    b = b.astype(jnp.complex64)
    h = 0.5 * (b + jnp.conj(b).T)          # Hermitian
    g = 1j * h                             # skew-Hermitian generator
    u = jnp.eye(dim, dtype=jnp.complex64)
    term = jnp.eye(dim, dtype=jnp.complex64)
    for k in range(1, t_terms + 1):
        term = (term @ g) / k
        u = u + term
    return jnp.real(u).astype(jnp.float32), jnp.imag(u).astype(jnp.float32)


def make_complex_glorot(key, fan_in, fan_out):
    std = jnp.sqrt(2.0 / (fan_in + fan_out)) / jnp.sqrt(2.0)
    kr, ki = jax.random.split(key)
    wr = std * jax.random.normal(kr, (fan_in, fan_out), jnp.float32)
    wi = std * jax.random.normal(ki, (fan_in, fan_out), jnp.float32)
    return wr, wi


if __name__ == "__main__":
    # Small, module-consistent shapes (N = 256 keeps the demo to one 256x256 tile grid).
    N = 256
    input_dim = 16
    hidden_dim = 32
    output_dim = 8
    num_layers = 2    # -> conv_layers has 1 + num_layers = 3 layers
    T = 4             # Taylor truncation for exp(iH) in hermitian layers

    key = jax.random.PRNGKey(0)
    k_adj, k_x, k_w0, k_wo, *k_layers = jax.random.split(key, 4 + num_layers)

    a_hat = build_norm_adj(k_adj, N)
    x = jax.random.normal(k_x, (N, input_dim), jnp.float32)

    # conv_layers[0]: UnitaryGCNConvLayer(input_dim, hidden_dim)
    conv_weights = [make_complex_glorot(k_w0, input_dim, hidden_dim)]
    # conv_layers[1..num_layers]: hermitian/unitary hidden->hidden layers
    for kl in k_layers:
        conv_weights.append(make_unitary_weight(kl, hidden_dim, T))

    kw, kb = jax.random.split(k_wo)
    w_out = jax.random.normal(kw, (hidden_dim, output_dim),
                              jnp.float32) / jnp.sqrt(hidden_dim)
    b_out = 0.01 * jax.random.normal(kb, (output_dim,), jnp.float32)

    fwd = jax.jit(functools.partial(unitary_gcn_forward,
                                    conv_weights=conv_weights,
                                    w_out=w_out, b_out=b_out))
    out = jax.block_until_ready(fwd(a_hat, x))

    assert out.shape == (N, output_dim)
    assert out.dtype == jnp.float32

    ref = jax.block_until_ready(
        reference_forward(a_hat, x, conv_weights, w_out, b_out))
    assert jnp.allclose(out, ref, rtol=1e-2, atol=2e-2), \
        float(jnp.max(jnp.abs(out - ref)))

    print("KERNEL_OK")
</pallas_src>

<mosaic_0001>
module attributes {stable_mosaic.version = 11 : i64} {
  func.func @conv_layer_kernel(%arg0: i32, %arg1: i32, %arg2: memref<256x256xbf16, #tpu.memory_space<vmem>>, %arg3: memref<256x256xbf16, #tpu.memory_space<vmem>>, %arg4: memref<128x128xbf16, #tpu.memory_space<vmem>>, %arg5: memref<128x128xbf16, #tpu.memory_space<vmem>>, %arg6: memref<128x128xbf16, #tpu.memory_space<vmem>>, %arg7: memref<256x256xbf16, #tpu.memory_space<vmem>>, %arg8: memref<256x256xf32, #tpu.memory_space<vmem>>) attributes {dimension_semantics = [#tpu.dimension_semantics<parallel>, #tpu.dimension_semantics<arbitrary>], iteration_bounds = array<i64: 1, 1>, scalar_prefetch = 0 : i64, scratch_operands = 1 : i64, tpu.core_type = #tpu.core_type<tc>, window_params = [{pipeline_mode = #tpu.pipeline_mode<synchronous>, transform_indices = @transform_0, window_bounds = array<i64: 256, 256>}, {transform_indices = @transform_1, window_bounds = array<i64: 256, 256>}, {pipeline_mode = #tpu.pipeline_mode<synchronous>, transform_indices = @transform_2, window_bounds = array<i64: 128, 128>}, {pipeline_mode = #tpu.pipeline_mode<synchronous>, transform_indices = @transform_3, window_bounds = array<i64: 128, 128>}, {pipeline_mode = #tpu.pipeline_mode<synchronous>, transform_indices = @transform_4, window_bounds = array<i64: 128, 128>}, {transform_indices = @transform_5, window_bounds = array<i64: 256, 256>}]} {
    %c0_i32 = arith.constant 0 : i32
    %0 = arith.cmpi eq, %arg1, %c0_i32 : i32
    %1 = arith.extui %0 : i1 to i32
    %c0_i32_0 = arith.constant 0 : i32
    %2 = arith.cmpi ne, %1, %c0_i32_0 : i32
    scf.if %2 {
      %cst_9 = arith.constant 0.000000e+00 : f32
      %15 = vector.broadcast %cst_9 : f32 to vector<256x256xf32>
      %c0_10 = arith.constant 0 : index
      %c0_11 = arith.constant 0 : index
      %16 = vector.load %arg8[%c0_10, %c0_11] : memref<256x256xf32, #tpu.memory_space<vmem>>, vector<256x256xf32>
      tpu.vector_store %arg8[%c0_10, %c0_11], %15 {strides = array<i32>} : memref<256x256xf32, #tpu.memory_space<vmem>>, vector<256x256xf32>,
    } else {
    }
    %c256_i32 = arith.constant 256 : i32
    %3 = arith.muli %arg1, %c256_i32 : i32
    %4 = tpu.assume_multiple %3, 256 : i32
    %5 = arith.index_cast %4 : i32 to index
    %c0 = arith.constant 0 : index
    %6 = vector.load %arg2[%5, %c0] : memref<256x256xbf16, #tpu.memory_space<vmem>>, vector<256x256xbf16>
    %c0_1 = arith.constant 0 : index
    %c0_2 = arith.constant 0 : index
    %7 = vector.load %arg8[%c0_1, %c0_2] : memref<256x256xf32, #tpu.memory_space<vmem>>, vector<256x256xf32>
    %c0_3 = arith.constant 0 : index
    %c0_4 = arith.constant 0 : index
    %8 = vector.load %arg3[%c0_3, %c0_4] : memref<256x256xbf16, #tpu.memory_space<vmem>>, vector<256x256xbf16>
    %cst = arith.constant dense<0.000000e+00> : vector<256x256xf32>
    %9 = tpu.matmul %8, %6, %cst {dimension_numbers = #tpu.dot_dimension_numbers<[1], [0], [0], [1], [0, 0, 1, 1], [], []>} : vector<256x256xbf16>, vector<256x256xbf16>, vector<256x256xf32> -> vector<256x256xf32>
    %10 = arith.addf %7, %9 : vector<256x256xf32>
    %c0_5 = arith.constant 0 : index
    %c0_6 = arith.constant 0 : index
    %11 = vector.load %arg8[%c0_5, %c0_6] : memref<256x256xf32, #tpu.memory_space<vmem>>, vector<256x256xf32>
    tpu.vector_store %arg8[%c0_5, %c0_6], %10 {strides = array<i32>} : memref<256x256xf32, #tpu.memory_space<vmem>>, vector<256x256xf32>,
    %c0_i32_7 = arith.constant 0 : i32
    %12 = arith.cmpi eq, %arg1, %c0_i32_7 : i32
    %13 = arith.extui %12 : i1 to i32
    %c0_i32_8 = arith.constant 0 : i32
    %14 = arith.cmpi ne, %13, %c0_i32_8 : i32
    scf.if %14 {
      %c0_9 = arith.constant 0 : index
      %c0_10 = arith.constant 0 : index
      %15 = vector.load %arg8[%c0_9, %c0_10] : memref<256x256xf32, #tpu.memory_space<vmem>>, vector<256x128xf32>
      %c0_11 = arith.constant 0 : index
      %c128 = arith.constant 128 : index
      %16 = vector.load %arg8[%c0_11, %c128] : memref<256x256xf32, #tpu.memory_space<vmem>>, vector<256x128xf32>
      %17 = arith.truncf %15 : vector<256x128xf32> to vector<256x128xbf16>
      %c0_12 = arith.constant 0 : index
      %c0_13 = arith.constant 0 : index
      %18 = vector.load %arg4[%c0_12, %c0_13] : memref<128x128xbf16, #tpu.memory_space<vmem>>, vector<128x128xbf16>
      %cst_14 = arith.constant dense<0.000000e+00> : vector<256x128xf32>
      %19 = tpu.matmul %17, %18, %cst_14 {dimension_numbers = #tpu.dot_dimension_numbers<[1], [0], [0], [1], [0, 0, 1, 1], [], []>} : vector<256x128xbf16>, vector<128x128xbf16>, vector<256x128xf32> -> vector<256x128xf32>
      %20 = arith.truncf %16 : vector<256x128xf32> to vector<256x128xbf16>
      %c0_15 = arith.constant 0 : index
      %c0_16 = arith.constant 0 : index
      %21 = vector.load %arg5[%c0_15, %c0_16] : memref<128x128xbf16, #tpu.memory_space<vmem>>, vector<128x128xbf16>
      %cst_17 = arith.constant dense<0.000000e+00> : vector<256x128xf32>
      %22 = tpu.matmul %20, %21, %cst_17 {dimension_numbers = #tpu.dot_dimension_numbers<[1], [0], [0], [1], [0, 0, 1, 1], [], []>} : vector<256x128xbf16>, vector<128x128xbf16>, vector<256x128xf32> -> vector<256x128xf32>
      %23 = arith.subf %19, %22 : vector<256x128xf32>
      %24 = arith.truncf %23 : vector<256x128xf32> to vector<256x128xbf16>
      %c0_18 = arith.constant 0 : index
      %c0_19 = arith.constant 0 : index
      %25 = vector.load %arg7[%c0_18, %c0_19] : memref<256x256xbf16, #tpu.memory_space<vmem>>, vector<256x128xbf16>
      tpu.vector_store %arg7[%c0_18, %c0_19], %24 {strides = array<i32>} : memref<256x256xbf16, #tpu.memory_space<vmem>>, vector<256x128xbf16>,
      %26 = arith.addf %15, %16 : vector<256x128xf32>
      %27 = arith.truncf %26 : vector<256x128xf32> to vector<256x128xbf16>
      %c0_20 = arith.constant 0 : index
      %c0_21 = arith.constant 0 : index
      %28 = vector.load %arg6[%c0_20, %c0_21] : memref<128x128xbf16, #tpu.memory_space<vmem>>, vector<128x128xbf16>
      %cst_22 = arith.constant dense<0.000000e+00> : vector<256x128xf32>
      %29 = tpu.matmul %27, %28, %cst_22 {dimension_numbers = #tpu.dot_dimension_numbers<[1], [0], [0], [1], [0, 0, 1, 1], [], []>} : vector<256x128xbf16>, vector<128x128xbf16>, vector<256x128xf32> -> vector<256x128xf32>
      %30 = arith.subf %29, %19 : vector<256x128xf32>
      %31 = arith.subf %30, %22 : vector<256x128xf32>
      %32 = arith.truncf %31 : vector<256x128xf32> to vector<256x128xbf16>
      %c0_23 = arith.constant 0 : index
      %c128_24 = arith.constant 128 : index
      %33 = vector.load %arg7[%c0_23, %c128_24] : memref<256x256xbf16, #tpu.memory_space<vmem>>, vector<256x128xbf16>
      tpu.vector_store %arg7[%c0_23, %c128_24], %32 {strides = array<i32>} : memref<256x256xbf16, #tpu.memory_space<vmem>>, vector<256x128xbf16>,
    } else {
    }
    return
  }
  func.func @transform_0(%arg0: i32, %arg1: i32) -> (i32, i32) {
    %c0_i32 = arith.constant 0 : i32
    %c0_i32_0 = arith.constant 0 : i32
    %c0_i32_1 = arith.constant 0 : i32
    return %c0_i32, %c0_i32_0 : i32, i32
  }
  func.func @transform_1(%arg0: i32, %arg1: i32) -> (i32, i32) {
    %c0_i32 = arith.constant 0 : i32
    return %arg0, %arg1 : i32, i32
  }
  func.func @transform_2(%arg0: i32, %arg1: i32) -> (i32, i32) {
    %c0_i32 = arith.constant 0 : i32
    %c0_i32_0 = arith.constant 0 : i32
    %c0_i32_1 = arith.constant 0 : i32
    return %c0_i32, %c0_i32_0 : i32, i32
  }
  func.func @transform_3(%arg0: i32, %arg1: i32) -> (i32, i32) {
    %c0_i32 = arith.constant 0 : i32
    %c0_i32_0 = arith.constant 0 : i32
    %c0_i32_1 = arith.constant 0 : i32
    return %c0_i32, %c0_i32_0 : i32, i32
  }
  func.func @transform_4(%arg0: i32, %arg1: i32) -> (i32, i32) {
    %c0_i32 = arith.constant 0 : i32
    %c0_i32_0 = arith.constant 0 : i32
    %c0_i32_1 = arith.constant 0 : i32
    return %c0_i32, %c0_i32_0 : i32, i32
  }
  func.func @transform_5(%arg0: i32, %arg1: i32) -> (i32, i32) {
    %c0_i32 = arith.constant 0 : i32
    %c0_i32_0 = arith.constant 0 : i32
    return %arg0, %c0_i32 : i32, i32
  }
}

module attributes {stable_mosaic.version = 11 : i64} {
  func.func @conv_layer_kernel(%arg0: i32, %arg1: i32, %arg2: memref<256x128xbf16, #tpu.memory_space<vmem>>, %arg3: memref<256x256xbf16, #tpu.memory_space<vmem>>, %arg4: memref<128x128xbf16, #tpu.memory_space<vmem>>, %arg5: memref<128x128xbf16, #tpu.memory_space<vmem>>, %arg6: memref<128x128xbf16, #tpu.memory_space<vmem>>, %arg7: memref<256x256xbf16, #tpu.memory_space<vmem>>, %arg8: memref<256x128xf32, #tpu.memory_space<vmem>>) attributes {dimension_semantics = [#tpu.dimension_semantics<parallel>, #tpu.dimension_semantics<arbitrary>], iteration_bounds = array<i64: 1, 1>, scalar_prefetch = 0 : i64, scratch_operands = 1 : i64, tpu.core_type = #tpu.core_type<tc>, window_params = [{pipeline_mode = #tpu.pipeline_mode<synchronous>, transform_indices = @transform_0, window_bounds = array<i64: 256, 128>}, {transform_indices = @transform_1, window_bounds = array<i64: 256, 256>}, {pipeline_mode = #tpu.pipeline_mode<synchronous>, transform_indices = @transform_2, window_bounds = array<i64: 128, 128>}, {pipeline_mode = #tpu.pipeline_mode<synchronous>, transform_indices = @transform_3, window_bounds = array<i64: 128, 128>}, {pipeline_mode = #tpu.pipeline_mode<synchronous>, transform_indices = @transform_4, window_bounds = array<i64: 128, 128>}, {transform_indices = @transform_5, window_bounds = array<i64: 256, 256>}]} {
    %c0_i32 = arith.constant 0 : i32
    %0 = arith.cmpi eq, %arg1, %c0_i32 : i32
    %1 = arith.extui %0 : i1 to i32
    %c0_i32_0 = arith.constant 0 : i32
    %2 = arith.cmpi ne, %1, %c0_i32_0 : i32
    scf.if %2 {
      %cst_9 = arith.constant 0.000000e+00 : f32
      %15 = vector.broadcast %cst_9 : f32 to vector<256x128xf32>
      %c0_10 = arith.constant 0 : index
      %c0_11 = arith.constant 0 : index
      %16 = vector.load %arg8[%c0_10, %c0_11] : memref<256x128xf32, #tpu.memory_space<vmem>>, vector<256x128xf32>
      tpu.vector_store %arg8[%c0_10, %c0_11], %15 {strides = array<i32>} : memref<256x128xf32, #tpu.memory_space<vmem>>, vector<256x128xf32>,
    } else {
    }
    %c256_i32 = arith.constant 256 : i32
    %3 = arith.muli %arg1, %c256_i32 : i32
    %4 = tpu.assume_multiple %3, 256 : i32
    %5 = arith.index_cast %4 : i32 to index
    %c0 = arith.constant 0 : index
    %6 = vector.load %arg2[%5, %c0] : memref<256x128xbf16, #tpu.memory_space<vmem>>, vector<256x128xbf16>
    %c0_1 = arith.constant 0 : index
    %c0_2 = arith.constant 0 : index
    %7 = vector.load %arg8[%c0_1, %c0_2] : memref<256x128xf32, #tpu.memory_space<vmem>>, vector<256x128xf32>
    %c0_3 = arith.constant 0 : index
    %c0_4 = arith.constant 0 : index
    %8 = vector.load %arg3[%c0_3, %c0_4] : memref<256x256xbf16, #tpu.memory_space<vmem>>, vector<256x256xbf16>
    %cst = arith.constant dense<0.000000e+00> : vector<256x128xf32>
    %9 = tpu.matmul %8, %6, %cst {dimension_numbers = #tpu.dot_dimension_numbers<[1], [0], [0], [1], [0, 0, 1, 1], [], []>} : vector<256x256xbf16>, vector<256x128xbf16>, vector<256x128xf32> -> vector<256x128xf32>
    %10 = arith.addf %7, %9 : vector<256x128xf32>
    %c0_5 = arith.constant 0 : index
    %c0_6 = arith.constant 0 : index
    %11 = vector.load %arg8[%c0_5, %c0_6] : memref<256x128xf32, #tpu.memory_space<vmem>>, vector<256x128xf32>
    tpu.vector_store %arg8[%c0_5, %c0_6], %10 {strides = array<i32>} : memref<256x128xf32, #tpu.memory_space<vmem>>, vector<256x128xf32>,
    %c0_i32_7 = arith.constant 0 : i32
    %12 = arith.cmpi eq, %arg1, %c0_i32_7 : i32
    %13 = arith.extui %12 : i1 to i32
    %c0_i32_8 = arith.constant 0 : i32
    %14 = arith.cmpi ne, %13, %c0_i32_8 : i32
    scf.if %14 {
      %c0_9 = arith.constant 0 : index
      %c0_10 = arith.constant 0 : index
      %15 = vector.load %arg8[%c0_9, %c0_10] : memref<256x128xf32, #tpu.memory_space<vmem>>, vector<256x128xf32>
      %16 = arith.truncf %15 : vector<256x128xf32> to vector<256x128xbf16>
      %c0_11 = arith.constant 0 : index
      %c0_12 = arith.constant 0 : index
      %17 = vector.load %arg4[%c0_11, %c0_12] : memref<128x128xbf16, #tpu.memory_space<vmem>>, vector<128x128xbf16>
      %cst_13 = arith.constant dense<0.000000e+00> : vector<256x128xf32>
      %18 = tpu.matmul %16, %17, %cst_13 {dimension_numbers = #tpu.dot_dimension_numbers<[1], [0], [0], [1], [0, 0, 1, 1], [], []>} : vector<256x128xbf16>, vector<128x128xbf16>, vector<256x128xf32> -> vector<256x128xf32>
      %19 = arith.truncf %18 : vector<256x128xf32> to vector<256x128xbf16>
      %c0_14 = arith.constant 0 : index
      %c0_15 = arith.constant 0 : index
      %20 = vector.load %arg7[%c0_14, %c0_15] : memref<256x256xbf16, #tpu.memory_space<vmem>>, vector<256x128xbf16>
      tpu.vector_store %arg7[%c0_14, %c0_15], %19 {strides = array<i32>} : memref<256x256xbf16, #tpu.memory_space<vmem>>, vector<256x128xbf16>,
      %c0_16 = arith.constant 0 : index
      %c0_17 = arith.constant 0 : index
      %21 = vector.load %arg5[%c0_16, %c0_17] : memref<128x128xbf16, #tpu.memory_space<vmem>>, vector<128x128xbf16>
      %cst_18 = arith.constant dense<0.000000e+00> : vector<256x128xf32>
      %22 = tpu.matmul %16, %21, %cst_18 {dimension_numbers = #tpu.dot_dimension_numbers<[1], [0], [0], [1], [0, 0, 1, 1], [], []>} : vector<256x128xbf16>, vector<128x128xbf16>, vector<256x128xf32> -> vector<256x128xf32>
      %23 = arith.truncf %22 : vector<256x128xf32> to vector<256x128xbf16>
      %c0_19 = arith.constant 0 : index
      %c128 = arith.constant 128 : index
      %24 = vector.load %arg7[%c0_19, %c128] : memref<256x256xbf16, #tpu.memory_space<vmem>>, vector<256x128xbf16>
      tpu.vector_store %arg7[%c0_19, %c128], %23 {strides = array<i32>} : memref<256x256xbf16, #tpu.memory_space<vmem>>, vector<256x128xbf16>,
    } else {
    }
    return
  }
  func.func @transform_0(%arg0: i32, %arg1: i32) -> (i32, i32) {
    %c0_i32 = arith.constant 0 : i32
    %c0_i32_0 = arith.constant 0 : i32
    %c0_i32_1 = arith.constant 0 : i32
    return %c0_i32, %c0_i32_0 : i32, i32
  }
  func.func @transform_1(%arg0: i32, %arg1: i32) -> (i32, i32) {
    %c0_i32 = arith.constant 0 : i32
    return %arg0, %arg1 : i32, i32
  }
  func.func @transform_2(%arg0: i32, %arg1: i32) -> (i32, i32) {
    %c0_i32 = arith.constant 0 : i32
    %c0_i32_0 = arith.constant 0 : i32
    %c0_i32_1 = arith.constant 0 : i32
    return %c0_i32, %c0_i32_0 : i32, i32
  }
  func.func @transform_3(%arg0: i32, %arg1: i32) -> (i32, i32) {
    %c0_i32 = arith.constant 0 : i32
    %c0_i32_0 = arith.constant 0 : i32
    %c0_i32_1 = arith.constant 0 : i32
    return %c0_i32, %c0_i32_0 : i32, i32
  }
  func.func @transform_4(%arg0: i32, %arg1: i32) -> (i32, i32) {
    %c0_i32 = arith.constant 0 : i32
    %c0_i32_0 = arith.constant 0 : i32
    %c0_i32_1 = arith.constant 0 : i32
    return %c0_i32, %c0_i32_0 : i32, i32
  }
  func.func @transform_5(%arg0: i32, %arg1: i32) -> (i32, i32) {
    %c0_i32 = arith.constant 0 : i32
    %c0_i32_0 = arith.constant 0 : i32
    return %arg0, %c0_i32 : i32, i32
  }
}

module attributes {stable_mosaic.version = 11 : i64} {
  func.func @last_layer_kernel(%arg0: i32, %arg1: i32, %arg2: memref<256x256xbf16, #tpu.memory_space<vmem>>, %arg3: memref<256x256xbf16, #tpu.memory_space<vmem>>, %arg4: memref<128x128xbf16, #tpu.memory_space<vmem>>, %arg5: memref<128x128xbf16, #tpu.memory_space<vmem>>, %arg6: memref<128x128xbf16, #tpu.memory_space<vmem>>, %arg7: memref<1x128xf32, #tpu.memory_space<vmem>>, %arg8: memref<256x128xf32, #tpu.memory_space<vmem>>, %arg9: memref<256x256xf32, #tpu.memory_space<vmem>>) attributes {dimension_semantics = [#tpu.dimension_semantics<parallel>, #tpu.dimension_semantics<arbitrary>], iteration_bounds = array<i64: 1, 1>, scalar_prefetch = 0 : i64, scratch_operands = 1 : i64, tpu.core_type = #tpu.core_type<tc>, window_params = [{pipeline_mode = #tpu.pipeline_mode<synchronous>, transform_indices = @transform_0, window_bounds = array<i64: 256, 256>}, {transform_indices = @transform_1, window_bounds = array<i64: 256, 256>}, {pipeline_mode = #tpu.pipeline_mode<synchronous>, transform_indices = @transform_2, window_bounds = array<i64: 128, 128>}, {pipeline_mode = #tpu.pipeline_mode<synchronous>, transform_indices = @transform_3, window_bounds = array<i64: 128, 128>}, {pipeline_mode = #tpu.pipeline_mode<synchronous>, transform_indices = @transform_4, window_bounds = array<i64: 128, 128>}, {pipeline_mode = #tpu.pipeline_mode<synchronous>, transform_indices = @transform_5, window_bounds = array<i64: 1, 128>}, {transform_indices = @transform_6, window_bounds = array<i64: 256, 128>}]} {
    %c0_i32 = arith.constant 0 : i32
    %0 = arith.cmpi eq, %arg1, %c0_i32 : i32
    %1 = arith.extui %0 : i1 to i32
    %c0_i32_0 = arith.constant 0 : i32
    %2 = arith.cmpi ne, %1, %c0_i32_0 : i32
    scf.if %2 {
      %cst_9 = arith.constant 0.000000e+00 : f32
      %15 = vector.broadcast %cst_9 : f32 to vector<256x256xf32>
      %c0_10 = arith.constant 0 : index
      %c0_11 = arith.constant 0 : index
      %16 = vector.load %arg9[%c0_10, %c0_11] : memref<256x256xf32, #tpu.memory_space<vmem>>, vector<256x256xf32>
      tpu.vector_store %arg9[%c0_10, %c0_11], %15 {strides = array<i32>} : memref<256x256xf32, #tpu.memory_space<vmem>>, vector<256x256xf32>,
    } else {
    }
    %c256_i32 = arith.constant 256 : i32
    %3 = arith.muli %arg1, %c256_i32 : i32
    %4 = tpu.assume_multiple %3, 256 : i32
    %5 = arith.index_cast %4 : i32 to index
    %c0 = arith.constant 0 : index
    %6 = vector.load %arg2[%5, %c0] : memref<256x256xbf16, #tpu.memory_space<vmem>>, vector<256x256xbf16>
    %c0_1 = arith.constant 0 : index
    %c0_2 = arith.constant 0 : index
    %7 = vector.load %arg9[%c0_1, %c0_2] : memref<256x256xf32, #tpu.memory_space<vmem>>, vector<256x256xf32>
    %c0_3 = arith.constant 0 : index
    %c0_4 = arith.constant 0 : index
    %8 = vector.load %arg3[%c0_3, %c0_4] : memref<256x256xbf16, #tpu.memory_space<vmem>>, vector<256x256xbf16>
    %cst = arith.constant dense<0.000000e+00> : vector<256x256xf32>
    %9 = tpu.matmul %8, %6, %cst {dimension_numbers = #tpu.dot_dimension_numbers<[1], [0], [0], [1], [0, 0, 1, 1], [], []>} : vector<256x256xbf16>, vector<256x256xbf16>, vector<256x256xf32> -> vector<256x256xf32>
    %10 = arith.addf %7, %9 : vector<256x256xf32>
    %c0_5 = arith.constant 0 : index
    %c0_6 = arith.constant 0 : index
    %11 = vector.load %arg9[%c0_5, %c0_6] : memref<256x256xf32, #tpu.memory_space<vmem>>, vector<256x256xf32>
    tpu.vector_store %arg9[%c0_5, %c0_6], %10 {strides = array<i32>} : memref<256x256xf32, #tpu.memory_space<vmem>>, vector<256x256xf32>,
    %c0_i32_7 = arith.constant 0 : i32
    %12 = arith.cmpi eq, %arg1, %c0_i32_7 : i32
    %13 = arith.extui %12 : i1 to i32
    %c0_i32_8 = arith.constant 0 : i32
    %14 = arith.cmpi ne, %13, %c0_i32_8 : i32
    scf.if %14 {
      %c0_9 = arith.constant 0 : index
      %c0_10 = arith.constant 0 : index
      %15 = vector.load %arg9[%c0_9, %c0_10] : memref<256x256xf32, #tpu.memory_space<vmem>>, vector<256x128xf32>
      %16 = arith.truncf %15 : vector<256x128xf32> to vector<256x128xbf16>
      %c0_11 = arith.constant 0 : index
      %c0_12 = arith.constant 0 : index
      %17 = vector.load %arg4[%c0_11, %c0_12] : memref<128x128xbf16, #tpu.memory_space<vmem>>, vector<128x128xbf16>
      %cst_13 = arith.constant dense<0.000000e+00> : vector<256x128xf32>
      %18 = tpu.matmul %16, %17, %cst_13 {dimension_numbers = #tpu.dot_dimension_numbers<[1], [0], [0], [1], [0, 0, 1, 1], [], []>} : vector<256x128xbf16>, vector<128x128xbf16>, vector<256x128xf32> -> vector<256x128xf32>
      %c0_14 = arith.constant 0 : index
      %c128 = arith.constant 128 : index
      %19 = vector.load %arg9[%c0_14, %c128] : memref<256x256xf32, #tpu.memory_space<vmem>>, vector<256x128xf32>
      %20 = arith.truncf %19 : vector<256x128xf32> to vector<256x128xbf16>
      %c0_15 = arith.constant 0 : index
      %c0_16 = arith.constant 0 : index
      %21 = vector.load %arg5[%c0_15, %c0_16] : memref<128x128xbf16, #tpu.memory_space<vmem>>, vector<128x128xbf16>
      %cst_17 = arith.constant dense<0.000000e+00> : vector<256x128xf32>
      %22 = tpu.matmul %20, %21, %cst_17 {dimension_numbers = #tpu.dot_dimension_numbers<[1], [0], [0], [1], [0, 0, 1, 1], [], []>} : vector<256x128xbf16>, vector<128x128xbf16>, vector<256x128xf32> -> vector<256x128xf32>
      %23 = arith.subf %18, %22 : vector<256x128xf32>
      %24 = arith.truncf %23 : vector<256x128xf32> to vector<256x128xbf16>
      %c0_18 = arith.constant 0 : index
      %c0_19 = arith.constant 0 : index
      %25 = vector.load %arg6[%c0_18, %c0_19] : memref<128x128xbf16, #tpu.memory_space<vmem>>, vector<128x128xbf16>
      %cst_20 = arith.constant dense<0.000000e+00> : vector<256x128xf32>
      %26 = tpu.matmul %24, %25, %cst_20 {dimension_numbers = #tpu.dot_dimension_numbers<[1], [0], [0], [1], [0, 0, 1, 1], [], []>} : vector<256x128xbf16>, vector<128x128xbf16>, vector<256x128xf32> -> vector<256x128xf32>
      %c0_21 = arith.constant 0 : index
      %c0_22 = arith.constant 0 : index
      %27 = vector.load %arg7[%c0_21, %c0_22] : memref<1x128xf32, #tpu.memory_space<vmem>>, vector<1x128xf32>
      %28 = vector.broadcast %27 : vector<1x128xf32> to vector<256x128xf32>
      %29 = arith.addf %26, %28 : vector<256x128xf32>
      %c0_23 = arith.constant 0 : index
      %c0_24 = arith.constant 0 : index
      %30 = vector.load %arg8[%c0_23, %c0_24] : memref<256x128xf32, #tpu.memory_space<vmem>>, vector<256x128xf32>
      tpu.vector_store %arg8[%c0_23, %c0_24], %29 {strides = array<i32>} : memref<256x128xf32, #tpu.memory_space<vmem>>, vector<256x128xf32>,
    } else {
    }
    return
  }
  func.func @transform_0(%arg0: i32, %arg1: i32) -> (i32, i32) {
    %c0_i32 = arith.constant 0 : i32
    %c0_i32_0 = arith.constant 0 : i32
    %c0_i32_1 = arith.constant 0 : i32
    return %c0_i32, %c0_i32_0 : i32, i32
  }
  func.func @transform_1(%arg0: i32, %arg1: i32) -> (i32, i32) {
    %c0_i32 = arith.constant 0 : i32
    return %arg0, %arg1 : i32, i32
  }
  func.func @transform_2(%arg0: i32, %arg1: i32) -> (i32, i32) {
    %c0_i32 = arith.constant 0 : i32
    %c0_i32_0 = arith.constant 0 : i32
    %c0_i32_1 = arith.constant 0 : i32
    return %c0_i32, %c0_i32_0 : i32, i32
  }
  func.func @transform_3(%arg0: i32, %arg1: i32) -> (i32, i32) {
    %c0_i32 = arith.constant 0 : i32
    %c0_i32_0 = arith.constant 0 : i32
    %c0_i32_1 = arith.constant 0 : i32
    return %c0_i32, %c0_i32_0 : i32, i32
  }
  func.func @transform_4(%arg0: i32, %arg1: i32) -> (i32, i32) {
    %c0_i32 = arith.constant 0 : i32
    %c0_i32_0 = arith.constant 0 : i32
    %c0_i32_1 = arith.constant 0 : i32
    return %c0_i32, %c0_i32_0 : i32, i32
  }
  func.func @transform_5(%arg0: i32, %arg1: i32) -> (i32, i32) {
    %c0_i32 = arith.constant 0 : i32
    %c0_i32_0 = arith.constant 0 : i32
    %c0_i32_1 = arith.constant 0 : i32
    return %c0_i32, %c0_i32_0 : i32, i32
  }
  func.func @transform_6(%arg0: i32, %arg1: i32) -> (i32, i32) {
    %c0_i32 = arith.constant 0 : i32
    %c0_i32_0 = arith.constant 0 : i32
    return %arg0, %c0_i32 : i32, i32
  }
}

</mosaic_0001>

<llo_original>
// kernel: unitary_gcn_forward.3
$region0: #{unitary_gcn_forward.3}
  #allocation0 [shape = 'u32[]', space=smem, size = 0x4, offset = 0x4, fixed_abs, tag = 'smem constant byte address 0x4 - core index']
  #allocation1 [shape = 'u32[72,128]{1,0:T(1,128)}', space=vmem, size = 0x9000, scoped, tag = 'internal scratch']
  #allocation2 [shape = 'f32[256,128]{1,0:T(8,128)}', space=vmem, size = 0x20000, scoped, tag = 'scratch operand']
  %s0 = inlined_call_operand.vmem [shape: bf16[256,128], index: 0, kind: input, shape index: {}]
  %s1 = inlined_call_operand.vmem [shape: bf16[256,256], index: 1, kind: input, shape index: {}]
  %s2 = inlined_call_operand.vmem [shape: bf16[128,128], index: 2, kind: input, shape index: {}]
  %s3 = inlined_call_operand.vmem [shape: bf16[128,128], index: 3, kind: input, shape index: {}]
  %s4 = inlined_call_operand.vmem [shape: bf16[128,128], index: 4, kind: input, shape index: {}]
  %s5 = inlined_call_operand.vmem [shape: bf16[256,256], index: 5, kind: output, shape index: {}]
  %s6 = sld [smem:[#allocation0]]
  $region38: #{unitary_gcn_forward.3} parent=0
    _
  %s8 = ssub.s32 1, %s6
  %s9 = scalar_select 0, %s8, %s6
  // Predicated region
  $region2: #{unitary_gcn_forward.3} parent=0 // pred_check
    _
  $region3: #{unitary_gcn_forward.3} parent=0 // pred_check_branch
    %11 = sbr.rel (0) target = $region5
  $region4: #{unitary_gcn_forward.3} parent=0 // pred_region
    _
  $region5: #{unitary_gcn_forward.3} parent=0 // pred_fallthru
    _
  // Predicated region
  $region6: #{unitary_gcn_forward.3} parent=0 // pred_check
    _
  $region7: #{unitary_gcn_forward.3} parent=0 // pred_check_branch
    %13 = sbr.rel (0) target = $region9
  $region8: #{unitary_gcn_forward.3} parent=0 // pred_region
    _
  $region9: #{unitary_gcn_forward.3} parent=0 // pred_fallthru
    _
  // Predicated region
  $region10: #{unitary_gcn_forward.3} parent=0 // pred_check
    _
  $region11: #{unitary_gcn_forward.3} parent=0 // pred_check_branch
    %15 = sbr.rel (0) target = $region13
  $region12: #{unitary_gcn_forward.3} parent=0 // pred_region
    _
  $region13: #{unitary_gcn_forward.3} parent=0 // pred_fallthru
    _
  // Predicated region
  $region14: #{unitary_gcn_forward.3} parent=0 // pred_check
    _
  $region15: #{unitary_gcn_forward.3} parent=0 // pred_check_branch
    %17 = sbr.rel (0) target = $region17
  $region16: #{unitary_gcn_forward.3} parent=0 // pred_region
    _
  $region17: #{unitary_gcn_forward.3} parent=0 // pred_fallthru
    _
  // Predicated region
  $region18: #{unitary_gcn_forward.3} parent=0 // pred_check
    _
  $region19: #{unitary_gcn_forward.3} parent=0 // pred_check_branch
    %19 = sbr.rel (0) target = $region21
  $region20: #{unitary_gcn_forward.3} parent=0 // pred_region
    _
  $region21: #{unitary_gcn_forward.3} parent=0 // pred_fallthru
    _
  %p20 = scmp.eq.s32.totalorder 0, 0
  // Predicated region
  $region22: #{unitary_gcn_forward.3} parent=0 // pred_check
    %p21 = pneg %p20
  $region23: #{unitary_gcn_forward.3} parent=0 // pred_check_branch
    %23 = sbr.rel (%p21) target = $region25
  $region24: #{unitary_gcn_forward.3} parent=0 // pred_region
    %24 = vst [vmem:[#allocation2] sm:$0xff] 0.0
    %25 = vst [vmem:[#allocation2 + $0x8] sm:$0xff] 0.0
    %26 = vst [vmem:[#allocation2 + $0x10] sm:$0xff] 0.0
    %27 = vst [vmem:[#allocation2 + $0x18] sm:$0xff] 0.0
    %28 = vst [vmem:[#allocation2 + $0x20] sm:$0xff] 0.0
    %29 = vst [vmem:[#allocation2 + $0x28] sm:$0xff] 0.0
    %30 = vst [vmem:[#allocation2 + $0x30] sm:$0xff] 0.0
    %31 = vst [vmem:[#allocation2 + $0x38] sm:$0xff] 0.0
    %32 = vst [vmem:[#allocation2 + $0x40] sm:$0xff] 0.0
    %33 = vst [vmem:[#allocation2 + $0x48] sm:$0xff] 0.0
    %34 = vst [vmem:[#allocation2 + $0x50] sm:$0xff] 0.0
    %35 = vst [vmem:[#allocation2 + $0x58] sm:$0xff] 0.0
    %36 = vst [vmem:[#allocation2 + $0x60] sm:$0xff] 0.0
    %37 = vst [vmem:[#allocation2 + $0x68] sm:$0xff] 0.0
    %38 = vst [vmem:[#allocation2 + $0x70] sm:$0xff] 0.0
    %39 = vst [vmem:[#allocation2 + $0x78] sm:$0xff] 0.0
    %40 = vst [vmem:[#allocation2 + $0x80] sm:$0xff] 0.0
    %41 = vst [vmem:[#allocation2 + $0x88] sm:$0xff] 0.0
    %42 = vst [vmem:[#allocation2 + $0x90] sm:$0xff] 0.0
    %43 = vst [vmem:[#allocation2 + $0x98] sm:$0xff] 0.0
    %44 = vst [vmem:[#allocation2 + $0xa0] sm:$0xff] 0.0
    %45 = vst [vmem:[#allocation2 + $0xa8] sm:$0xff] 0.0
    %46 = vst [vmem:[#allocation2 + $0xb0] sm:$0xff] 0.0
    %47 = vst [vmem:[#allocation2 + $0xb8] sm:$0xff] 0.0
    %48 = vst [vmem:[#allocation2 + $0xc0] sm:$0xff] 0.0
    %49 = vst [vmem:[#allocation2 + $0xc8] sm:$0xff] 0.0
    %50 = vst [vmem:[#allocation2 + $0xd0] sm:$0xff] 0.0
    %51 = vst [vmem:[#allocation2 + $0xd8] sm:$0xff] 0.0
    %52 = vst [vmem:[#allocation2 + $0xe0] sm:$0xff] 0.0
    %53 = vst [vmem:[#allocation2 + $0xe8] sm:$0xff] 0.0
    %54 = vst [vmem:[#allocation2 + $0xf0] sm:$0xff] 0.0
    %55 = vst [vmem:[#allocation2 + $0xf8] sm:$0xff] 0.0
  $region25: #{unitary_gcn_forward.3} parent=0 // pred_fallthru
    _
  %s56 = smul.u32 0, 256
  %s57 = sshra.s32 %s56, 3
  %s58 = sand.u32 %s56, 7
  %s59 = smul.addr %s57, 4
  %s60 = scalar_lea.vmem %s0, %s59
  %v61 = vld [vmem:[%s60] sm:$0xf]
  %v62 = vld [vmem:[%s60 + $0x4] sm:$0xf]
  %v63 = vld [vmem:[%s60 + $0x8] sm:$0xf]
  %v64 = vld [vmem:[%s60 + $0xc] sm:$0xf]
  %v65 = vld [vmem:[%s60 + $0x10] sm:$0xf]
  %v66 = vld [vmem:[%s60 + $0x14] sm:$0xf]
  %v67 = vld [vmem:[%s60 + $0x18] sm:$0xf]
  %v68 = vld [vmem:[%s60 + $0x1c] sm:$0xf]
  %v69 = vld [vmem:[%s60 + $0x20] sm:$0xf]
  %v70 = vld [vmem:[%s60 + $0x24] sm:$0xf]
  %v71 = vld [vmem:[%s60 + $0x28] sm:$0xf]
  %v72 = vld [vmem:[%s60 + $0x2c] sm:$0xf]
  %v73 = vld [vmem:[%s60 + $0x30] sm:$0xf]
  %v74 = vld [vmem:[%s60 + $0x34] sm:$0xf]
  %v75 = vld [vmem:[%s60 + $0x38] sm:$0xf]
  %v76 = vld [vmem:[%s60 + $0x3c] sm:$0xf]
  %v77 = vld [vmem:[%s60 + $0x40] sm:$0xf]
  %v78 = vld [vmem:[%s60 + $0x44] sm:$0xf]
  %v79 = vld [vmem:[%s60 + $0x48] sm:$0xf]
  %v80 = vld [vmem:[%s60 + $0x4c] sm:$0xf]
  %v81 = vld [vmem:[%s60 + $0x50] sm:$0xf]
  %v82 = vld [vmem:[%s60 + $0x54] sm:$0xf]
  %v83 = vld [vmem:[%s60 + $0x58] sm:$0xf]
  %v84 = vld [vmem:[%s60 + $0x5c] sm:$0xf]
  %v85 = vld [vmem:[%s60 + $0x60] sm:$0xf]
  %v86 = vld [vmem:[%s60 + $0x64] sm:$0xf]
  %v87 = vld [vmem:[%s60 + $0x68] sm:$0xf]
  %v88 = vld [vmem:[%s60 + $0x6c] sm:$0xf]
  %v89 = vld [vmem:[%s60 + $0x70] sm:$0xf]
  %v90 = vld [vmem:[%s60 + $0x74] sm:$0xf]
  %v91 = vld [vmem:[%s60 + $0x78] sm:$0xf]
  %v92 = vld [vmem:[%s60 + $0x7c] sm:$0xf]
  %v93 = vld [vmem:[#allocation2] sm:$0xff]
  %v94 = vld [vmem:[#allocation2 + $0x8] sm:$0xff]
  %v95 = vld [vmem:[#allocation2 + $0x10] sm:$0xff]
  %v96 = vld [vmem:[#allocation2 + $0x18] sm:$0xff]
  %v97 = vld [vmem:[#allocation2 + $0x20] sm:$0xff]
  %v98 = vld [vmem:[#allocation2 + $0x28] sm:$0xff]
  %v99 = vld [vmem:[#allocation2 + $0x30] sm:$0xff]
  %v100 = vld [vmem:[#allocation2 + $0x38] sm:$0xff]
  %v101 = vld [vmem:[#allocation2 + $0x40] sm:$0xff]
  %v102 = vld [vmem:[#allocation2 + $0x48] sm:$0xff]
  %v103 = vld [vmem:[#allocation2 + $0x50] sm:$0xff]
  %v104 = vld [vmem:[#allocation2 + $0x58] sm:$0xff]
  %v105 = vld [vmem:[#allocation2 + $0x60] sm:$0xff]
  %v106 = vld [vmem:[#allocation2 + $0x68] sm:$0xff]
  %v107 = vld [vmem:[#allocation2 + $0x70] sm:$0xff]
  %v108 = vld [vmem:[#allocation2 + $0x78] sm:$0xff]
  %v109 = vld [vmem:[#allocation2 + $0x80] sm:$0xff]
  %v110 = vld [vmem:[#allocation2 + $0x88] sm:$0xff]
  %v111 = vld [vmem:[#allocation2 + $0x90] sm:$0xff]
  %v112 = vld [vmem:[#allocation2 + $0x98] sm:$0xff]
  %v113 = vld [vmem:[#allocation2 + $0xa0] sm:$0xff]
  %v114 = vld [vmem:[#allocation2 + $0xa8] sm:$0xff]
  %v115 = vld [vmem:[#allocation2 + $0xb0] sm:$0xff]
  %v116 = vld [vmem:[#allocation2 + $0xb8] sm:$0xff]
  %v117 = vld [vmem:[#allocation2 + $0xc0] sm:$0xff]
  %v118 = vld [vmem:[#allocation2 + $0xc8] sm:$0xff]
  %v119 = vld [vmem:[#allocation2 + $0xd0] sm:$0xff]
  %v120 = vld [vmem:[#allocation2 + $0xd8] sm:$0xff]
  %v121 = vld [vmem:[#allocation2 + $0xe0] sm:$0xff]
  %v122 = vld [vmem:[#allocation2 + $0xe8] sm:$0xff]
  %v123 = vld [vmem:[#allocation2 + $0xf0] sm:$0xff]
  %v124 = vld [vmem:[#allocation2 + $0xf8] sm:$0xff]
  %v125 = vld [vmem:[%s1] sm:$0xff]
  %v126 = vld [vmem:[%s1 + $0x8] sm:$0xff]
  %v127 = vld [vmem:[%s1 + $0x10] sm:$0xff]
  %v128 = vld [vmem:[%s1 + $0x18] sm:$0xff]
  %v129 = vld [vmem:[%s1 + $0x20] sm:$0xff]
  %v130 = vld [vmem:[%s1 + $0x28] sm:$0xff]
  %v131 = vld [vmem:[%s1 + $0x30] sm:$0xff]
  %v132 = vld [vmem:[%s1 + $0x38] sm:$0xff]
  %v133 = vld [vmem:[%s1 + $0x40] sm:$0xff]
  %v134 = vld [vmem:[%s1 + $0x48] sm:$0xff]
  %v135 = vld [vmem:[%s1 + $0x50] sm:$0xff]
  %v136 = vld [vmem:[%s1 + $0x58] sm:$0xff]
  %v137 = vld [vmem:[%s1 + $0x60] sm:$0xff]
  %v138 = vld [vmem:[%s1 + $0x68] sm:$0xff]
  %v139 = vld [vmem:[%s1 + $0x70] sm:$0xff]
  %v140 = vld [vmem:[%s1 + $0x78] sm:$0xff]
  %v141 = vld [vmem:[%s1 + $0x80] sm:$0xff]
  %v142 = vld [vmem:[%s1 + $0x88] sm:$0xff]
  %v143 = vld [vmem:[%s1 + $0x90] sm:$0xff]
  %v144 = vld [vmem:[%s1 + $0x98] sm:$0xff]
  %v145 = vld [vmem:[%s1 + $0xa0] sm:$0xff]
  %v146 = vld [vmem:[%s1 + $0xa8] sm:$0xff]
  %v147 = vld [vmem:[%s1 + $0xb0] sm:$0xff]
  %v148 = vld [vmem:[%s1 + $0xb8] sm:$0xff]
  %v149 = vld [vmem:[%s1 + $0xc0] sm:$0xff]
  %v150 = vld [vmem:[%s1 + $0xc8] sm:$0xff]
  %v151 = vld [vmem:[%s1 + $0xd0] sm:$0xff]
  %v152 = vld [vmem:[%s1 + $0xd8] sm:$0xff]
  %v153 = vld [vmem:[%s1 + $0xe0] sm:$0xff]
  %v154 = vld [vmem:[%s1 + $0xe8] sm:$0xff]
  %v155 = vld [vmem:[%s1 + $0xf0] sm:$0xff]
  %v156 = vld [vmem:[%s1 + $0xf8] sm:$0xff]
  %v189 = vunpack.c.l.b16 %v125
  %v190 = vunpack.c.h.b16 %v125
  %v191 = vunpack.c.l.b16 %v126
  %v192 = vunpack.c.h.b16 %v126
  %v193 = vunpack.c.l.b16 %v127
  %v194 = vunpack.c.h.b16 %v127
  %v195 = vunpack.c.l.b16 %v128
  %v196 = vunpack.c.h.b16 %v128
  %v197 = vunpack.c.l.b16 %v129
  %v198 = vunpack.c.h.b16 %v129
  %v199 = vunpack.c.l.b16 %v130
  %v200 = vunpack.c.h.b16 %v130
  %v201 = vunpack.c.l.b16 %v131
  %v202 = vunpack.c.h.b16 %v131
  %v203 = vunpack.c.l.b16 %v132
  %v204 = vunpack.c.h.b16 %v132
  %v205 = vunpack.c.l.b16 %v133
  %v206 = vunpack.c.h.b16 %v133
  %v207 = vunpack.c.l.b16 %v134
  %v208 = vunpack.c.h.b16 %v134
  %v209 = vunpack.c.l.b16 %v135
  %v210 = vunpack.c.h.b16 %v135
  %v211 = vunpack.c.l.b16 %v136
  %v212 = vunpack.c.h.b16 %v136
  %v213 = vunpack.c.l.b16 %v137
  %v214 = vunpack.c.h.b16 %v137
  %v215 = vunpack.c.l.b16 %v138
  %v216 = vunpack.c.h.b16 %v138
  %v217 = vunpack.c.l.b16 %v139
  %v218 = vunpack.c.h.b16 %v139
  %v219 = vunpack.c.l.b16 %v140
  %v220 = vunpack.c.h.b16 %v140
  %v221 = vunpack.c.l.b16 %v141
  %v222 = vunpack.c.h.b16 %v141
  %v223 = vunpack.c.l.b16 %v142
  %v224 = vunpack.c.h.b16 %v142
  %v225 = vunpack.c.l.b16 %v143
  %v226 = vunpack.c.h.b16 %v143
  %v227 = vunpack.c.l.b16 %v144
  %v228 = vunpack.c.h.b16 %v144
  %v229 = vunpack.c.l.b16 %v145
  %v230 = vunpack.c.h.b16 %v145
  %v231 = vunpack.c.l.b16 %v146
  %v232 = vunpack.c.h.b16 %v146
  %v233 = vunpack.c.l.b16 %v147
  %v234 = vunpack.c.h.b16 %v147
  %v235 = vunpack.c.l.b16 %v148
  %v236 = vunpack.c.h.b16 %v148
  %v237 = vunpack.c.l.b16 %v149
  %v238 = vunpack.c.h.b16 %v149
  %v239 = vunpack.c.l.b16 %v150
  %v240 = vunpack.c.h.b16 %v150
  %v241 = vunpack.c.l.b16 %v151
  %v242 = vunpack.c.h.b16 %v151
  %v243 = vunpack.c.l.b16 %v152
  %v244 = vunpack.c.h.b16 %v152
  %v245 = vunpack.c.l.b16 %v153
  %v246 = vunpack.c.h.b16 %v153
  %v247 = vunpack.c.l.b16 %v154
  %v248 = vunpack.c.h.b16 %v154
  %v249 = vunpack.c.l.b16 %v155
  %v250 = vunpack.c.h.b16 %v155
  %v251 = vunpack.c.l.b16 %v156
  %v252 = vunpack.c.h.b16 %v156
  %v253 = vpack.c.b16 %v191, %v189
  %v254 = vpack.c.b16 %v192, %v190
  %v255 = vpack.c.b16 %v195, %v193
  %v256 = vpack.c.b16 %v196, %v194
  %v257 = vpack.c.b16 %v199, %v197
  %v258 = vpack.c.b16 %v200, %v198
  %v259 = vpack.c.b16 %v203, %v201
  %v260 = vpack.c.b16 %v204, %v202
  %v261 = vpack.c.b16 %v207, %v205
  %v262 = vpack.c.b16 %v208, %v206
  %v263 = vpack.c.b16 %v211, %v209
  %v264 = vpack.c.b16 %v212, %v210
  %v265 = vpack.c.b16 %v215, %v213
  %v266 = vpack.c.b16 %v216, %v214
  %v267 = vpack.c.b16 %v219, %v217
  %v268 = vpack.c.b16 %v220, %v218
  %v269 = vpack.c.b16 %v223, %v221
  %v270 = vpack.c.b16 %v224, %v222
  %v271 = vpack.c.b16 %v227, %v225
  %v272 = vpack.c.b16 %v228, %v226
  %v273 = vpack.c.b16 %v231, %v229
  %v274 = vpack.c.b16 %v232, %v230
  %v275 = vpack.c.b16 %v235, %v233
  %v276 = vpack.c.b16 %v236, %v234
  %v277 = vpack.c.b16 %v239, %v237
  %v278 = vpack.c.b16 %v240, %v238
  %v279 = vpack.c.b16 %v243, %v241
  %v280 = vpack.c.b16 %v244, %v242
  %v281 = vpack.c.b16 %v247, %v245
  %v282 = vpack.c.b16 %v248, %v246
  %v283 = vpack.c.b16 %v251, %v249
  %v284 = vpack.c.b16 %v252, %v250
  %v349 = vunpack.c.l.b16 %v61
  %v350 = vunpack.c.l.b16 %v62
  %v351 = vunpack.c.l.b16 %v63
  %v352 = vunpack.c.l.b16 %v64
  %v353 = vunpack.c.l.b16 %v65
  %v354 = vunpack.c.l.b16 %v66
  %v355 = vunpack.c.l.b16 %v67
  %v356 = vunpack.c.l.b16 %v68
  %v357 = vunpack.c.l.b16 %v69
  %v358 = vunpack.c.l.b16 %v70
  %v359 = vunpack.c.l.b16 %v71
  %v360 = vunpack.c.l.b16 %v72
  %v361 = vunpack.c.l.b16 %v73
  %v362 = vunpack.c.l.b16 %v74
  %v363 = vunpack.c.l.b16 %v75
  %v364 = vunpack.c.l.b16 %v76
  %v365 = vunpack.c.l.b16 %v77
  %v366 = vunpack.c.l.b16 %v78
  %v367 = vunpack.c.l.b16 %v79
  %v368 = vunpack.c.l.b16 %v80
  %v369 = vunpack.c.l.b16 %v81
  %v370 = vunpack.c.l.b16 %v82
  %v371 = vunpack.c.l.b16 %v83
  %v372 = vunpack.c.l.b16 %v84
  %v373 = vunpack.c.l.b16 %v85
  %v374 = vunpack.c.l.b16 %v86
  %v375 = vunpack.c.l.b16 %v87
  %v376 = vunpack.c.l.b16 %v88
  %v377 = vunpack.c.l.b16 %v89
  %v378 = vunpack.c.l.b16 %v90
  %v379 = vunpack.c.l.b16 %v91
  %v380 = vunpack.c.l.b16 %v92
  %v381 = vpack.c.b16 %v350, %v349
  %v382 = vpack.c.b16 %v352, %v351
  %v383 = vpack.c.b16 %v354, %v353
  %v384 = vpack.c.b16 %v356, %v355
  %v385 = vpack.c.b16 %v358, %v357
  %v386 = vpack.c.b16 %v360, %v359
  %v387 = vpack.c.b16 %v362, %v361
  %v388 = vpack.c.b16 %v364, %v363
  %v389 = vpack.c.b16 %v366, %v365
  %v390 = vpack.c.b16 %v368, %v367
  %v391 = vpack.c.b16 %v370, %v369
  %v392 = vpack.c.b16 %v372, %v371
  %v393 = vpack.c.b16 %v374, %v373
  %v394 = vpack.c.b16 %v376, %v375
  %v395 = vpack.c.b16 %v378, %v377
  %v396 = vpack.c.b16 %v380, %v379
  %413 = vmatpush.bf16.msra.mxu0 %v388
  %414 = vmatpush.bf16.msra.mxu0 %v387
  %415 = vmatpush.bf16.msra.mxu0 %v386
  %416 = vmatpush.bf16.msra.mxu0 %v385
  %417 = vmatpush.bf16.msra.mxu0 %v384
  %418 = vmatpush.bf16.msra.mxu0 %v383
  %419 = vmatpush.bf16.msra.mxu0 %v382
  %420 = vmatpush.bf16.msra.mxu0 %v381
  %421 = vmatmul.bf16.gmra.mxu0 %v253
  %v422 = vpop.f32.mrf.mxu0
  %v423 = vadd.f32 0.0, %v422
  %v424 = vpop.f32.mrf.mxu0
  %v425 = vadd.f32 0.0, %v424
  %426 = vmatmul.bf16.gmra.mxu0 %v255
  %v427 = vpop.f32.mrf.mxu0
  %v428 = vadd.f32 0.0, %v427
  %v429 = vpop.f32.mrf.mxu0
  %v430 = vadd.f32 0.0, %v429
  %431 = vmatmul.bf16.gmra.mxu0 %v257
  %v432 = vpop.f32.mrf.mxu0
  %v433 = vadd.f32 0.0, %v432
  %v434 = vpop.f32.mrf.mxu0
  %v435 = vadd.f32 0.0, %v434
  %436 = vmatmul.bf16.gmra.mxu0 %v259
  %v437 = vpop.f32.mrf.mxu0
  %v438 = vadd.f32 0.0, %v437
  %v439 = vpop.f32.mrf.mxu0
  %v440 = vadd.f32 0.0, %v439
  %441 = vmatmul.bf16.gmra.mxu0 %v261
  %v442 = vpop.f32.mrf.mxu0
  %v443 = vadd.f32 0.0, %v442
  %v444 = vpop.f32.mrf.mxu0
  %v445 = vadd.f32 0.0, %v444
  %446 = vmatmul.bf16.gmra.mxu0 %v263
  %v447 = vpop.f32.mrf.mxu0
  %v448 = vadd.f32 0.0, %v447
  %v449 = vpop.f32.mrf.mxu0
  %v450 = vadd.f32 0.0, %v449
  %451 = vmatmul.bf16.gmra.mxu0 %v265
  %v452 = vpop.f32.mrf.mxu0
  %v453 = vadd.f32 0.0, %v452
  %v454 = vpop.f32.mrf.mxu0
  %v455 = vadd.f32 0.0, %v454
  %456 = vmatmul.bf16.gmra.mxu0 %v267
  %v457 = vpop.f32.mrf.mxu0
  %v458 = vadd.f32 0.0, %v457
  %v459 = vpop.f32.mrf.mxu0
  %v460 = vadd.f32 0.0, %v459
  %461 = vmatmul.bf16.gmra.mxu0 %v269
  %v462 = vpop.f32.mrf.mxu0
  %v463 = vadd.f32 0.0, %v462
  %v464 = vpop.f32.mrf.mxu0
  %v465 = vadd.f32 0.0, %v464
  %466 = vmatmul.bf16.gmra.mxu0 %v271
  %v467 = vpop.f32.mrf.mxu0
  %v468 = vadd.f32 0.0, %v467
  %v469 = vpop.f32.mrf.mxu0
  %v470 = vadd.f32 0.0, %v469
  %471 = vmatmul.bf16.gmra.mxu0 %v273
  %v472 = vpop.f32.mrf.mxu0
  %v473 = vadd.f32 0.0, %v472
  %v474 = vpop.f32.mrf.mxu0
  %v475 = vadd.f32 0.0, %v474
  %476 = vmatmul.bf16.gmra.mxu0 %v275
  %v477 = vpop.f32.mrf.mxu0
  %v478 = vadd.f32 0.0, %v477
  %v479 = vpop.f32.mrf.mxu0
  %v480 = vadd.f32 0.0, %v479
  %481 = vmatmul.bf16.gmra.mxu0 %v277
  %v482 = vpop.f32.mrf.mxu0
  %v483 = vadd.f32 0.0, %v482
  %v484 = vpop.f32.mrf.mxu0
  %v485 = vadd.f32 0.0, %v484
  %486 = vmatmul.bf16.gmra.mxu0 %v279
  %v487 = vpop.f32.mrf.mxu0
  %v488 = vadd.f32 0.0, %v487
  %v489 = vpop.f32.mrf.mxu0
  %v490 = vadd.f32 0.0, %v489
  %491 = vmatmul.bf16.gmra.mxu0 %v281
  %v492 = vpop.f32.mrf.mxu0
  %v493 = vadd.f32 0.0, %v492
  %v494 = vpop.f32.mrf.mxu0
  %v495 = vadd.f32 0.0, %v494
  %496 = vmatmul.bf16.gmra.mxu0 %v283
  %v497 = vpop.f32.mrf.mxu0
  %v498 = vadd.f32 0.0, %v497
  %v499 = vpop.f32.mrf.mxu0
  %v500 = vadd.f32 0.0, %v499
  %501 = vdwg.mxu0
  %502 = vmatpush.bf16.msra.mxu0 %v396
  %503 = vmatpush.bf16.msra.mxu0 %v395
  %504 = vmatpush.bf16.msra.mxu0 %v394
  %505 = vmatpush.bf16.msra.mxu0 %v393
  %506 = vmatpush.bf16.msra.mxu0 %v392
  %507 = vmatpush.bf16.msra.mxu0 %v391
  %508 = vmatpush.bf16.msra.mxu0 %v390
  %509 = vmatpush.bf16.msra.mxu0 %v389
  %510 = vmatmul.bf16.gmra.mxu0 %v254
  %v511 = vpop.f32.mrf.mxu0
  %v512 = vadd.f32 %v423, %v511
  %v513 = vpop.f32.mrf.mxu0
  %v514 = vadd.f32 %v425, %v513
  %515 = vmatmul.bf16.gmra.mxu0 %v256
  %v516 = vpop.f32.mrf.mxu0
  %v517 = vadd.f32 %v428, %v516
  %v518 = vpop.f32.mrf.mxu0
  %v519 = vadd.f32 %v430, %v518
  %520 = vmatmul.bf16.gmra.mxu0 %v258
  %v521 = vpop.f32.mrf.mxu0
  %v522 = vadd.f32 %v433, %v521
  %v523 = vpop.f32.mrf.mxu0
  %v524 = vadd.f32 %v435, %v523
  %525 = vmatmul.bf16.gmra.mxu0 %v260
  %v526 = vpop.f32.mrf.mxu0
  %v527 = vadd.f32 %v438, %v526
  %v528 = vpop.f32.mrf.mxu0
  %v529 = vadd.f32 %v440, %v528
  %530 = vmatmul.bf16.gmra.mxu0 %v262
  %v531 = vpop.f32.mrf.mxu0
  %v532 = vadd.f32 %v443, %v531
  %v533 = vpop.f32.mrf.mxu0
  %v534 = vadd.f32 %v445, %v533
  %535 = vmatmul.bf16.gmra.mxu0 %v264
  %v536 = vpop.f32.mrf.mxu0
  %v537 = vadd.f32 %v448, %v536
  %v538 = vpop.f32.mrf.mxu0
  %v539 = vadd.f32 %v450, %v538
  %540 = vmatmul.bf16.gmra.mxu0 %v266
  %v541 = vpop.f32.mrf.mxu0
  %v542 = vadd.f32 %v453, %v541
  %v543 = vpop.f32.mrf.mxu0
  %v544 = vadd.f32 %v455, %v543
  %545 = vmatmul.bf16.gmra.mxu0 %v268
  %v546 = vpop.f32.mrf.mxu0
  %v547 = vadd.f32 %v458, %v546
  %v548 = vpop.f32.mrf.mxu0
  %v549 = vadd.f32 %v460, %v548
  %550 = vmatmul.bf16.gmra.mxu0 %v270
  %v551 = vpop.f32.mrf.mxu0
  %v552 = vadd.f32 %v463, %v551
  %v553 = vpop.f32.mrf.mxu0
  %v554 = vadd.f32 %v465, %v553
  %555 = vmatmul.bf16.gmra.mxu0 %v272
  %v556 = vpop.f32.mrf.mxu0
  %v557 = vadd.f32 %v468, %v556
  %v558 = vpop.f32.mrf.mxu0
  %v559 = vadd.f32 %v470, %v558
  %560 = vmatmul.bf16.gmra.mxu0 %v274
  %v561 = vpop.f32.mrf.mxu0
  %v562 = vadd.f32 %v473, %v561
  %v563 = vpop.f32.mrf.mxu0
  %v564 = vadd.f32 %v475, %v563
  %565 = vmatmul.bf16.gmra.mxu0 %v276
  %v566 = vpop.f32.mrf.mxu0
  %v567 = vadd.f32 %v478, %v566
  %v568 = vpop.f32.mrf.mxu0
  %v569 = vadd.f32 %v480, %v568
  %570 = vmatmul.bf16.gmra.mxu0 %v278
  %v571 = vpop.f32.mrf.mxu0
  %v572 = vadd.f32 %v483, %v571
  %v573 = vpop.f32.mrf.mxu0
  %v574 = vadd.f32 %v485, %v573
  %575 = vmatmul.bf16.gmra.mxu0 %v280
  %v576 = vpop.f32.mrf.mxu0
  %v577 = vadd.f32 %v488, %v576
  %v578 = vpop.f32.mrf.mxu0
  %v579 = vadd.f32 %v490, %v578
  %580 = vmatmul.bf16.gmra.mxu0 %v282
  %v581 = vpop.f32.mrf.mxu0
  %v582 = vadd.f32 %v493, %v581
  %v583 = vpop.f32.mrf.mxu0
  %v584 = vadd.f32 %v495, %v583
  %585 = vmatmul.bf16.gmra.mxu0 %v284
  %v586 = vpop.f32.mrf.mxu0
  %v587 = vadd.f32 %v498, %v586
  %v588 = vpop.f32.mrf.mxu0
  %v589 = vadd.f32 %v500, %v588
  %590 = vdwg.mxu0
  %v591 = vadd.f32 %v93, %v512
  %v592 = vadd.f32 %v94, %v514
  %v593 = vadd.f32 %v95, %v517
  %v594 = vadd.f32 %v96, %v519
  %v595 = vadd.f32 %v97, %v522
  %v596 = vadd.f32 %v98, %v524
  %v597 = vadd.f32 %v99, %v527
  %v598 = vadd.f32 %v100, %v529
  %v599 = vadd.f32 %v101, %v532
  %v600 = vadd.f32 %v102, %v534
  %v601 = vadd.f32 %v103, %v537
  %v602 = vadd.f32 %v104, %v539
  %v603 = vadd.f32 %v105, %v542
  %v604 = vadd.f32 %v106, %v544
  %v605 = vadd.f32 %v107, %v547
  %v606 = vadd.f32 %v108, %v549
  %v607 = vadd.f32 %v109, %v552
  %v608 = vadd.f32 %v110, %v554
  %v609 = vadd.f32 %v111, %v557
  %v610 = vadd.f32 %v112, %v559
  %v611 = vadd.f32 %v113, %v562
  %v612 = vadd.f32 %v114, %v564
  %v613 = vadd.f32 %v115, %v567
  %v614 = vadd.f32 %v116, %v569
  %v615 = vadd.f32 %v117, %v572
  %v616 = vadd.f32 %v118, %v574
  %v617 = vadd.f32 %v119, %v577
  %v618 = vadd.f32 %v120, %v579
  %v619 = vadd.f32 %v121, %v582
  %v620 = vadd.f32 %v122, %v584
  %v621 = vadd.f32 %v123, %v587
  %v622 = vadd.f32 %v124, %v589
  %623 = vst [vmem:[#allocation2] sm:$0xff] %v591
  %624 = vst [vmem:[#allocation2 + $0x8] sm:$0xff] %v592
  %625 = vst [vmem:[#allocation2 + $0x10] sm:$0xff] %v593
  %626 = vst [vmem:[#allocation2 + $0x18] sm:$0xff] %v594
  %627 = vst [vmem:[#allocation2 + $0x20] sm:$0xff] %v595
  %628 = vst [vmem:[#allocation2 + $0x28] sm:$0xff] %v596
  %629 = vst [vmem:[#allocation2 + $0x30] sm:$0xff] %v597
  %630 = vst [vmem:[#allocation2 + $0x38] sm:$0xff] %v598
  %631 = vst [vmem:[#allocation2 + $0x40] sm:$0xff] %v599
  %632 = vst [vmem:[#allocation2 + $0x48] sm:$0xff] %v600
  %633 = vst [vmem:[#allocation2 + $0x50] sm:$0xff] %v601
  %634 = vst [vmem:[#allocation2 + $0x58] sm:$0xff] %v602
  %635 = vst [vmem:[#allocation2 + $0x60] sm:$0xff] %v603
  %636 = vst [vmem:[#allocation2 + $0x68] sm:$0xff] %v604
  %637 = vst [vmem:[#allocation2 + $0x70] sm:$0xff] %v605
  %638 = vst [vmem:[#allocation2 + $0x78] sm:$0xff] %v606
  %639 = vst [vmem:[#allocation2 + $0x80] sm:$0xff] %v607
  %640 = vst [vmem:[#allocation2 + $0x88] sm:$0xff] %v608
  %641 = vst [vmem:[#allocation2 + $0x90] sm:$0xff] %v609
  %642 = vst [vmem:[#allocation2 + $0x98] sm:$0xff] %v610
  %643 = vst [vmem:[#allocation2 + $0xa0] sm:$0xff] %v611
  %644 = vst [vmem:[#allocation2 + $0xa8] sm:$0xff] %v612
  %645 = vst [vmem:[#allocation2 + $0xb0] sm:$0xff] %v613
  %646 = vst [vmem:[#allocation2 + $0xb8] sm:$0xff] %v614
  %647 = vst [vmem:[#allocation2 + $0xc0] sm:$0xff] %v615
  %648 = vst [vmem:[#allocation2 + $0xc8] sm:$0xff] %v616
  %649 = vst [vmem:[#allocation2 + $0xd0] sm:$0xff] %v617
  %650 = vst [vmem:[#allocation2 + $0xd8] sm:$0xff] %v618
  %651 = vst [vmem:[#allocation2 + $0xe0] sm:$0xff] %v619
  %652 = vst [vmem:[#allocation2 + $0xe8] sm:$0xff] %v620
  %653 = vst [vmem:[#allocation2 + $0xf0] sm:$0xff] %v621
  %654 = vst [vmem:[#allocation2 + $0xf8] sm:$0xff] %v622
  // Predicated region
  $region26: #{unitary_gcn_forward.3} parent=0 // pred_check
    %p655 = pneg %p20
  $region27: #{unitary_gcn_forward.3} parent=0 // pred_check_branch
    %657 = sbr.rel (%p655) target = $region29
  $region28: #{unitary_gcn_forward.3} parent=0 // pred_region
    %v658 = vld [vmem:[#allocation2] sm:$0xff]
    %v659 = vld [vmem:[#allocation2 + $0x8] sm:$0xff]
    %v660 = vld [vmem:[#allocation2 + $0x10] sm:$0xff]
    %v661 = vld [vmem:[#allocation2 + $0x18] sm:$0xff]
    %v662 = vld [vmem:[#allocation2 + $0x20] sm:$0xff]
    %v663 = vld [vmem:[#allocation2 + $0x28] sm:$0xff]
    %v664 = vld [vmem:[#allocation2 + $0x30] sm:$0xff]
    %v665 = vld [vmem:[#allocation2 + $0x38] sm:$0xff]
    %v666 = vld [vmem:[#allocation2 + $0x40] sm:$0xff]
    %v667 = vld [vmem:[#allocation2 + $0x48] sm:$0xff]
    %v668 = vld [vmem:[#allocation2 + $0x50] sm:$0xff]
    %v669 = vld [vmem:[#allocation2 + $0x58] sm:$0xff]
    %v670 = vld [vmem:[#allocation2 + $0x60] sm:$0xff]
    %v671 = vld [vmem:[#allocation2 + $0x68] sm:$0xff]
    %v672 = vld [vmem:[#allocation2 + $0x70] sm:$0xff]
    %v673 = vld [vmem:[#allocation2 + $0x78] sm:$0xff]
    %v674 = vld [vmem:[#allocation2 + $0x80] sm:$0xff]
    %v675 = vld [vmem:[#allocation2 + $0x88] sm:$0xff]
    %v676 = vld [vmem:[#allocation2 + $0x90] sm:$0xff]
    %v677 = vld [vmem:[#allocation2 + $0x98] sm:$0xff]
    %v678 = vld [vmem:[#allocation2 + $0xa0] sm:$0xff]
    %v679 = vld [vmem:[#allocation2 + $0xa8] sm:$0xff]
    %v680 = vld [vmem:[#allocation2 + $0xb0] sm:$0xff]
    %v681 = vld [vmem:[#allocation2 + $0xb8] sm:$0xff]
    %v682 = vld [vmem:[#allocation2 + $0xc0] sm:$0xff]
    %v683 = vld [vmem:[#allocation2 + $0xc8] sm:$0xff]
    %v684 = vld [vmem:[#allocation2 + $0xd0] sm:$0xff]
    %v685 = vld [vmem:[#allocation2 + $0xd8] sm:$0xff]
    %v686 = vld [vmem:[#allocation2 + $0xe0] sm:$0xff]
    %v687 = vld [vmem:[#allocation2 + $0xe8] sm:$0xff]
    %v688 = vld [vmem:[#allocation2 + $0xf0] sm:$0xff]
    %v689 = vld [vmem:[#allocation2 + $0xf8] sm:$0xff]
    %v690 = vpack.c.bf16 %v659, %v658
    %v691 = vpack.c.bf16 %v661, %v660
    %v692 = vpack.c.bf16 %v663, %v662
    %v693 = vpack.c.bf16 %v665, %v664
    %v694 = vpack.c.bf16 %v667, %v666
    %v695 = vpack.c.bf16 %v669, %v668
    %v696 = vpack.c.bf16 %v671, %v670
    %v697 = vpack.c.bf16 %v673, %v672
    %v698 = vpack.c.bf16 %v675, %v674
    %v699 = vpack.c.bf16 %v677, %v676
    %v700 = vpack.c.bf16 %v679, %v678
    %v701 = vpack.c.bf16 %v681, %v680
    %v702 = vpack.c.bf16 %v683, %v682
    %v703 = vpack.c.bf16 %v685, %v684
    %v704 = vpack.c.bf16 %v687, %v686
    %v705 = vpack.c.bf16 %v689, %v688
    %v706 = vld [vmem:[%s2] sm:$0xf]
    %v707 = vld [vmem:[%s2 + $0x4] sm:$0xf]
    %v708 = vld [vmem:[%s2 + $0x8] sm:$0xf]
    %v709 = vld [vmem:[%s2 + $0xc] sm:$0xf]
    %v710 = vld [vmem:[%s2 + $0x10] sm:$0xf]
    %v711 = vld [vmem:[%s2 + $0x14] sm:$0xf]
    %v712 = vld [vmem:[%s2 + $0x18] sm:$0xf]
    %v713 = vld [vmem:[%s2 + $0x1c] sm:$0xf]
    %v714 = vld [vmem:[%s2 + $0x20] sm:$0xf]
    %v715 = vld [vmem:[%s2 + $0x24] sm:$0xf]
    %v716 = vld [vmem:[%s2 + $0x28] sm:$0xf]
    %v717 = vld [vmem:[%s2 + $0x2c] sm:$0xf]
    %v718 = vld [vmem:[%s2 + $0x30] sm:$0xf]
    %v719 = vld [vmem:[%s2 + $0x34] sm:$0xf]
    %v720 = vld [vmem:[%s2 + $0x38] sm:$0xf]
    %v721 = vld [vmem:[%s2 + $0x3c] sm:$0xf]
    %v738 = vunpack.c.l.b16 %v706
    %v739 = vunpack.c.l.b16 %v707
    %v740 = vunpack.c.l.b16 %v708
    %v741 = vunpack.c.l.b16 %v709
    %v742 = vunpack.c.l.b16 %v710
    %v743 = vunpack.c.l.b16 %v711
    %v744 = vunpack.c.l.b16 %v712
    %v745 = vunpack.c.l.b16 %v713
    %v746 = vunpack.c.l.b16 %v714
    %v747 = vunpack.c.l.b16 %v715
    %v748 = vunpack.c.l.b16 %v716
    %v749 = vunpack.c.l.b16 %v717
    %v750 = vunpack.c.l.b16 %v718
    %v751 = vunpack.c.l.b16 %v719
    %v752 = vunpack.c.l.b16 %v720
    %v753 = vunpack.c.l.b16 %v721
    %v754 = vpack.c.b16 %v739, %v738
    %v755 = vpack.c.b16 %v741, %v740
    %v756 = vpack.c.b16 %v743, %v742
    %v757 = vpack.c.b16 %v745, %v744
    %v758 = vpack.c.b16 %v747, %v746
    %v759 = vpack.c.b16 %v749, %v748
    %v760 = vpack.c.b16 %v751, %v750
    %v761 = vpack.c.b16 %v753, %v752
    %770 = vmatpush.bf16.msra.mxu0 %v761
    %771 = vmatpush.bf16.msra.mxu0 %v760
    %772 = vmatpush.bf16.msra.mxu0 %v759
    %773 = vmatpush.bf16.msra.mxu0 %v758
    %774 = vmatpush.bf16.msra.mxu0 %v757
    %775 = vmatpush.bf16.msra.mxu0 %v756
    %776 = vmatpush.bf16.msra.mxu0 %v755
    %777 = vmatpush.bf16.msra.mxu0 %v754
    %778 = vmatmul.bf16.gmra.mxu0 %v690
    %v779 = vpop.f32.mrf.mxu0
    %v780 = vadd.f32 0.0, %v779
    %v781 = vpop.f32.mrf.mxu0
    %v782 = vadd.f32 0.0, %v781
    %783 = vmatmul.bf16.gmra.mxu0 %v691
    %v784 = vpop.f32.mrf.mxu0
    %v785 = vadd.f32 0.0, %v784
    %v786 = vpop.f32.mrf.mxu0
    %v787 = vadd.f32 0.0, %v786
    %788 = vmatmul.bf16.gmra.mxu0 %v692
    %v789 = vpop.f32.mrf.mxu0
    %v790 = vadd.f32 0.0, %v789
    %v791 = vpop.f32.mrf.mxu0
    %v792 = vadd.f32 0.0, %v791
    %793 = vmatmul.bf16.gmra.mxu0 %v693
    %v794 = vpop.f32.mrf.mxu0
    %v795 = vadd.f32 0.0, %v794
    %v796 = vpop.f32.mrf.mxu0
    %v797 = vadd.f32 0.0, %v796
    %798 = vmatmul.bf16.gmra.mxu0 %v694
    %v799 = vpop.f32.mrf.mxu0
    %v800 = vadd.f32 0.0, %v799
    %v801 = vpop.f32.mrf.mxu0
    %v802 = vadd.f32 0.0, %v801
    %803 = vmatmul.bf16.gmra.mxu0 %v695
    %v804 = vpop.f32.mrf.mxu0
    %v805 = vadd.f32 0.0, %v804
    %v806 = vpop.f32.mrf.mxu0
    %v807 = vadd.f32 0.0, %v806
    %808 = vmatmul.bf16.gmra.mxu0 %v696
    %v809 = vpop.f32.mrf.mxu0
    %v810 = vadd.f32 0.0, %v809
    %v811 = vpop.f32.mrf.mxu0
    %v812 = vadd.f32 0.0, %v811
    %813 = vmatmul.bf16.gmra.mxu0 %v697
    %v814 = vpop.f32.mrf.mxu0
    %v815 = vadd.f32 0.0, %v814
    %v816 = vpop.f32.mrf.mxu0
    %v817 = vadd.f32 0.0, %v816
    %818 = vmatmul.bf16.gmra.mxu0 %v698
    %v819 = vpop.f32.mrf.mxu0
    %v820 = vadd.f32 0.0, %v819
    %v821 = vpop.f32.mrf.mxu0
    %v822 = vadd.f32 0.0, %v821
    %823 = vmatmul.bf16.gmra.mxu0 %v699
    %v824 = vpop.f32.mrf.mxu0
    %v825 = vadd.f32 0.0, %v824
    %v826 = vpop.f32.mrf.mxu0
    %v827 = vadd.f32 0.0, %v826
    %828 = vmatmul.bf16.gmra.mxu0 %v700
    %v829 = vpop.f32.mrf.mxu0
    %v830 = vadd.f32 0.0, %v829
    %v831 = vpop.f32.mrf.mxu0
    %v832 = vadd.f32 0.0, %v831
    %833 = vmatmul.bf16.gmra.mxu0 %v701
    %v834 = vpop.f32.mrf.mxu0
    %v835 = vadd.f32 0.0, %v834
    %v836 = vpop.f32.mrf.mxu0
    %v837 = vadd.f32 0.0, %v836
    %838 = vmatmul.bf16.gmra.mxu0 %v702
    %v839 = vpop.f32.mrf.mxu0
    %v840 = vadd.f32 0.0, %v839
    %v841 = vpop.f32.mrf.mxu0
    %v842 = vadd.f32 0.0, %v841
    %843 = vmatmul.bf16.gmra.mxu0 %v703
    %v844 = vpop.f32.mrf.mxu0
    %v845 = vadd.f32 0.0, %v844
    %v846 = vpop.f32.mrf.mxu0
    %v847 = vadd.f32 0.0, %v846
    %848 = vmatmul.bf16.gmra.mxu0 %v704
    %v849 = vpop.f32.mrf.mxu0
    %v850 = vadd.f32 0.0, %v849
    %v851 = vpop.f32.mrf.mxu0
    %v852 = vadd.f32 0.0, %v851
    %853 = vmatmul.bf16.gmra.mxu0 %v705
    %v854 = vpop.f32.mrf.mxu0
    %v855 = vadd.f32 0.0, %v854
    %v856 = vpop.f32.mrf.mxu0
    %v857 = vadd.f32 0.0, %v856
    %858 = vdwg.mxu0
    %v859 = vpack.c.bf16 %v780, %v780
    %v860 = vpack.c.bf16 %v782, %v782
    %v861 = vpack.c.bf16 %v785, %v785
    %v862 = vpack.c.bf16 %v787, %v787
    %v863 = vpack.c.bf16 %v790, %v790
    %v864 = vpack.c.bf16 %v792, %v792
    %v865 = vpack.c.bf16 %v795, %v795
    %v866 = vpack.c.bf16 %v797, %v797
    %v867 = vpack.c.bf16 %v800, %v800
    %v868 = vpack.c.bf16 %v802, %v802
    %v869 = vpack.c.bf16 %v805, %v805
    %v870 = vpack.c.bf16 %v807, %v807
    %v871 = vpack.c.bf16 %v810, %v810
    %v872 = vpack.c.bf16 %v812, %v812
    %v873 = vpack.c.bf16 %v815, %v815
    %v874 = vpack.c.bf16 %v817, %v817
    %v875 = vpack.c.bf16 %v820, %v820
    %v876 = vpack.c.bf16 %v822, %v822
    %v877 = vpack.c.bf16 %v825, %v825
    %v878 = vpack.c.bf16 %v827, %v827
    %v879 = vpack.c.bf16 %v830, %v830
    %v880 = vpack.c.bf16 %v832, %v832
    %v881 = vpack.c.bf16 %v835, %v835
    %v882 = vpack.c.bf16 %v837, %v837
    %v883 = vpack.c.bf16 %v840, %v840
    %v884 = vpack.c.bf16 %v842, %v842
    %v885 = vpack.c.bf16 %v845, %v845
    %v886 = vpack.c.bf16 %v847, %v847
    %v887 = vpack.c.bf16 %v850, %v850
    %v888 = vpack.c.bf16 %v852, %v852
    %v889 = vpack.c.bf16 %v855, %v855
    %v890 = vpack.c.bf16 %v857, %v857
    %891 = vst [vmem:[%s5] sm:$0xf] %v859
    %892 = vst [vmem:[%s5 + $0x8] sm:$0xf] %v860
    %893 = vst [vmem:[%s5 + $0x10] sm:$0xf] %v861
    %894 = vst [vmem:[%s5 + $0x18] sm:$0xf] %v862
    %895 = vst [vmem:[%s5 + $0x20] sm:$0xf] %v863
    %896 = vst [vmem:[%s5 + $0x28] sm:$0xf] %v864
    %897 = vst [vmem:[%s5 + $0x30] sm:$0xf] %v865
    %898 = vst [vmem:[%s5 + $0x38] sm:$0xf] %v866
    %899 = vst [vmem:[%s5 + $0x40] sm:$0xf] %v867
    %900 = vst [vmem:[%s5 + $0x48] sm:$0xf] %v868
    %901 = vst [vmem:[%s5 + $0x50] sm:$0xf] %v869
    %902 = vst [vmem:[%s5 + $0x58] sm:$0xf] %v870
    %903 = vst [vmem:[%s5 + $0x60] sm:$0xf] %v871
    %904 = vst [vmem:[%s5 + $0x68] sm:$0xf] %v872
    %905 = vst [vmem:[%s5 + $0x70] sm:$0xf] %v873
    %906 = vst [vmem:[%s5 + $0x78] sm:$0xf] %v874
    %907 = vst [vmem:[%s5 + $0x80] sm:$0xf] %v875
    %908 = vst [vmem:[%s5 + $0x88] sm:$0xf] %v876
    %909 = vst [vmem:[%s5 + $0x90] sm:$0xf] %v877
    %910 = vst [vmem:[%s5 + $0x98] sm:$0xf] %v878
    %911 = vst [vmem:[%s5 + $0xa0] sm:$0xf] %v879
    %912 = vst [vmem:[%s5 + $0xa8] sm:$0xf] %v880
    %913 = vst [vmem:[%s5 + $0xb0] sm:$0xf] %v881
    %914 = vst [vmem:[%s5 + $0xb8] sm:$0xf] %v882
    %915 = vst [vmem:[%s5 + $0xc0] sm:$0xf] %v883
    %916 = vst [vmem:[%s5 + $0xc8] sm:$0xf] %v884
    %917 = vst [vmem:[%s5 + $0xd0] sm:$0xf] %v885
    %918 = vst [vmem:[%s5 + $0xd8] sm:$0xf] %v886
    %919 = vst [vmem:[%s5 + $0xe0] sm:$0xf] %v887
    %920 = vst [vmem:[%s5 + $0xe8] sm:$0xf] %v888
    %921 = vst [vmem:[%s5 + $0xf0] sm:$0xf] %v889
    %922 = vst [vmem:[%s5 + $0xf8] sm:$0xf] %v890
    %v923 = vld [vmem:[%s3] sm:$0xf]
    %v924 = vld [vmem:[%s3 + $0x4] sm:$0xf]
    %v925 = vld [vmem:[%s3 + $0x8] sm:$0xf]
    %v926 = vld [vmem:[%s3 + $0xc] sm:$0xf]
    %v927 = vld [vmem:[%s3 + $0x10] sm:$0xf]
    %v928 = vld [vmem:[%s3 + $0x14] sm:$0xf]
    %v929 = vld [vmem:[%s3 + $0x18] sm:$0xf]
    %v930 = vld [vmem:[%s3 + $0x1c] sm:$0xf]
    %v931 = vld [vmem:[%s3 + $0x20] sm:$0xf]
    %v932 = vld [vmem:[%s3 + $0x24] sm:$0xf]
    %v933 = vld [vmem:[%s3 + $0x28] sm:$0xf]
    %v934 = vld [vmem:[%s3 + $0x2c] sm:$0xf]
    %v935 = vld [vmem:[%s3 + $0x30] sm:$0xf]
    %v936 = vld [vmem:[%s3 + $0x34] sm:$0xf]
    %v937 = vld [vmem:[%s3 + $0x38] sm:$0xf]
    %v938 = vld [vmem:[%s3 + $0x3c] sm:$0xf]
    %v955 = vunpack.c.l.b16 %v923
    %v956 = vunpack.c.l.b16 %v924
    %v957 = vunpack.c.l.b16 %v925
    %v958 = vunpack.c.l.b16 %v926
    %v959 = vunpack.c.l.b16 %v927
    %v960 = vunpack.c.l.b16 %v928
    %v961 = vunpack.c.l.b16 %v929
    %v962 = vunpack.c.l.b16 %v930
    %v963 = vunpack.c.l.b16 %v931
    %v964 = vunpack.c.l.b16 %v932
    %v965 = vunpack.c.l.b16 %v933
    %v966 = vunpack.c.l.b16 %v934
    %v967 = vunpack.c.l.b16 %v935
    %v968 = vunpack.c.l.b16 %v936
    %v969 = vunpack.c.l.b16 %v937
    %v970 = vunpack.c.l.b16 %v938
    %v971 = vpack.c.b16 %v956, %v955
    %v972 = vpack.c.b16 %v958, %v957
    %v973 = vpack.c.b16 %v960, %v959
    %v974 = vpack.c.b16 %v962, %v961
    %v975 = vpack.c.b16 %v964, %v963
    %v976 = vpack.c.b16 %v966, %v965
    %v977 = vpack.c.b16 %v968, %v967
    %v978 = vpack.c.b16 %v970, %v969
    %987 = vmatpush.bf16.msra.mxu0 %v978
    %988 = vmatpush.bf16.msra.mxu0 %v977
    %989 = vmatpush.bf16.msra.mxu0 %v976
    %990 = vmatpush.bf16.msra.mxu0 %v975
    %991 = vmatpush.bf16.msra.mxu0 %v974
    %992 = vmatpush.bf16.msra.mxu0 %v973
    %993 = vmatpush.bf16.msra.mxu0 %v972
    %994 = vmatpush.bf16.msra.mxu0 %v971
    %995 = vmatmul.bf16.gmra.mxu0 %v690
    %v996 = vpop.f32.mrf.mxu0
    %v997 = vadd.f32 0.0, %v996
    %v998 = vpop.f32.mrf.mxu0
    %v999 = vadd.f32 0.0, %v998
    %1000 = vmatmul.bf16.gmra.mxu0 %v691
    %v1001 = vpop.f32.mrf.mxu0
    %v1002 = vadd.f32 0.0, %v1001
    %v1003 = vpop.f32.mrf.mxu0
    %v1004 = vadd.f32 0.0, %v1003
    %1005 = vmatmul.bf16.gmra.mxu0 %v692
    %v1006 = vpop.f32.mrf.mxu0
    %v1007 = vadd.f32 0.0, %v1006
    %v1008 = vpop.f32.mrf.mxu0
    %v1009 = vadd.f32 0.0, %v1008
    %1010 = vmatmul.bf16.gmra.mxu0 %v693
    %v1011 = vpop.f32.mrf.mxu0
    %v1012 = vadd.f32 0.0, %v1011
    %v1013 = vpop.f32.mrf.mxu0
    %v1014 = vadd.f32 0.0, %v1013
    %1015 = vmatmul.bf16.gmra.mxu0 %v694
    %v1016 = vpop.f32.mrf.mxu0
    %v1017 = vadd.f32 0.0, %v1016
    %v1018 = vpop.f32.mrf.mxu0
    %v1019 = vadd.f32 0.0, %v1018
    %1020 = vmatmul.bf16.gmra.mxu0 %v695
    %v1021 = vpop.f32.mrf.mxu0
    %v1022 = vadd.f32 0.0, %v1021
    %v1023 = vpop.f32.mrf.mxu0
    %v1024 = vadd.f32 0.0, %v1023
    %1025 = vmatmul.bf16.gmra.mxu0 %v696
    %v1026 = vpop.f32.mrf.mxu0
    %v1027 = vadd.f32 0.0, %v1026
    %v1028 = vpop.f32.mrf.mxu0
    %v1029 = vadd.f32 0.0, %v1028
    %1030 = vmatmul.bf16.gmra.mxu0 %v697
    %v1031 = vpop.f32.mrf.mxu0
    %v1032 = vadd.f32 0.0, %v1031
    %v1033 = vpop.f32.mrf.mxu0
    %v1034 = vadd.f32 0.0, %v1033
    %1035 = vmatmul.bf16.gmra.mxu0 %v698
    %v1036 = vpop.f32.mrf.mxu0
    %v1037 = vadd.f32 0.0, %v1036
    %v1038 = vpop.f32.mrf.mxu0
    %v1039 = vadd.f32 0.0, %v1038
    %1040 = vmatmul.bf16.gmra.mxu0 %v699
    %v1041 = vpop.f32.mrf.mxu0
    %v1042 = vadd.f32 0.0, %v1041
    %v1043 = vpop.f32.mrf.mxu0
    %v1044 = vadd.f32 0.0, %v1043
    %1045 = vmatmul.bf16.gmra.mxu0 %v700
    %v1046 = vpop.f32.mrf.mxu0
    %v1047 = vadd.f32 0.0, %v1046
    %v1048 = vpop.f32.mrf.mxu0
    %v1049 = vadd.f32 0.0, %v1048
    %1050 = vmatmul.bf16.gmra.mxu0 %v701
    %v1051 = vpop.f32.mrf.mxu0
    %v1052 = vadd.f32 0.0, %v1051
    %v1053 = vpop.f32.mrf.mxu0
    %v1054 = vadd.f32 0.0, %v1053
    %1055 = vmatmul.bf16.gmra.mxu0 %v702
    %v1056 = vpop.f32.mrf.mxu0
    %v1057 = vadd.f32 0.0, %v1056
    %v1058 = vpop.f32.mrf.mxu0
    %v1059 = vadd.f32 0.0, %v1058
    %1060 = vmatmul.bf16.gmra.mxu0 %v703
    %v1061 = vpop.f32.mrf.mxu0
    %v1062 = vadd.f32 0.0, %v1061
    %v1063 = vpop.f32.mrf.mxu0
    %v1064 = vadd.f32 0.0, %v1063
    %1065 = vmatmul.bf16.gmra.mxu0 %v704
    %v1066 = vpop.f32.mrf.mxu0
    %v1067 = vadd.f32 0.0, %v1066
    %v1068 = vpop.f32.mrf.mxu0
    %v1069 = vadd.f32 0.0, %v1068
    %1070 = vmatmul.bf16.gmra.mxu0 %v705
    %v1071 = vpop.f32.mrf.mxu0
    %v1072 = vadd.f32 0.0, %v1071
    %v1073 = vpop.f32.mrf.mxu0
    %v1074 = vadd.f32 0.0, %v1073
    %1075 = vdwg.mxu0
    %v1076 = vpack.c.bf16 %v997, %v997
    %v1077 = vpack.c.bf16 %v999, %v999
    %v1078 = vpack.c.bf16 %v1002, %v1002
    %v1079 = vpack.c.bf16 %v1004, %v1004
    %v1080 = vpack.c.bf16 %v1007, %v1007
    %v1081 = vpack.c.bf16 %v1009, %v1009
    %v1082 = vpack.c.bf16 %v1012, %v1012
    %v1083 = vpack.c.bf16 %v1014, %v1014
    %v1084 = vpack.c.bf16 %v1017, %v1017
    %v1085 = vpack.c.bf16 %v1019, %v1019
    %v1086 = vpack.c.bf16 %v1022, %v1022
    %v1087 = vpack.c.bf16 %v1024, %v1024
    %v1088 = vpack.c.bf16 %v1027, %v1027
    %v1089 = vpack.c.bf16 %v1029, %v1029
    %v1090 = vpack.c.bf16 %v1032, %v1032
    %v1091 = vpack.c.bf16 %v1034, %v1034
    %v1092 = vpack.c.bf16 %v1037, %v1037
    %v1093 = vpack.c.bf16 %v1039, %v1039
    %v1094 = vpack.c.bf16 %v1042, %v1042
    %v1095 = vpack.c.bf16 %v1044, %v1044
    %v1096 = vpack.c.bf16 %v1047, %v1047
    %v1097 = vpack.c.bf16 %v1049, %v1049
    %v1098 = vpack.c.bf16 %v1052, %v1052
    %v1099 = vpack.c.bf16 %v1054, %v1054
    %v1100 = vpack.c.bf16 %v1057, %v1057
    %v1101 = vpack.c.bf16 %v1059, %v1059
    %v1102 = vpack.c.bf16 %v1062, %v1062
    %v1103 = vpack.c.bf16 %v1064, %v1064
    %v1104 = vpack.c.bf16 %v1067, %v1067
    %v1105 = vpack.c.bf16 %v1069, %v1069
    %v1106 = vpack.c.bf16 %v1072, %v1072
    %v1107 = vpack.c.bf16 %v1074, %v1074
    %1108 = vst [vmem:[%s5 + $0x4] sm:$0xf] %v1076
    %1109 = vst [vmem:[%s5 + $0xc] sm:$0xf] %v1077
    %1110 = vst [vmem:[%s5 + $0x14] sm:$0xf] %v1078
    %1111 = vst [vmem:[%s5 + $0x1c] sm:$0xf] %v1079
    %1112 = vst [vmem:[%s5 + $0x24] sm:$0xf] %v1080
    %1113 = vst [vmem:[%s5 + $0x2c] sm:$0xf] %v1081
    %1114 = vst [vmem:[%s5 + $0x34] sm:$0xf] %v1082
    %1115 = vst [vmem:[%s5 + $0x3c] sm:$0xf] %v1083
    %1116 = vst [vmem:[%s5 + $0x44] sm:$0xf] %v1084
    %1117 = vst [vmem:[%s5 + $0x4c] sm:$0xf] %v1085
    %1118 = vst [vmem:[%s5 + $0x54] sm:$0xf] %v1086
    %1119 = vst [vmem:[%s5 + $0x5c] sm:$0xf] %v1087
    %1120 = vst [vmem:[%s5 + $0x64] sm:$0xf] %v1088
    %1121 = vst [vmem:[%s5 + $0x6c] sm:$0xf] %v1089
    %1122 = vst [vmem:[%s5 + $0x74] sm:$0xf] %v1090
    %1123 = vst [vmem:[%s5 + $0x7c] sm:$0xf] %v1091
    %1124 = vst [vmem:[%s5 + $0x84] sm:$0xf] %v1092
    %1125 = vst [vmem:[%s5 + $0x8c] sm:$0xf] %v1093
    %1126 = vst [vmem:[%s5 + $0x94] sm:$0xf] %v1094
    %1127 = vst [vmem:[%s5 + $0x9c] sm:$0xf] %v1095
    %1128 = vst [vmem:[%s5 + $0xa4] sm:$0xf] %v1096
    %1129 = vst [vmem:[%s5 + $0xac] sm:$0xf] %v1097
    %1130 = vst [vmem:[%s5 + $0xb4] sm:$0xf] %v1098
    %1131 = vst [vmem:[%s5 + $0xbc] sm:$0xf] %v1099
    %1132 = vst [vmem:[%s5 + $0xc4] sm:$0xf] %v1100
    %1133 = vst [vmem:[%s5 + $0xcc] sm:$0xf] %v1101
    %1134 = vst [vmem:[%s5 + $0xd4] sm:$0xf] %v1102
    %1135 = vst [vmem:[%s5 + $0xdc] sm:$0xf] %v1103
    %1136 = vst [vmem:[%s5 + $0xe4] sm:$0xf] %v1104
    %1137 = vst [vmem:[%s5 + $0xec] sm:$0xf] %v1105
    %1138 = vst [vmem:[%s5 + $0xf4] sm:$0xf] %v1106
    %1139 = vst [vmem:[%s5 + $0xfc] sm:$0xf] %v1107
  $region29: #{unitary_gcn_forward.3} parent=0 // pred_fallthru
    _
  // Predicated region
  $region30: #{unitary_gcn_forward.3} parent=0 // pred_check
    _
  $region31: #{unitary_gcn_forward.3} parent=0 // pred_check_branch
    %1141 = sbr.rel (0) target = $region33
  $region32: #{unitary_gcn_forward.3} parent=0 // pred_region
    _
  $region33: #{unitary_gcn_forward.3} parent=0 // pred_fallthru
    _
  // Predicated region
  $region34: #{unitary_gcn_forward.3} parent=0 // pred_check
    _
  $region35: #{unitary_gcn_forward.3} parent=0 // pred_check_branch
    %1143 = sbr.rel (0) target = $region37
  $region36: #{unitary_gcn_forward.3} parent=0 // pred_region
    _
  $region37: #{unitary_gcn_forward.3} parent=0 // pred_fallthru
    _

// kernel: unitary_gcn_forward.4
$region0: #{unitary_gcn_forward.4}
  #allocation0 [shape = 'u32[]', space=smem, size = 0x4, offset = 0x4, fixed_abs, tag = 'smem constant byte address 0x4 - core index']
  #allocation1 [shape = 'u32[72,128]{1,0:T(1,128)}', space=vmem, size = 0x9000, scoped, tag = 'internal scratch']
  #allocation2 [shape = 'f32[256,256]{1,0:T(8,128)}', space=vmem, size = 0x40000, scoped, tag = 'scratch operand']
  %s0 = inlined_call_operand.vmem [shape: bf16[256,256], index: 0, kind: input, shape index: {}]
  %s1 = inlined_call_operand.vmem [shape: bf16[256,256], index: 1, kind: input, shape index: {}]
  %s2 = inlined_call_operand.vmem [shape: bf16[128,128], index: 2, kind: input, shape index: {}]
  %s3 = inlined_call_operand.vmem [shape: bf16[128,128], index: 3, kind: input, shape index: {}]
  %s4 = inlined_call_operand.vmem [shape: bf16[128,128], index: 4, kind: input, shape index: {}]
  %s5 = inlined_call_operand.vmem [shape: bf16[256,256], index: 5, kind: output, shape index: {}]
  %s6 = sld [smem:[#allocation0]]
  $region38: #{unitary_gcn_forward.4} parent=0
    _
  %s8 = ssub.s32 1, %s6
  %s9 = scalar_select 0, %s8, %s6
  // Predicated region
  $region2: #{unitary_gcn_forward.4} parent=0 // pred_check
    _
  $region3: #{unitary_gcn_forward.4} parent=0 // pred_check_branch
    %11 = sbr.rel (0) target = $region5
  $region4: #{unitary_gcn_forward.4} parent=0 // pred_region
    _
  $region5: #{unitary_gcn_forward.4} parent=0 // pred_fallthru
    _
  // Predicated region
  $region6: #{unitary_gcn_forward.4} parent=0 // pred_check
    _
  $region7: #{unitary_gcn_forward.4} parent=0 // pred_check_branch
    %13 = sbr.rel (0) target = $region9
  $region8: #{unitary_gcn_forward.4} parent=0 // pred_region
    _
  $region9: #{unitary_gcn_forward.4} parent=0 // pred_fallthru
    _
  // Predicated region
  $region10: #{unitary_gcn_forward.4} parent=0 // pred_check
    _
  $region11: #{unitary_gcn_forward.4} parent=0 // pred_check_branch
    %15 = sbr.rel (0) target = $region13
  $region12: #{unitary_gcn_forward.4} parent=0 // pred_region
    _
  $region13: #{unitary_gcn_forward.4} parent=0 // pred_fallthru
    _
  // Predicated region
  $region14: #{unitary_gcn_forward.4} parent=0 // pred_check
    _
  $region15: #{unitary_gcn_forward.4} parent=0 // pred_check_branch
    %17 = sbr.rel (0) target = $region17
  $region16: #{unitary_gcn_forward.4} parent=0 // pred_region
    _
  $region17: #{unitary_gcn_forward.4} parent=0 // pred_fallthru
    _
  // Predicated region
  $region18: #{unitary_gcn_forward.4} parent=0 // pred_check
    _
  $region19: #{unitary_gcn_forward.4} parent=0 // pred_check_branch
    %19 = sbr.rel (0) target = $region21
  $region20: #{unitary_gcn_forward.4} parent=0 // pred_region
    _
  $region21: #{unitary_gcn_forward.4} parent=0 // pred_fallthru
    _
  %p20 = scmp.eq.s32.totalorder 0, 0
  // Predicated region
  $region22: #{unitary_gcn_forward.4} parent=0 // pred_check
    %p21 = pneg %p20
  $region23: #{unitary_gcn_forward.4} parent=0 // pred_check_branch
    %23 = sbr.rel (%p21) target = $region25
  $region24: #{unitary_gcn_forward.4} parent=0 // pred_region
    %24 = vst [vmem:[#allocation2] sm:$0xff] 0.0
    %25 = vst [vmem:[#allocation2 + $0x8] sm:$0xff] 0.0
    %26 = vst [vmem:[#allocation2 + $0x10] sm:$0xff] 0.0
    %27 = vst [vmem:[#allocation2 + $0x18] sm:$0xff] 0.0
    %28 = vst [vmem:[#allocation2 + $0x20] sm:$0xff] 0.0
    %29 = vst [vmem:[#allocation2 + $0x28] sm:$0xff] 0.0
    %30 = vst [vmem:[#allocation2 + $0x30] sm:$0xff] 0.0
    %31 = vst [vmem:[#allocation2 + $0x38] sm:$0xff] 0.0
    %32 = vst [vmem:[#allocation2 + $0x40] sm:$0xff] 0.0
    %33 = vst [vmem:[#allocation2 + $0x48] sm:$0xff] 0.0
    %34 = vst [vmem:[#allocation2 + $0x50] sm:$0xff] 0.0
    %35 = vst [vmem:[#allocation2 + $0x58] sm:$0xff] 0.0
    %36 = vst [vmem:[#allocation2 + $0x60] sm:$0xff] 0.0
    %37 = vst [vmem:[#allocation2 + $0x68] sm:$0xff] 0.0
    %38 = vst [vmem:[#allocation2 + $0x70] sm:$0xff] 0.0
    %39 = vst [vmem:[#allocation2 + $0x78] sm:$0xff] 0.0
    %40 = vst [vmem:[#allocation2 + $0x80] sm:$0xff] 0.0
    %41 = vst [vmem:[#allocation2 + $0x88] sm:$0xff] 0.0
    %42 = vst [vmem:[#allocation2 + $0x90] sm:$0xff] 0.0
    %43 = vst [vmem:[#allocation2 + $0x98] sm:$0xff] 0.0
    %44 = vst [vmem:[#allocation2 + $0xa0] sm:$0xff] 0.0
    %45 = vst [vmem:[#allocation2 + $0xa8] sm:$0xff] 0.0
    %46 = vst [vmem:[#allocation2 + $0xb0] sm:$0xff] 0.0
    %47 = vst [vmem:[#allocation2 + $0xb8] sm:$0xff] 0.0
    %48 = vst [vmem:[#allocation2 + $0xc0] sm:$0xff] 0.0
    %49 = vst [vmem:[#allocation2 + $0xc8] sm:$0xff] 0.0
    %50 = vst [vmem:[#allocation2 + $0xd0] sm:$0xff] 0.0
    %51 = vst [vmem:[#allocation2 + $0xd8] sm:$0xff] 0.0
    %52 = vst [vmem:[#allocation2 + $0xe0] sm:$0xff] 0.0
    %53 = vst [vmem:[#allocation2 + $0xe8] sm:$0xff] 0.0
    %54 = vst [vmem:[#allocation2 + $0xf0] sm:$0xff] 0.0
    %55 = vst [vmem:[#allocation2 + $0xf8] sm:$0xff] 0.0
    %56 = vst [vmem:[#allocation2 + $0x100] sm:$0xff] 0.0
    %57 = vst [vmem:[#allocation2 + $0x108] sm:$0xff] 0.0
    %58 = vst [vmem:[#allocation2 + $0x110] sm:$0xff] 0.0
    %59 = vst [vmem:[#allocation2 + $0x118] sm:$0xff] 0.0
    %60 = vst [vmem:[#allocation2 + $0x120] sm:$0xff] 0.0
    %61 = vst [vmem:[#allocation2 + $0x128] sm:$0xff] 0.0
    %62 = vst [vmem:[#allocation2 + $0x130] sm:$0xff] 0.0
    %63 = vst [vmem:[#allocation2 + $0x138] sm:$0xff] 0.0
    %64 = vst [vmem:[#allocation2 + $0x140] sm:$0xff] 0.0
    %65 = vst [vmem:[#allocation2 + $0x148] sm:$0xff] 0.0
    %66 = vst [vmem:[#allocation2 + $0x150] sm:$0xff] 0.0
    %67 = vst [vmem:[#allocation2 + $0x158] sm:$0xff] 0.0
    %68 = vst [vmem:[#allocation2 + $0x160] sm:$0xff] 0.0
    %69 = vst [vmem:[#allocation2 + $0x168] sm:$0xff] 0.0
    %70 = vst [vmem:[#allocation2 + $0x170] sm:$0xff] 0.0
    %71 = vst [vmem:[#allocation2 + $0x178] sm:$0xff] 0.0
    %72 = vst [vmem:[#allocation2 + $0x180] sm:$0xff] 0.0
    %73 = vst [vmem:[#allocation2 + $0x188] sm:$0xff] 0.0
    %74 = vst [vmem:[#allocation2 + $0x190] sm:$0xff] 0.0
    %75 = vst [vmem:[#allocation2 + $0x198] sm:$0xff] 0.0
    %76 = vst [vmem:[#allocation2 + $0x1a0] sm:$0xff] 0.0
    %77 = vst [vmem:[#allocation2 + $0x1a8] sm:$0xff] 0.0
    %78 = vst [vmem:[#allocation2 + $0x1b0] sm:$0xff] 0.0
    %79 = vst [vmem:[#allocation2 + $0x1b8] sm:$0xff] 0.0
    %80 = vst [vmem:[#allocation2 + $0x1c0] sm:$0xff] 0.0
    %81 = vst [vmem:[#allocation2 + $0x1c8] sm:$0xff] 0.0
    %82 = vst [vmem:[#allocation2 + $0x1d0] sm:$0xff] 0.0
    %83 = vst [vmem:[#allocation2 + $0x1d8] sm:$0xff] 0.0
    %84 = vst [vmem:[#allocation2 + $0x1e0] sm:$0xff] 0.0
    %85 = vst [vmem:[#allocation2 + $0x1e8] sm:$0xff] 0.0
    %86 = vst [vmem:[#allocation2 + $0x1f0] sm:$0xff] 0.0
    %87 = vst [vmem:[#allocation2 + $0x1f8] sm:$0xff] 0.0
  $region25: #{unitary_gcn_forward.4} parent=0 // pred_fallthru
    _
  %s88 = smul.u32 0, 256
  %s89 = sshra.s32 %s88, 3
  %s90 = sand.u32 %s88, 7
  %s91 = smul.u32 %s89, 2
  %s92 = smul.addr %s91, 4
  %s93 = scalar_lea.vmem %s0, %s92
  %v94 = vld [vmem:[%s93] sm:$0xff]
  %v95 = vld [vmem:[%s93 + $0x8] sm:$0xff]
  %v96 = vld [vmem:[%s93 + $0x10] sm:$0xff]
  %v97 = vld [vmem:[%s93 + $0x18] sm:$0xff]
  %v98 = vld [vmem:[%s93 + $0x20] sm:$0xff]
  %v99 = vld [vmem:[%s93 + $0x28] sm:$0xff]
  %v100 = vld [vmem:[%s93 + $0x30] sm:$0xff]
  %v101 = vld [vmem:[%s93 + $0x38] sm:$0xff]
  %v102 = vld [vmem:[%s93 + $0x40] sm:$0xff]
  %v103 = vld [vmem:[%s93 + $0x48] sm:$0xff]
  %v104 = vld [vmem:[%s93 + $0x50] sm:$0xff]
  %v105 = vld [vmem:[%s93 + $0x58] sm:$0xff]
  %v106 = vld [vmem:[%s93 + $0x60] sm:$0xff]
  %v107 = vld [vmem:[%s93 + $0x68] sm:$0xff]
  %v108 = vld [vmem:[%s93 + $0x70] sm:$0xff]
  %v109 = vld [vmem:[%s93 + $0x78] sm:$0xff]
  %v110 = vld [vmem:[%s93 + $0x80] sm:$0xff]
  %v111 = vld [vmem:[%s93 + $0x88] sm:$0xff]
  %v112 = vld [vmem:[%s93 + $0x90] sm:$0xff]
  %v113 = vld [vmem:[%s93 + $0x98] sm:$0xff]
  %v114 = vld [vmem:[%s93 + $0xa0] sm:$0xff]
  %v115 = vld [vmem:[%s93 + $0xa8] sm:$0xff]
  %v116 = vld [vmem:[%s93 + $0xb0] sm:$0xff]
  %v117 = vld [vmem:[%s93 + $0xb8] sm:$0xff]
  %v118 = vld [vmem:[%s93 + $0xc0] sm:$0xff]
  %v119 = vld [vmem:[%s93 + $0xc8] sm:$0xff]
  %v120 = vld [vmem:[%s93 + $0xd0] sm:$0xff]
  %v121 = vld [vmem:[%s93 + $0xd8] sm:$0xff]
  %v122 = vld [vmem:[%s93 + $0xe0] sm:$0xff]
  %v123 = vld [vmem:[%s93 + $0xe8] sm:$0xff]
  %v124 = vld [vmem:[%s93 + $0xf0] sm:$0xff]
  %v125 = vld [vmem:[%s93 + $0xf8] sm:$0xff]
  %v126 = vld [vmem:[#allocation2] sm:$0xff]
  %v127 = vld [vmem:[#allocation2 + $0x8] sm:$0xff]
  %v128 = vld [vmem:[#allocation2 + $0x10] sm:$0xff]
  %v129 = vld [vmem:[#allocation2 + $0x18] sm:$0xff]
  %v130 = vld [vmem:[#allocation2 + $0x20] sm:$0xff]
  %v131 = vld [vmem:[#allocation2 + $0x28] sm:$0xff]
  %v132 = vld [vmem:[#allocation2 + $0x30] sm:$0xff]
  %v133 = vld [vmem:[#allocation2 + $0x38] sm:$0xff]
  %v134 = vld [vmem:[#allocation2 + $0x40] sm:$0xff]
  %v135 = vld [vmem:[#allocation2 + $0x48] sm:$0xff]
  %v136 = vld [vmem:[#allocation2 + $0x50] sm:$0xff]
  %v137 = vld [vmem:[#allocation2 + $0x58] sm:$0xff]
  %v138 = vld [vmem:[#allocation2 + $0x60] sm:$0xff]
  %v139 = vld [vmem:[#allocation2 + $0x68] sm:$0xff]
  %v140 = vld [vmem:[#allocation2 + $0x70] sm:$0xff]
  %v141 = vld [vmem:[#allocation2 + $0x78] sm:$0xff]
  %v142 = vld [vmem:[#allocation2 + $0x80] sm:$0xff]
  %v143 = vld [vmem:[#allocation2 + $0x88] sm:$0xff]
  %v144 = vld [vmem:[#allocation2 + $0x90] sm:$0xff]
  %v145 = vld [vmem:[#allocation2 + $0x98] sm:$0xff]
  %v146 = vld [vmem:[#allocation2 + $0xa0] sm:$0xff]
  %v147 = vld [vmem:[#allocation2 + $0xa8] sm:$0xff]
  %v148 = vld [vmem:[#allocation2 + $0xb0] sm:$0xff]
  %v149 = vld [vmem:[#allocation2 + $0xb8] sm:$0xff]
  %v150 = vld [vmem:[#allocation2 + $0xc0] sm:$0xff]
  %v151 = vld [vmem:[#allocation2 + $0xc8] sm:$0xff]
  %v152 = vld [vmem:[#allocation2 + $0xd0] sm:$0xff]
  %v153 = vld [vmem:[#allocation2 + $0xd8] sm:$0xff]
  %v154 = vld [vmem:[#allocation2 + $0xe0] sm:$0xff]
  %v155 = vld [vmem:[#allocation2 + $0xe8] sm:$0xff]
  %v156 = vld [vmem:[#allocation2 + $0xf0] sm:$0xff]
  %v157 = vld [vmem:[#allocation2 + $0xf8] sm:$0xff]
  %v158 = vld [vmem:[#allocation2 + $0x100] sm:$0xff]
  %v159 = vld [vmem:[#allocation2 + $0x108] sm:$0xff]
  %v160 = vld [vmem:[#allocation2 + $0x110] sm:$0xff]
  %v161 = vld [vmem:[#allocation2 + $0x118] sm:$0xff]
  %v162 = vld [vmem:[#allocation2 + $0x120] sm:$0xff]
  %v163 = vld [vmem:[#allocation2 + $0x128] sm:$0xff]
  %v164 = vld [vmem:[#allocation2 + $0x130] sm:$0xff]
  %v165 = vld [vmem:[#allocation2 + $0x138] sm:$0xff]
  %v166 = vld [vmem:[#allocation2 + $0x140] sm:$0xff]
  %v167 = vld [vmem:[#allocation2 + $0x148] sm:$0xff]
  %v168 = vld [vmem:[#allocation2 + $0x150] sm:$0xff]
  %v169 = vld [vmem:[#allocation2 + $0x158] sm:$0xff]
  %v170 = vld [vmem:[#allocation2 + $0x160] sm:$0xff]
  %v171 = vld [vmem:[#allocation2 + $0x168] sm:$0xff]
  %v172 = vld [vmem:[#allocation2 + $0x170] sm:$0xff]
  %v173 = vld [vmem:[#allocation2 + $0x178] sm:$0xff]
  %v174 = vld [vmem:[#allocation2 + $0x180] sm:$0xff]
  %v175 = vld [vmem:[#allocation2 + $0x188] sm:$0xff]
  %v176 = vld [vmem:[#allocation2 + $0x190] sm:$0xff]
  %v177 = vld [vmem:[#allocation2 + $0x198] sm:$0xff]
  %v178 = vld [vmem:[#allocation2 + $0x1a0] sm:$0xff]
  %v179 = vld [vmem:[#allocation2 + $0x1a8] sm:$0xff]
  %v180 = vld [vmem:[#allocation2 + $0x1b0] sm:$0xff]
  %v181 = vld [vmem:[#allocation2 + $0x1b8] sm:$0xff]
  %v182 = vld [vmem:[#allocation2 + $0x1c0] sm:$0xff]
  %v183 = vld [vmem:[#allocation2 + $0x1c8] sm:$0xff]
  %v184 = vld [vmem:[#allocation2 + $0x1d0] sm:$0xff]
  %v185 = vld [vmem:[#allocation2 + $0x1d8] sm:$0xff]
  %v186 = vld [vmem:[#allocation2 + $0x1e0] sm:$0xff]
  %v187 = vld [vmem:[#allocation2 + $0x1e8] sm:$0xff]
  %v188 = vld [vmem:[#allocation2 + $0x1f0] sm:$0xff]
  %v189 = vld [vmem:[#allocation2 + $0x1f8] sm:$0xff]
  %v190 = vld [vmem:[%s1] sm:$0xff]
  %v191 = vld [vmem:[%s1 + $0x8] sm:$0xff]
  %v192 = vld [vmem:[%s1 + $0x10] sm:$0xff]
  %v193 = vld [vmem:[%s1 + $0x18] sm:$0xff]
  %v194 = vld [vmem:[%s1 + $0x20] sm:$0xff]
  %v195 = vld [vmem:[%s1 + $0x28] sm:$0xff]
  %v196 = vld [vmem:[%s1 + $0x30] sm:$0xff]
  %v197 = vld [vmem:[%s1 + $0x38] sm:$0xff]
  %v198 = vld [vmem:[%s1 + $0x40] sm:$0xff]
  %v199 = vld [vmem:[%s1 + $0x48] sm:$0xff]
  %v200 = vld [vmem:[%s1 + $0x50] sm:$0xff]
  %v201 = vld [vmem:[%s1 + $0x58] sm:$0xff]
  %v202 = vld [vmem:[%s1 + $0x60] sm:$0xff]
  %v203 = vld [vmem:[%s1 + $0x68] sm:$0xff]
  %v204 = vld [vmem:[%s1 + $0x70] sm:$0xff]
  %v205 = vld [vmem:[%s1 + $0x78] sm:$0xff]
  %v206 = vld [vmem:[%s1 + $0x80] sm:$0xff]
  %v207 = vld [vmem:[%s1 + $0x88] sm:$0xff]
  %v208 = vld [vmem:[%s1 + $0x90] sm:$0xff]
  %v209 = vld [vmem:[%s1 + $0x98] sm:$0xff]
  %v210 = vld [vmem:[%s1 + $0xa0] sm:$0xff]
  %v211 = vld [vmem:[%s1 + $0xa8] sm:$0xff]
  %v212 = vld [vmem:[%s1 + $0xb0] sm:$0xff]
  %v213 = vld [vmem:[%s1 + $0xb8] sm:$0xff]
  %v214 = vld [vmem:[%s1 + $0xc0] sm:$0xff]
  %v215 = vld [vmem:[%s1 + $0xc8] sm:$0xff]
  %v216 = vld [vmem:[%s1 + $0xd0] sm:$0xff]
  %v217 = vld [vmem:[%s1 + $0xd8] sm:$0xff]
  %v218 = vld [vmem:[%s1 + $0xe0] sm:$0xff]
  %v219 = vld [vmem:[%s1 + $0xe8] sm:$0xff]
  %v220 = vld [vmem:[%s1 + $0xf0] sm:$0xff]
  %v221 = vld [vmem:[%s1 + $0xf8] sm:$0xff]
  %v254 = vunpack.c.l.b16 %v190
  %v255 = vunpack.c.h.b16 %v190
  %v256 = vunpack.c.l.b16 %v191
  %v257 = vunpack.c.h.b16 %v191
  %v258 = vunpack.c.l.b16 %v192
  %v259 = vunpack.c.h.b16 %v192
  %v260 = vunpack.c.l.b16 %v193
  %v261 = vunpack.c.h.b16 %v193
  %v262 = vunpack.c.l.b16 %v194
  %v263 = vunpack.c.h.b16 %v194
  %v264 = vunpack.c.l.b16 %v195
  %v265 = vunpack.c.h.b16 %v195
  %v266 = vunpack.c.l.b16 %v196
  %v267 = vunpack.c.h.b16 %v196
  %v268 = vunpack.c.l.b16 %v197
  %v269 = vunpack.c.h.b16 %v197
  %v270 = vunpack.c.l.b16 %v198
  %v271 = vunpack.c.h.b16 %v198
  %v272 = vunpack.c.l.b16 %v199
  %v273 = vunpack.c.h.b16 %v199
  %v274 = vunpack.c.l.b16 %v200
  %v275 = vunpack.c.h.b16 %v200
  %v276 = vunpack.c.l.b16 %v201
  %v277 = vunpack.c.h.b16 %v201
  %v278 = vunpack.c.l.b16 %v202
  %v279 = vunpack.c.h.b16 %v202
  %v280 = vunpack.c.l.b16 %v203
  %v281 = vunpack.c.h.b16 %v203
  %v282 = vunpack.c.l.b16 %v204
  %v283 = vunpack.c.h.b16 %v204
  %v284 = vunpack.c.l.b16 %v205
  %v285 = vunpack.c.h.b16 %v205
  %v286 = vunpack.c.l.b16 %v206
  %v287 = vunpack.c.h.b16 %v206
  %v288 = vunpack.c.l.b16 %v207
  %v289 = vunpack.c.h.b16 %v207
  %v290 = vunpack.c.l.b16 %v208
  %v291 = vunpack.c.h.b16 %v208
  %v292 = vunpack.c.l.b16 %v209
  %v293 = vunpack.c.h.b16 %v209
  %v294 = vunpack.c.l.b16 %v210
  %v295 = vunpack.c.h.b16 %v210
  %v296 = vunpack.c.l.b16 %v211
  %v297 = vunpack.c.h.b16 %v211
  %v298 = vunpack.c.l.b16 %v212
  %v299 = vunpack.c.h.b16 %v212
  %v300 = vunpack.c.l.b16 %v213
  %v301 = vunpack.c.h.b16 %v213
  %v302 = vunpack.c.l.b16 %v214
  %v303 = vunpack.c.h.b16 %v214
  %v304 = vunpack.c.l.b16 %v215
  %v305 = vunpack.c.h.b16 %v215
  %v306 = vunpack.c.l.b16 %v216
  %v307 = vunpack.c.h.b16 %v216
  %v308 = vunpack.c.l.b16 %v217
  %v309 = vunpack.c.h.b16 %v217
  %v310 = vunpack.c.l.b16 %v218
  %v311 = vunpack.c.h.b16 %v218
  %v312 = vunpack.c.l.b16 %v219
  %v313 = vunpack.c.h.b16 %v219
  %v314 = vunpack.c.l.b16 %v220
  %v315 = vunpack.c.h.b16 %v220
  %v316 = vunpack.c.l.b16 %v221
  %v317 = vunpack.c.h.b16 %v221
  %v318 = vpack.c.b16 %v256, %v254
  %v319 = vpack.c.b16 %v257, %v255
  %v320 = vpack.c.b16 %v260, %v258
  %v321 = vpack.c.b16 %v261, %v259
  %v322 = vpack.c.b16 %v264, %v262
  %v323 = vpack.c.b16 %v265, %v263
  %v324 = vpack.c.b16 %v268, %v266
  %v325 = vpack.c.b16 %v269, %v267
  %v326 = vpack.c.b16 %v272, %v270
  %v327 = vpack.c.b16 %v273, %v271
  %v328 = vpack.c.b16 %v276, %v274
  %v329 = vpack.c.b16 %v277, %v275
  %v330 = vpack.c.b16 %v280, %v278
  %v331 = vpack.c.b16 %v281, %v279
  %v332 = vpack.c.b16 %v284, %v282
  %v333 = vpack.c.b16 %v285, %v283
  %v334 = vpack.c.b16 %v288, %v286
  %v335 = vpack.c.b16 %v289, %v287
  %v336 = vpack.c.b16 %v292, %v290
  %v337 = vpack.c.b16 %v293, %v291
  %v338 = vpack.c.b16 %v296, %v294
  %v339 = vpack.c.b16 %v297, %v295
  %v340 = vpack.c.b16 %v300, %v298
  %v341 = vpack.c.b16 %v301, %v299
  %v342 = vpack.c.b16 %v304, %v302
  %v343 = vpack.c.b16 %v305, %v303
  %v344 = vpack.c.b16 %v308, %v306
  %v345 = vpack.c.b16 %v309, %v307
  %v346 = vpack.c.b16 %v312, %v310
  %v347 = vpack.c.b16 %v313, %v311
  %v348 = vpack.c.b16 %v316, %v314
  %v349 = vpack.c.b16 %v317, %v315
  %v414 = vunpack.c.l.b16 %v94
  %v415 = vunpack.c.h.b16 %v94
  %v416 = vunpack.c.l.b16 %v95
  %v417 = vunpack.c.h.b16 %v95
  %v418 = vunpack.c.l.b16 %v96
  %v419 = vunpack.c.h.b16 %v96
  %v420 = vunpack.c.l.b16 %v97
  %v421 = vunpack.c.h.b16 %v97
  %v422 = vunpack.c.l.b16 %v98
  %v423 = vunpack.c.h.b16 %v98
  %v424 = vunpack.c.l.b16 %v99
  %v425 = vunpack.c.h.b16 %v99
  %v426 = vunpack.c.l.b16 %v100
  %v427 = vunpack.c.h.b16 %v100
  %v428 = vunpack.c.l.b16 %v101
  %v429 = vunpack.c.h.b16 %v101
  %v430 = vunpack.c.l.b16 %v102
  %v431 = vunpack.c.h.b16 %v102
  %v432 = vunpack.c.l.b16 %v103
  %v433 = vunpack.c.h.b16 %v103
  %v434 = vunpack.c.l.b16 %v104
  %v435 = vunpack.c.h.b16 %v104
  %v436 = vunpack.c.l.b16 %v105
  %v437 = vunpack.c.h.b16 %v105
  %v438 = vunpack.c.l.b16 %v106
  %v439 = vunpack.c.h.b16 %v106
  %v440 = vunpack.c.l.b16 %v107
  %v441 = vunpack.c.h.b16 %v107
  %v442 = vunpack.c.l.b16 %v108
  %v443 = vunpack.c.h.b16 %v108
  %v444 = vunpack.c.l.b16 %v109
  %v445 = vunpack.c.h.b16 %v109
  %v446 = vunpack.c.l.b16 %v110
  %v447 = vunpack.c.h.b16 %v110
  %v448 = vunpack.c.l.b16 %v111
  %v449 = vunpack.c.h.b16 %v111
  %v450 = vunpack.c.l.b16 %v112
  %v451 = vunpack.c.h.b16 %v112
  %v452 = vunpack.c.l.b16 %v113
  %v453 = vunpack.c.h.b16 %v113
  %v454 = vunpack.c.l.b16 %v114
  %v455 = vunpack.c.h.b16 %v114
  %v456 = vunpack.c.l.b16 %v115
  %v457 = vunpack.c.h.b16 %v115
  %v458 = vunpack.c.l.b16 %v116
  %v459 = vunpack.c.h.b16 %v116
  %v460 = vunpack.c.l.b16 %v117
  %v461 = vunpack.c.h.b16 %v117
  %v462 = vunpack.c.l.b16 %v118
  %v463 = vunpack.c.h.b16 %v118
  %v464 = vunpack.c.l.b16 %v119
  %v465 = vunpack.c.h.b16 %v119
  %v466 = vunpack.c.l.b16 %v120
  %v467 = vunpack.c.h.b16 %v120
  %v468 = vunpack.c.l.b16 %v121
  %v469 = vunpack.c.h.b16 %v121
  %v470 = vunpack.c.l.b16 %v122
  %v471 = vunpack.c.h.b16 %v122
  %v472 = vunpack.c.l.b16 %v123
  %v473 = vunpack.c.h.b16 %v123
  %v474 = vunpack.c.l.b16 %v124
  %v475 = vunpack.c.h.b16 %v124
  %v476 = vunpack.c.l.b16 %v125
  %v477 = vunpack.c.h.b16 %v125
  %v478 = vpack.c.b16 %v416, %v414
  %v479 = vpack.c.b16 %v417, %v415
  %v480 = vpack.c.b16 %v420, %v418
  %v481 = vpack.c.b16 %v421, %v419
  %v482 = vpack.c.b16 %v424, %v422
  %v483 = vpack.c.b16 %v425, %v423
  %v484 = vpack.c.b16 %v428, %v426
  %v485 = vpack.c.b16 %v429, %v427
  %v486 = vpack.c.b16 %v432, %v430
  %v487 = vpack.c.b16 %v433, %v431
  %v488 = vpack.c.b16 %v436, %v434
  %v489 = vpack.c.b16 %v437, %v435
  %v490 = vpack.c.b16 %v440, %v438
  %v491 = vpack.c.b16 %v441, %v439
  %v492 = vpack.c.b16 %v444, %v442
  %v493 = vpack.c.b16 %v445, %v443
  %v494 = vpack.c.b16 %v448, %v446
  %v495 = vpack.c.b16 %v449, %v447
  %v496 = vpack.c.b16 %v452, %v450
  %v497 = vpack.c.b16 %v453, %v451
  %v498 = vpack.c.b16 %v456, %v454
  %v499 = vpack.c.b16 %v457, %v455
  %v500 = vpack.c.b16 %v460, %v458
  %v501 = vpack.c.b16 %v461, %v459
  %v502 = vpack.c.b16 %v464, %v462
  %v503 = vpack.c.b16 %v465, %v463
  %v504 = vpack.c.b16 %v468, %v466
  %v505 = vpack.c.b16 %v469, %v467
  %v506 = vpack.c.b16 %v472, %v470
  %v507 = vpack.c.b16 %v473, %v471
  %v508 = vpack.c.b16 %v476, %v474
  %v509 = vpack.c.b16 %v477, %v475
  %542 = vmatpush.bf16.msra.mxu0 %v492
  %543 = vmatpush.bf16.msra.mxu0 %v490
  %544 = vmatpush.bf16.msra.mxu0 %v488
  %545 = vmatpush.bf16.msra.mxu0 %v486
  %546 = vmatpush.bf16.msra.mxu0 %v484
  %547 = vmatpush.bf16.msra.mxu0 %v482
  %548 = vmatpush.bf16.msra.mxu0 %v480
  %549 = vmatpush.bf16.msra.mxu0 %v478
  %550 = vmatmul.bf16.gmra.mxu0 %v318
  %v551 = vpop.f32.mrf.mxu0
  %v552 = vadd.f32 0.0, %v551
  %v553 = vpop.f32.mrf.mxu0
  %v554 = vadd.f32 0.0, %v553
  %555 = vmatmul.bf16.gmra.mxu0 %v320
  %v556 = vpop.f32.mrf.mxu0
  %v557 = vadd.f32 0.0, %v556
  %v558 = vpop.f32.mrf.mxu0
  %v559 = vadd.f32 0.0, %v558
  %560 = vmatmul.bf16.gmra.mxu0 %v322
  %v561 = vpop.f32.mrf.mxu0
  %v562 = vadd.f32 0.0, %v561
  %v563 = vpop.f32.mrf.mxu0
  %v564 = vadd.f32 0.0, %v563
  %565 = vmatmul.bf16.gmra.mxu0 %v324
  %v566 = vpop.f32.mrf.mxu0
  %v567 = vadd.f32 0.0, %v566
  %v568 = vpop.f32.mrf.mxu0
  %v569 = vadd.f32 0.0, %v568
  %570 = vmatmul.bf16.gmra.mxu0 %v326
  %v571 = vpop.f32.mrf.mxu0
  %v572 = vadd.f32 0.0, %v571
  %v573 = vpop.f32.mrf.mxu0
  %v574 = vadd.f32 0.0, %v573
  %575 = vmatmul.bf16.gmra.mxu0 %v328
  %v576 = vpop.f32.mrf.mxu0
  %v577 = vadd.f32 0.0, %v576
  %v578 = vpop.f32.mrf.mxu0
  %v579 = vadd.f32 0.0, %v578
  %580 = vmatmul.bf16.gmra.mxu0 %v330
  %v581 = vpop.f32.mrf.mxu0
  %v582 = vadd.f32 0.0, %v581
  %v583 = vpop.f32.mrf.mxu0
  %v584 = vadd.f32 0.0, %v583
  %585 = vmatmul.bf16.gmra.mxu0 %v332
  %v586 = vpop.f32.mrf.mxu0
  %v587 = vadd.f32 0.0, %v586
  %v588 = vpop.f32.mrf.mxu0
  %v589 = vadd.f32 0.0, %v588
  %590 = vmatmul.bf16.gmra.mxu0 %v334
  %v591 = vpop.f32.mrf.mxu0
  %v592 = vadd.f32 0.0, %v591
  %v593 = vpop.f32.mrf.mxu0
  %v594 = vadd.f32 0.0, %v593
  %595 = vmatmul.bf16.gmra.mxu0 %v336
  %v596 = vpop.f32.mrf.mxu0
  %v597 = vadd.f32 0.0, %v596
  %v598 = vpop.f32.mrf.mxu0
  %v599 = vadd.f32 0.0, %v598
  %600 = vmatmul.bf16.gmra.mxu0 %v338
  %v601 = vpop.f32.mrf.mxu0
  %v602 = vadd.f32 0.0, %v601
  %v603 = vpop.f32.mrf.mxu0
  %v604 = vadd.f32 0.0, %v603
  %605 = vmatmul.bf16.gmra.mxu0 %v340
  %v606 = vpop.f32.mrf.mxu0
  %v607 = vadd.f32 0.0, %v606
  %v608 = vpop.f32.mrf.mxu0
  %v609 = vadd.f32 0.0, %v608
  %610 = vmatmul.bf16.gmra.mxu0 %v342
  %v611 = vpop.f32.mrf.mxu0
  %v612 = vadd.f32 0.0, %v611
  %v613 = vpop.f32.mrf.mxu0
  %v614 = vadd.f32 0.0, %v613
  %615 = vmatmul.bf16.gmra.mxu0 %v344
  %v616 = vpop.f32.mrf.mxu0
  %v617 = vadd.f32 0.0, %v616
  %v618 = vpop.f32.mrf.mxu0
  %v619 = vadd.f32 0.0, %v618
  %620 = vmatmul.bf16.gmra.mxu0 %v346
  %v621 = vpop.f32.mrf.mxu0
  %v622 = vadd.f32 0.0, %v621
  %v623 = vpop.f32.mrf.mxu0
  %v624 = vadd.f32 0.0, %v623
  %625 = vmatmul.bf16.gmra.mxu0 %v348
  %v626 = vpop.f32.mrf.mxu0
  %v627 = vadd.f32 0.0, %v626
  %v628 = vpop.f32.mrf.mxu0
  %v629 = vadd.f32 0.0, %v628
  %630 = vdwg.mxu0
  %631 = vmatpush.bf16.msra.mxu0 %v508
  %632 = vmatpush.bf16.msra.mxu0 %v506
  %633 = vmatpush.bf16.msra.mxu0 %v504
  %634 = vmatpush.bf16.msra.mxu0 %v502
  %635 = vmatpush.bf16.msra.mxu0 %v500
  %636 = vmatpush.bf16.msra.mxu0 %v498
  %637 = vmatpush.bf16.msra.mxu0 %v496
  %638 = vmatpush.bf16.msra.mxu0 %v494
  %639 = vmatmul.bf16.gmra.mxu0 %v319
  %v640 = vpop.f32.mrf.mxu0
  %v641 = vadd.f32 %v552, %v640
  %v642 = vpop.f32.mrf.mxu0
  %v643 = vadd.f32 %v554, %v642
  %644 = vmatmul.bf16.gmra.mxu0 %v321
  %v645 = vpop.f32.mrf.mxu0
  %v646 = vadd.f32 %v557, %v645
  %v647 = vpop.f32.mrf.mxu0
  %v648 = vadd.f32 %v559, %v647
  %649 = vmatmul.bf16.gmra.mxu0 %v323
  %v650 = vpop.f32.mrf.mxu0
  %v651 = vadd.f32 %v562, %v650
  %v652 = vpop.f32.mrf.mxu0
  %v653 = vadd.f32 %v564, %v652
  %654 = vmatmul.bf16.gmra.mxu0 %v325
  %v655 = vpop.f32.mrf.mxu0
  %v656 = vadd.f32 %v567, %v655
  %v657 = vpop.f32.mrf.mxu0
  %v658 = vadd.f32 %v569, %v657
  %659 = vmatmul.bf16.gmra.mxu0 %v327
  %v660 = vpop.f32.mrf.mxu0
  %v661 = vadd.f32 %v572, %v660
  %v662 = vpop.f32.mrf.mxu0
  %v663 = vadd.f32 %v574, %v662
  %664 = vmatmul.bf16.gmra.mxu0 %v329
  %v665 = vpop.f32.mrf.mxu0
  %v666 = vadd.f32 %v577, %v665
  %v667 = vpop.f32.mrf.mxu0
  %v668 = vadd.f32 %v579, %v667
  %669 = vmatmul.bf16.gmra.mxu0 %v331
  %v670 = vpop.f32.mrf.mxu0
  %v671 = vadd.f32 %v582, %v670
  %v672 = vpop.f32.mrf.mxu0
  %v673 = vadd.f32 %v584, %v672
  %674 = vmatmul.bf16.gmra.mxu0 %v333
  %v675 = vpop.f32.mrf.mxu0
  %v676 = vadd.f32 %v587, %v675
  %v677 = vpop.f32.mrf.mxu0
  %v678 = vadd.f32 %v589, %v677
  %679 = vmatmul.bf16.gmra.mxu0 %v335
  %v680 = vpop.f32.mrf.mxu0
  %v681 = vadd.f32 %v592, %v680
  %v682 = vpop.f32.mrf.mxu0
  %v683 = vadd.f32 %v594, %v682
  %684 = vmatmul.bf16.gmra.mxu0 %v337
  %v685 = vpop.f32.mrf.mxu0
  %v686 = vadd.f32 %v597, %v685
  %v687 = vpop.f32.mrf.mxu0
  %v688 = vadd.f32 %v599, %v687
  %689 = vmatmul.bf16.gmra.mxu0 %v339
  %v690 = vpop.f32.mrf.mxu0
  %v691 = vadd.f32 %v602, %v690
  %v692 = vpop.f32.mrf.mxu0
  %v693 = vadd.f32 %v604, %v692
  %694 = vmatmul.bf16.gmra.mxu0 %v341
  %v695 = vpop.f32.mrf.mxu0
  %v696 = vadd.f32 %v607, %v695
  %v697 = vpop.f32.mrf.mxu0
  %v698 = vadd.f32 %v609, %v697
  %699 = vmatmul.bf16.gmra.mxu0 %v343
  %v700 = vpop.f32.mrf.mxu0
  %v701 = vadd.f32 %v612, %v700
  %v702 = vpop.f32.mrf.mxu0
  %v703 = vadd.f32 %v614, %v702
  %704 = vmatmul.bf16.gmra.mxu0 %v345
  %v705 = vpop.f32.mrf.mxu0
  %v706 = vadd.f32 %v617, %v705
  %v707 = vpop.f32.mrf.mxu0
  %v708 = vadd.f32 %v619, %v707
  %709 = vmatmul.bf16.gmra.mxu0 %v347
  %v710 = vpop.f32.mrf.mxu0
  %v711 = vadd.f32 %v622, %v710
  %v712 = vpop.f32.mrf.mxu0
  %v713 = vadd.f32 %v624, %v712
  %714 = vmatmul.bf16.gmra.mxu0 %v349
  %v715 = vpop.f32.mrf.mxu0
  %v716 = vadd.f32 %v627, %v715
  %v717 = vpop.f32.mrf.mxu0
  %v718 = vadd.f32 %v629, %v717
  %719 = vdwg.mxu0
  %720 = vmatpush.bf16.msra.mxu0 %v493
  %721 = vmatpush.bf16.msra.mxu0 %v491
  %722 = vmatpush.bf16.msra.mxu0 %v489
  %723 = vmatpush.bf16.msra.mxu0 %v487
  %724 = vmatpush.bf16.msra.mxu0 %v485
  %725 = vmatpush.bf16.msra.mxu0 %v483
  %726 = vmatpush.bf16.msra.mxu0 %v481
  %727 = vmatpush.bf16.msra.mxu0 %v479
  %728 = vmatmul.bf16.gmra.mxu0 %v318
  %v729 = vpop.f32.mrf.mxu0
  %v730 = vadd.f32 0.0, %v729
  %v731 = vpop.f32.mrf.mxu0
  %v732 = vadd.f32 0.0, %v731
  %733 = vmatmul.bf16.gmra.mxu0 %v320
  %v734 = vpop.f32.mrf.mxu0
  %v735 = vadd.f32 0.0, %v734
  %v736 = vpop.f32.mrf.mxu0
  %v737 = vadd.f32 0.0, %v736
  %738 = vmatmul.bf16.gmra.mxu0 %v322
  %v739 = vpop.f32.mrf.mxu0
  %v740 = vadd.f32 0.0, %v739
  %v741 = vpop.f32.mrf.mxu0
  %v742 = vadd.f32 0.0, %v741
  %743 = vmatmul.bf16.gmra.mxu0 %v324
  %v744 = vpop.f32.mrf.mxu0
  %v745 = vadd.f32 0.0, %v744
  %v746 = vpop.f32.mrf.mxu0
  %v747 = vadd.f32 0.0, %v746
  %748 = vmatmul.bf16.gmra.mxu0 %v326
  %v749 = vpop.f32.mrf.mxu0
  %v750 = vadd.f32 0.0, %v749
  %v751 = vpop.f32.mrf.mxu0
  %v752 = vadd.f32 0.0, %v751
  %753 = vmatmul.bf16.gmra.mxu0 %v328
  %v754 = vpop.f32.mrf.mxu0
  %v755 = vadd.f32 0.0, %v754
  %v756 = vpop.f32.mrf.mxu0
  %v757 = vadd.f32 0.0, %v756
  %758 = vmatmul.bf16.gmra.mxu0 %v330
  %v759 = vpop.f32.mrf.mxu0
  %v760 = vadd.f32 0.0, %v759
  %v761 = vpop.f32.mrf.mxu0
  %v762 = vadd.f32 0.0, %v761
  %763 = vmatmul.bf16.gmra.mxu0 %v332
  %v764 = vpop.f32.mrf.mxu0
  %v765 = vadd.f32 0.0, %v764
  %v766 = vpop.f32.mrf.mxu0
  %v767 = vadd.f32 0.0, %v766
  %768 = vmatmul.bf16.gmra.mxu0 %v334
  %v769 = vpop.f32.mrf.mxu0
  %v770 = vadd.f32 0.0, %v769
  %v771 = vpop.f32.mrf.mxu0
  %v772 = vadd.f32 0.0, %v771
  %773 = vmatmul.bf16.gmra.mxu0 %v336
  %v774 = vpop.f32.mrf.mxu0
  %v775 = vadd.f32 0.0, %v774
  %v776 = vpop.f32.mrf.mxu0
  %v777 = vadd.f32 0.0, %v776
  %778 = vmatmul.bf16.gmra.mxu0 %v338
  %v779 = vpop.f32.mrf.mxu0
  %v780 = vadd.f32 0.0, %v779
  %v781 = vpop.f32.mrf.mxu0
  %v782 = vadd.f32 0.0, %v781
  %783 = vmatmul.bf16.gmra.mxu0 %v340
  %v784 = vpop.f32.mrf.mxu0
  %v785 = vadd.f32 0.0, %v784
  %v786 = vpop.f32.mrf.mxu0
  %v787 = vadd.f32 0.0, %v786
  %788 = vmatmul.bf16.gmra.mxu0 %v342
  %v789 = vpop.f32.mrf.mxu0
  %v790 = vadd.f32 0.0, %v789
  %v791 = vpop.f32.mrf.mxu0
  %v792 = vadd.f32 0.0, %v791
  %793 = vmatmul.bf16.gmra.mxu0 %v344
  %v794 = vpop.f32.mrf.mxu0
  %v795 = vadd.f32 0.0, %v794
  %v796 = vpop.f32.mrf.mxu0
  %v797 = vadd.f32 0.0, %v796
  %798 = vmatmul.bf16.gmra.mxu0 %v346
  %v799 = vpop.f32.mrf.mxu0
  %v800 = vadd.f32 0.0, %v799
  %v801 = vpop.f32.mrf.mxu0
  %v802 = vadd.f32 0.0, %v801
  %803 = vmatmul.bf16.gmra.mxu0 %v348
  %v804 = vpop.f32.mrf.mxu0
  %v805 = vadd.f32 0.0, %v804
  %v806 = vpop.f32.mrf.mxu0
  %v807 = vadd.f32 0.0, %v806
  %808 = vdwg.mxu0
  %809 = vmatpush.bf16.msra.mxu0 %v509
  %810 = vmatpush.bf16.msra.mxu0 %v507
  %811 = vmatpush.bf16.msra.mxu0 %v505
  %812 = vmatpush.bf16.msra.mxu0 %v503
  %813 = vmatpush.bf16.msra.mxu0 %v501
  %814 = vmatpush.bf16.msra.mxu0 %v499
  %815 = vmatpush.bf16.msra.mxu0 %v497
  %816 = vmatpush.bf16.msra.mxu0 %v495
  %817 = vmatmul.bf16.gmra.mxu0 %v319
  %v818 = vpop.f32.mrf.mxu0
  %v819 = vadd.f32 %v730, %v818
  %v820 = vpop.f32.mrf.mxu0
  %v821 = vadd.f32 %v732, %v820
  %822 = vmatmul.bf16.gmra.mxu0 %v321
  %v823 = vpop.f32.mrf.mxu0
  %v824 = vadd.f32 %v735, %v823
  %v825 = vpop.f32.mrf.mxu0
  %v826 = vadd.f32 %v737, %v825
  %827 = vmatmul.bf16.gmra.mxu0 %v323
  %v828 = vpop.f32.mrf.mxu0
  %v829 = vadd.f32 %v740, %v828
  %v830 = vpop.f32.mrf.mxu0
  %v831 = vadd.f32 %v742, %v830
  %832 = vmatmul.bf16.gmra.mxu0 %v325
  %v833 = vpop.f32.mrf.mxu0
  %v834 = vadd.f32 %v745, %v833
  %v835 = vpop.f32.mrf.mxu0
  %v836 = vadd.f32 %v747, %v835
  %837 = vmatmul.bf16.gmra.mxu0 %v327
  %v838 = vpop.f32.mrf.mxu0
  %v839 = vadd.f32 %v750, %v838
  %v840 = vpop.f32.mrf.mxu0
  %v841 = vadd.f32 %v752, %v840
  %842 = vmatmul.bf16.gmra.mxu0 %v329
  %v843 = vpop.f32.mrf.mxu0
  %v844 = vadd.f32 %v755, %v843
  %v845 = vpop.f32.mrf.mxu0
  %v846 = vadd.f32 %v757, %v845
  %847 = vmatmul.bf16.gmra.mxu0 %v331
  %v848 = vpop.f32.mrf.mxu0
  %v849 = vadd.f32 %v760, %v848
  %v850 = vpop.f32.mrf.mxu0
  %v851 = vadd.f32 %v762, %v850
  %852 = vmatmul.bf16.gmra.mxu0 %v333
  %v853 = vpop.f32.mrf.mxu0
  %v854 = vadd.f32 %v765, %v853
  %v855 = vpop.f32.mrf.mxu0
  %v856 = vadd.f32 %v767, %v855
  %857 = vmatmul.bf16.gmra.mxu0 %v335
  %v858 = vpop.f32.mrf.mxu0
  %v859 = vadd.f32 %v770, %v858
  %v860 = vpop.f32.mrf.mxu0
  %v861 = vadd.f32 %v772, %v860
  %862 = vmatmul.bf16.gmra.mxu0 %v337
  %v863 = vpop.f32.mrf.mxu0
  %v864 = vadd.f32 %v775, %v863
  %v865 = vpop.f32.mrf.mxu0
  %v866 = vadd.f32 %v777, %v865
  %867 = vmatmul.bf16.gmra.mxu0 %v339
  %v868 = vpop.f32.mrf.mxu0
  %v869 = vadd.f32 %v780, %v868
  %v870 = vpop.f32.mrf.mxu0
  %v871 = vadd.f32 %v782, %v870
  %872 = vmatmul.bf16.gmra.mxu0 %v341
  %v873 = vpop.f32.mrf.mxu0
  %v874 = vadd.f32 %v785, %v873
  %v875 = vpop.f32.mrf.mxu0
  %v876 = vadd.f32 %v787, %v875
  %877 = vmatmul.bf16.gmra.mxu0 %v343
  %v878 = vpop.f32.mrf.mxu0
  %v879 = vadd.f32 %v790, %v878
  %v880 = vpop.f32.mrf.mxu0
  %v881 = vadd.f32 %v792, %v880
  %882 = vmatmul.bf16.gmra.mxu0 %v345
  %v883 = vpop.f32.mrf.mxu0
  %v884 = vadd.f32 %v795, %v883
  %v885 = vpop.f32.mrf.mxu0
  %v886 = vadd.f32 %v797, %v885
  %887 = vmatmul.bf16.gmra.mxu0 %v347
  %v888 = vpop.f32.mrf.mxu0
  %v889 = vadd.f32 %v800, %v888
  %v890 = vpop.f32.mrf.mxu0
  %v891 = vadd.f32 %v802, %v890
  %892 = vmatmul.bf16.gmra.mxu0 %v349
  %v893 = vpop.f32.mrf.mxu0
  %v894 = vadd.f32 %v805, %v893
  %v895 = vpop.f32.mrf.mxu0
  %v896 = vadd.f32 %v807, %v895
  %897 = vdwg.mxu0
  %v898 = vadd.f32 %v126, %v641
  %v899 = vadd.f32 %v127, %v819
  %v900 = vadd.f32 %v128, %v643
  %v901 = vadd.f32 %v129, %v821
  %v902 = vadd.f32 %v130, %v646
  %v903 = vadd.f32 %v131, %v824
  %v904 = vadd.f32 %v132, %v648
  %v905 = vadd.f32 %v133, %v826
  %v906 = vadd.f32 %v134, %v651
  %v907 = vadd.f32 %v135, %v829
  %v908 = vadd.f32 %v136, %v653
  %v909 = vadd.f32 %v137, %v831
  %v910 = vadd.f32 %v138, %v656
  %v911 = vadd.f32 %v139, %v834
  %v912 = vadd.f32 %v140, %v658
  %v913 = vadd.f32 %v141, %v836
  %v914 = vadd.f32 %v142, %v661
  %v915 = vadd.f32 %v143, %v839
  %v916 = vadd.f32 %v144, %v663
  %v917 = vadd.f32 %v145, %v841
  %v918 = vadd.f32 %v146, %v666
  %v919 = vadd.f32 %v147, %v844
  %v920 = vadd.f32 %v148, %v668
  %v921 = vadd.f32 %v149, %v846
  %v922 = vadd.f32 %v150, %v671
  %v923 = vadd.f32 %v151, %v849
  %v924 = vadd.f32 %v152, %v673
  %v925 = vadd.f32 %v153, %v851
  %v926 = vadd.f32 %v154, %v676
  %v927 = vadd.f32 %v155, %v854
  %v928 = vadd.f32 %v156, %v678
  %v929 = vadd.f32 %v157, %v856
  %v930 = vadd.f32 %v158, %v681
  %v931 = vadd.f32 %v159, %v859
  %v932 = vadd.f32 %v160, %v683
  %v933 = vadd.f32 %v161, %v861
  %v934 = vadd.f32 %v162, %v686
  %v935 = vadd.f32 %v163, %v864
  %v936 = vadd.f32 %v164, %v688
  %v937 = vadd.f32 %v165, %v866
  %v938 = vadd.f32 %v166, %v691
  %v939 = vadd.f32 %v167, %v869
  %v940 = vadd.f32 %v168, %v693
  %v941 = vadd.f32 %v169, %v871
  %v942 = vadd.f32 %v170, %v696
  %v943 = vadd.f32 %v171, %v874
  %v944 = vadd.f32 %v172, %v698
  %v945 = vadd.f32 %v173, %v876
  %v946 = vadd.f32 %v174, %v701
  %v947 = vadd.f32 %v175, %v879
  %v948 = vadd.f32 %v176, %v703
  %v949 = vadd.f32 %v177, %v881
  %v950 = vadd.f32 %v178, %v706
  %v951 = vadd.f32 %v179, %v884
  %v952 = vadd.f32 %v180, %v708
  %v953 = vadd.f32 %v181, %v886
  %v954 = vadd.f32 %v182, %v711
  %v955 = vadd.f32 %v183, %v889
  %v956 = vadd.f32 %v184, %v713
  %v957 = vadd.f32 %v185, %v891
  %v958 = vadd.f32 %v186, %v716
  %v959 = vadd.f32 %v187, %v894
  %v960 = vadd.f32 %v188, %v718
  %v961 = vadd.f32 %v189, %v896
  %962 = vst [vmem:[#allocation2] sm:$0xff] %v898
  %963 = vst [vmem:[#allocation2 + $0x8] sm:$0xff] %v899
  %964 = vst [vmem:[#allocation2 + $0x10] sm:$0xff] %v900
  %965 = vst [vmem:[#allocation2 + $0x18] sm:$0xff] %v901
  %966 = vst [vmem:[#allocation2 + $0x20] sm:$0xff] %v902
  %967 = vst [vmem:[#allocation2 + $0x28] sm:$0xff] %v903
  %968 = vst [vmem:[#allocation2 + $0x30] sm:$0xff] %v904
  %969 = vst [vmem:[#allocation2 + $0x38] sm:$0xff] %v905
  %970 = vst [vmem:[#allocation2 + $0x40] sm:$0xff] %v906
  %971 = vst [vmem:[#allocation2 + $0x48] sm:$0xff] %v907
  %972 = vst [vmem:[#allocation2 + $0x50] sm:$0xff] %v908
  %973 = vst [vmem:[#allocation2 + $0x58] sm:$0xff] %v909
  %974 = vst [vmem:[#allocation2 + $0x60] sm:$0xff] %v910
  %975 = vst [vmem:[#allocation2 + $0x68] sm:$0xff] %v911
  %976 = vst [vmem:[#allocation2 + $0x70] sm:$0xff] %v912
  %977 = vst [vmem:[#allocation2 + $0x78] sm:$0xff] %v913
  %978 = vst [vmem:[#allocation2 + $0x80] sm:$0xff] %v914
  %979 = vst [vmem:[#allocation2 + $0x88] sm:$0xff] %v915
  %980 = vst [vmem:[#allocation2 + $0x90] sm:$0xff] %v916
  %981 = vst [vmem:[#allocation2 + $0x98] sm:$0xff] %v917
  %982 = vst [vmem:[#allocation2 + $0xa0] sm:$0xff] %v918
  %983 = vst [vmem:[#allocation2 + $0xa8] sm:$0xff] %v919
  %984 = vst [vmem:[#allocation2 + $0xb0] sm:$0xff] %v920
  %985 = vst [vmem:[#allocation2 + $0xb8] sm:$0xff] %v921
  %986 = vst [vmem:[#allocation2 + $0xc0] sm:$0xff] %v922
  %987 = vst [vmem:[#allocation2 + $0xc8] sm:$0xff] %v923
  %988 = vst [vmem:[#allocation2 + $0xd0] sm:$0xff] %v924
  %989 = vst [vmem:[#allocation2 + $0xd8] sm:$0xff] %v925
  %990 = vst [vmem:[#allocation2 + $0xe0] sm:$0xff] %v926
  %991 = vst [vmem:[#allocation2 + $0xe8] sm:$0xff] %v927
  %992 = vst [vmem:[#allocation2 + $0xf0] sm:$0xff] %v928
  %993 = vst [vmem:[#allocation2 + $0xf8] sm:$0xff] %v929
  %994 = vst [vmem:[#allocation2 + $0x100] sm:$0xff] %v930
  %995 = vst [vmem:[#allocation2 + $0x108] sm:$0xff] %v931
  %996 = vst [vmem:[#allocation2 + $0x110] sm:$0xff] %v932
  %997 = vst [vmem:[#allocation2 + $0x118] sm:$0xff] %v933
  %998 = vst [vmem:[#allocation2 + $0x120] sm:$0xff] %v934
  %999 = vst [vmem:[#allocation2 + $0x128] sm:$0xff] %v935
  %1000 = vst [vmem:[#allocation2 + $0x130] sm:$0xff] %v936
  %1001 = vst [vmem:[#allocation2 + $0x138] sm:$0xff] %v937
  %1002 = vst [vmem:[#allocation2 + $0x140] sm:$0xff] %v938
  %1003 = vst [vmem:[#allocation2 + $0x148] sm:$0xff] %v939
  %1004 = vst [vmem:[#allocation2 + $0x150] sm:$0xff] %v940
  %1005 = vst [vmem:[#allocation2 + $0x158] sm:$0xff] %v941
  %1006 = vst [vmem:[#allocation2 + $0x160] sm:$0xff] %v942
  %1007 = vst [vmem:[#allocation2 + $0x168] sm:$0xff] %v943
  %1008 = vst [vmem:[#allocation2 + $0x170] sm:$0xff] %v944
  %1009 = vst [vmem:[#allocation2 + $0x178] sm:$0xff] %v945
  %1010 = vst [vmem:[#allocation2 + $0x180] sm:$0xff] %v946
  %1011 = vst [vmem:[#allocation2 + $0x188] sm:$0xff] %v947
  %1012 = vst [vmem:[#allocation2 + $0x190] sm:$0xff] %v948
  %1013 = vst [vmem:[#allocation2 + $0x198] sm:$0xff] %v949
  %1014 = vst [vmem:[#allocation2 + $0x1a0] sm:$0xff] %v950
  %1015 = vst [vmem:[#allocation2 + $0x1a8] sm:$0xff] %v951
  %1016 = vst [vmem:[#allocation2 + $0x1b0] sm:$0xff] %v952
  %1017 = vst [vmem:[#allocation2 + $0x1b8] sm:$0xff] %v953
  %1018 = vst [vmem:[#allocation2 + $0x1c0] sm:$0xff] %v954
  %1019 = vst [vmem:[#allocation2 + $0x1c8] sm:$0xff] %v955
  %1020 = vst [vmem:[#allocation2 + $0x1d0] sm:$0xff] %v956
  %1021 = vst [vmem:[#allocation2 + $0x1d8] sm:$0xff] %v957
  %1022 = vst [vmem:[#allocation2 + $0x1e0] sm:$0xff] %v958
  %1023 = vst [vmem:[#allocation2 + $0x1e8] sm:$0xff] %v959
  %1024 = vst [vmem:[#allocation2 + $0x1f0] sm:$0xff] %v960
  %1025 = vst [vmem:[#allocation2 + $0x1f8] sm:$0xff] %v961
  // Predicated region
  $region26: #{unitary_gcn_forward.4} parent=0 // pred_check
    %p1026 = pneg %p20
  $region27: #{unitary_gcn_forward.4} parent=0 // pred_check_branch
    %1028 = sbr.rel (%p1026) target = $region29
  $region28: #{unitary_gcn_forward.4} parent=0 // pred_region
    %v1029 = vld [vmem:[#allocation2] sm:$0xff]
    %v1030 = vld [vmem:[#allocation2 + $0x10] sm:$0xff]
    %v1031 = vld [vmem:[#allocation2 + $0x20] sm:$0xff]
    %v1032 = vld [vmem:[#allocation2 + $0x30] sm:$0xff]
    %v1033 = vld [vmem:[#allocation2 + $0x40] sm:$0xff]
    %v1034 = vld [vmem:[#allocation2 + $0x50] sm:$0xff]
    %v1035 = vld [vmem:[#allocation2 + $0x60] sm:$0xff]
    %v1036 = vld [vmem:[#allocation2 + $0x70] sm:$0xff]
    %v1037 = vld [vmem:[#allocation2 + $0x80] sm:$0xff]
    %v1038 = vld [vmem:[#allocation2 + $0x90] sm:$0xff]
    %v1039 = vld [vmem:[#allocation2 + $0xa0] sm:$0xff]
    %v1040 = vld [vmem:[#allocation2 + $0xb0] sm:$0xff]
    %v1041 = vld [vmem:[#allocation2 + $0xc0] sm:$0xff]
    %v1042 = vld [vmem:[#allocation2 + $0xd0] sm:$0xff]
    %v1043 = vld [vmem:[#allocation2 + $0xe0] sm:$0xff]
    %v1044 = vld [vmem:[#allocation2 + $0xf0] sm:$0xff]
    %v1045 = vld [vmem:[#allocation2 + $0x100] sm:$0xff]
    %v1046 = vld [vmem:[#allocation2 + $0x110] sm:$0xff]
    %v1047 = vld [vmem:[#allocation2 + $0x120] sm:$0xff]
    %v1048 = vld [vmem:[#allocation2 + $0x130] sm:$0xff]
    %v1049 = vld [vmem:[#allocation2 + $0x140] sm:$0xff]
    %v1050 = vld [vmem:[#allocation2 + $0x150] sm:$0xff]
    %v1051 = vld [vmem:[#allocation2 + $0x160] sm:$0xff]
    %v1052 = vld [vmem:[#allocation2 + $0x170] sm:$0xff]
    %v1053 = vld [vmem:[#allocation2 + $0x180] sm:$0xff]
    %v1054 = vld [vmem:[#allocation2 + $0x190] sm:$0xff]
    %v1055 = vld [vmem:[#allocation2 + $0x1a0] sm:$0xff]
    %v1056 = vld [vmem:[#allocation2 + $0x1b0] sm:$0xff]
    %v1057 = vld [vmem:[#allocation2 + $0x1c0] sm:$0xff]
    %v1058 = vld [vmem:[#allocation2 + $0x1d0] sm:$0xff]
    %v1059 = vld [vmem:[#allocation2 + $0x1e0] sm:$0xff]
    %v1060 = vld [vmem:[#allocation2 + $0x1f0] sm:$0xff]
    %v1061 = vld [vmem:[#allocation2 + $0x8] sm:$0xff]
    %v1062 = vld [vmem:[#allocation2 + $0x18] sm:$0xff]
    %v1063 = vld [vmem:[#allocation2 + $0x28] sm:$0xff]
    %v1064 = vld [vmem:[#allocation2 + $0x38] sm:$0xff]
    %v1065 = vld [vmem:[#allocation2 + $0x48] sm:$0xff]
    %v1066 = vld [vmem:[#allocation2 + $0x58] sm:$0xff]
    %v1067 = vld [vmem:[#allocation2 + $0x68] sm:$0xff]
    %v1068 = vld [vmem:[#allocation2 + $0x78] sm:$0xff]
    %v1069 = vld [vmem:[#allocation2 + $0x88] sm:$0xff]
    %v1070 = vld [vmem:[#allocation2 + $0x98] sm:$0xff]
    %v1071 = vld [vmem:[#allocation2 + $0xa8] sm:$0xff]
    %v1072 = vld [vmem:[#allocation2 + $0xb8] sm:$0xff]
    %v1073 = vld [vmem:[#allocation2 + $0xc8] sm:$0xff]
    %v1074 = vld [vmem:[#allocation2 + $0xd8] sm:$0xff]
    %v1075 = vld [vmem:[#allocation2 + $0xe8] sm:$0xff]
    %v1076 = vld [vmem:[#allocation2 + $0xf8] sm:$0xff]
    %v1077 = vld [vmem:[#allocation2 + $0x108] sm:$0xff]
    %v1078 = vld [vmem:[#allocation2 + $0x118] sm:$0xff]
    %v1079 = vld [vmem:[#allocation2 + $0x128] sm:$0xff]
    %v1080 = vld [vmem:[#allocation2 + $0x138] sm:$0xff]
    %v1081 = vld [vmem:[#allocation2 + $0x148] sm:$0xff]
    %v1082 = vld [vmem:[#allocation2 + $0x158] sm:$0xff]
    %v1083 = vld [vmem:[#allocation2 + $0x168] sm:$0xff]
    %v1084 = vld [vmem:[#allocation2 + $0x178] sm:$0xff]
    %v1085 = vld [vmem:[#allocation2 + $0x188] sm:$0xff]
    %v1086 = vld [vmem:[#allocation2 + $0x198] sm:$0xff]
    %v1087 = vld [vmem:[#allocation2 + $0x1a8] sm:$0xff]
    %v1088 = vld [vmem:[#allocation2 + $0x1b8] sm:$0xff]
    %v1089 = vld [vmem:[#allocation2 + $0x1c8] sm:$0xff]
    %v1090 = vld [vmem:[#allocation2 + $0x1d8] sm:$0xff]
    %v1091 = vld [vmem:[#allocation2 + $0x1e8] sm:$0xff]
    %v1092 = vld [vmem:[#allocation2 + $0x1f8] sm:$0xff]
    %v1093 = vpack.c.bf16 %v1030, %v1029
    %v1094 = vpack.c.bf16 %v1032, %v1031
    %v1095 = vpack.c.bf16 %v1034, %v1033
    %v1096 = vpack.c.bf16 %v1036, %v1035
    %v1097 = vpack.c.bf16 %v1038, %v1037
    %v1098 = vpack.c.bf16 %v1040, %v1039
    %v1099 = vpack.c.bf16 %v1042, %v1041
    %v1100 = vpack.c.bf16 %v1044, %v1043
    %v1101 = vpack.c.bf16 %v1046, %v1045
    %v1102 = vpack.c.bf16 %v1048, %v1047
    %v1103 = vpack.c.bf16 %v1050, %v1049
    %v1104 = vpack.c.bf16 %v1052, %v1051
    %v1105 = vpack.c.bf16 %v1054, %v1053
    %v1106 = vpack.c.bf16 %v1056, %v1055
    %v1107 = vpack.c.bf16 %v1058, %v1057
    %v1108 = vpack.c.bf16 %v1060, %v1059
    %v1109 = vld [vmem:[%s2] sm:$0xf]
    %v1110 = vld [vmem:[%s2 + $0x4] sm:$0xf]
    %v1111 = vld [vmem:[%s2 + $0x8] sm:$0xf]
    %v1112 = vld [vmem:[%s2 + $0xc] sm:$0xf]
    %v1113 = vld [vmem:[%s2 + $0x10] sm:$0xf]
    %v1114 = vld [vmem:[%s2 + $0x14] sm:$0xf]
    %v1115 = vld [vmem:[%s2 + $0x18] sm:$0xf]
    %v1116 = vld [vmem:[%s2 + $0x1c] sm:$0xf]
    %v1117 = vld [vmem:[%s2 + $0x20] sm:$0xf]
    %v1118 = vld [vmem:[%s2 + $0x24] sm:$0xf]
    %v1119 = vld [vmem:[%s2 + $0x28] sm:$0xf]
    %v1120 = vld [vmem:[%s2 + $0x2c] sm:$0xf]
    %v1121 = vld [vmem:[%s2 + $0x30] sm:$0xf]
    %v1122 = vld [vmem:[%s2 + $0x34] sm:$0xf]
    %v1123 = vld [vmem:[%s2 + $0x38] sm:$0xf]
    %v1124 = vld [vmem:[%s2 + $0x3c] sm:$0xf]
    %v1141 = vunpack.c.l.b16 %v1109
    %v1142 = vunpack.c.l.b16 %v1110
    %v1143 = vunpack.c.l.b16 %v1111
    %v1144 = vunpack.c.l.b16 %v1112
    %v1145 = vunpack.c.l.b16 %v1113
    %v1146 = vunpack.c.l.b16 %v1114
    %v1147 = vunpack.c.l.b16 %v1115
    %v1148 = vunpack.c.l.b16 %v1116
    %v1149 = vunpack.c.l.b16 %v1117
    %v1150 = vunpack.c.l.b16 %v1118
    %v1151 = vunpack.c.l.b16 %v1119
    %v1152 = vunpack.c.l.b16 %v1120
    %v1153 = vunpack.c.l.b16 %v1121
    %v1154 = vunpack.c.l.b16 %v1122
    %v1155 = vunpack.c.l.b16 %v1123
    %v1156 = vunpack.c.l.b16 %v1124
    %v1157 = vpack.c.b16 %v1142, %v1141
    %v1158 = vpack.c.b16 %v1144, %v1143
    %v1159 = vpack.c.b16 %v1146, %v1145
    %v1160 = vpack.c.b16 %v1148, %v1147
    %v1161 = vpack.c.b16 %v1150, %v1149
    %v1162 = vpack.c.b16 %v1152, %v1151
    %v1163 = vpack.c.b16 %v1154, %v1153
    %v1164 = vpack.c.b16 %v1156, %v1155
    %1173 = vmatpush.bf16.msra.mxu0 %v1164
    %1174 = vmatpush.bf16.msra.mxu0 %v1163
    %1175 = vmatpush.bf16.msra.mxu0 %v1162
    %1176 = vmatpush.bf16.msra.mxu0 %v1161
    %1177 = vmatpush.bf16.msra.mxu0 %v1160
    %1178 = vmatpush.bf16.msra.mxu0 %v1159
    %1179 = vmatpush.bf16.msra.mxu0 %v1158
    %1180 = vmatpush.bf16.msra.mxu0 %v1157
    %1181 = vmatmul.bf16.gmra.mxu0 %v1093
    %v1182 = vpop.f32.mrf.mxu0
    %v1183 = vadd.f32 0.0, %v1182
    %v1184 = vpop.f32.mrf.mxu0
    %v1185 = vadd.f32 0.0, %v1184
    %1186 = vmatmul.bf16.gmra.mxu0 %v1094
    %v1187 = vpop.f32.mrf.mxu0
    %v1188 = vadd.f32 0.0, %v1187
    %v1189 = vpop.f32.mrf.mxu0
    %v1190 = vadd.f32 0.0, %v1189
    %1191 = vmatmul.bf16.gmra.mxu0 %v1095
    %v1192 = vpop.f32.mrf.mxu0
    %v1193 = vadd.f32 0.0, %v1192
    %v1194 = vpop.f32.mrf.mxu0
    %v1195 = vadd.f32 0.0, %v1194
    %1196 = vmatmul.bf16.gmra.mxu0 %v1096
    %v1197 = vpop.f32.mrf.mxu0
    %v1198 = vadd.f32 0.0, %v1197
    %v1199 = vpop.f32.mrf.mxu0
    %v1200 = vadd.f32 0.0, %v1199
    %1201 = vmatmul.bf16.gmra.mxu0 %v1097
    %v1202 = vpop.f32.mrf.mxu0
    %v1203 = vadd.f32 0.0, %v1202
    %v1204 = vpop.f32.mrf.mxu0
    %v1205 = vadd.f32 0.0, %v1204
    %1206 = vmatmul.bf16.gmra.mxu0 %v1098
    %v1207 = vpop.f32.mrf.mxu0
    %v1208 = vadd.f32 0.0, %v1207
    %v1209 = vpop.f32.mrf.mxu0
    %v1210 = vadd.f32 0.0, %v1209
    %1211 = vmatmul.bf16.gmra.mxu0 %v1099
    %v1212 = vpop.f32.mrf.mxu0
    %v1213 = vadd.f32 0.0, %v1212
    %v1214 = vpop.f32.mrf.mxu0
    %v1215 = vadd.f32 0.0, %v1214
    %1216 = vmatmul.bf16.gmra.mxu0 %v1100
    %v1217 = vpop.f32.mrf.mxu0
    %v1218 = vadd.f32 0.0, %v1217
    %v1219 = vpop.f32.mrf.mxu0
    %v1220 = vadd.f32 0.0, %v1219
    %1221 = vmatmul.bf16.gmra.mxu0 %v1101
    %v1222 = vpop.f32.mrf.mxu0
    %v1223 = vadd.f32 0.0, %v1222
    %v1224 = vpop.f32.mrf.mxu0
    %v1225 = vadd.f32 0.0, %v1224
    %1226 = vmatmul.bf16.gmra.mxu0 %v1102
    %v1227 = vpop.f32.mrf.mxu0
    %v1228 = vadd.f32 0.0, %v1227
    %v1229 = vpop.f32.mrf.mxu0
    %v1230 = vadd.f32 0.0, %v1229
    %1231 = vmatmul.bf16.gmra.mxu0 %v1103
    %v1232 = vpop.f32.mrf.mxu0
    %v1233 = vadd.f32 0.0, %v1232
    %v1234 = vpop.f32.mrf.mxu0
    %v1235 = vadd.f32 0.0, %v1234
    %1236 = vmatmul.bf16.gmra.mxu0 %v1104
    %v1237 = vpop.f32.mrf.mxu0
    %v1238 = vadd.f32 0.0, %v1237
    %v1239 = vpop.f32.mrf.mxu0
    %v1240 = vadd.f32 0.0, %v1239
    %1241 = vmatmul.bf16.gmra.mxu0 %v1105
    %v1242 = vpop.f32.mrf.mxu0
    %v1243 = vadd.f32 0.0, %v1242
    %v1244 = vpop.f32.mrf.mxu0
    %v1245 = vadd.f32 0.0, %v1244
    %1246 = vmatmul.bf16.gmra.mxu0 %v1106
    %v1247 = vpop.f32.mrf.mxu0
    %v1248 = vadd.f32 0.0, %v1247
    %v1249 = vpop.f32.mrf.mxu0
    %v1250 = vadd.f32 0.0, %v1249
    %1251 = vmatmul.bf16.gmra.mxu0 %v1107
    %v1252 = vpop.f32.mrf.mxu0
    %v1253 = vadd.f32 0.0, %v1252
    %v1254 = vpop.f32.mrf.mxu0
    %v1255 = vadd.f32 0.0, %v1254
    %1256 = vmatmul.bf16.gmra.mxu0 %v1108
    %v1257 = vpop.f32.mrf.mxu0
    %v1258 = vadd.f32 0.0, %v1257
    %v1259 = vpop.f32.mrf.mxu0
    %v1260 = vadd.f32 0.0, %v1259
    %1261 = vdwg.mxu0
    %v1262 = vpack.c.bf16 %v1062, %v1061
    %v1263 = vpack.c.bf16 %v1064, %v1063
    %v1264 = vpack.c.bf16 %v1066, %v1065
    %v1265 = vpack.c.bf16 %v1068, %v1067
    %v1266 = vpack.c.bf16 %v1070, %v1069
    %v1267 = vpack.c.bf16 %v1072, %v1071
    %v1268 = vpack.c.bf16 %v1074, %v1073
    %v1269 = vpack.c.bf16 %v1076, %v1075
    %v1270 = vpack.c.bf16 %v1078, %v1077
    %v1271 = vpack.c.bf16 %v1080, %v1079
    %v1272 = vpack.c.bf16 %v1082, %v1081
    %v1273 = vpack.c.bf16 %v1084, %v1083
    %v1274 = vpack.c.bf16 %v1086, %v1085
    %v1275 = vpack.c.bf16 %v1088, %v1087
    %v1276 = vpack.c.bf16 %v1090, %v1089
    %v1277 = vpack.c.bf16 %v1092, %v1091
    %v1278 = vld [vmem:[%s3] sm:$0xf]
    %v1279 = vld [vmem:[%s3 + $0x4] sm:$0xf]
    %v1280 = vld [vmem:[%s3 + $0x8] sm:$0xf]
    %v1281 = vld [vmem:[%s3 + $0xc] sm:$0xf]
    %v1282 = vld [vmem:[%s3 + $0x10] sm:$0xf]
    %v1283 = vld [vmem:[%s3 + $0x14] sm:$0xf]
    %v1284 = vld [vmem:[%s3 + $0x18] sm:$0xf]
    %v1285 = vld [vmem:[%s3 + $0x1c] sm:$0xf]
    %v1286 = vld [vmem:[%s3 + $0x20] sm:$0xf]
    %v1287 = vld [vmem:[%s3 + $0x24] sm:$0xf]
    %v1288 = vld [vmem:[%s3 + $0x28] sm:$0xf]
    %v1289 = vld [vmem:[%s3 + $0x2c] sm:$0xf]
    %v1290 = vld [vmem:[%s3 + $0x30] sm:$0xf]
    %v1291 = vld [vmem:[%s3 + $0x34] sm:$0xf]
    %v1292 = vld [vmem:[%s3 + $0x38] sm:$0xf]
    %v1293 = vld [vmem:[%s3 + $0x3c] sm:$0xf]
    %v1310 = vunpack.c.l.b16 %v1278
    %v1311 = vunpack.c.l.b16 %v1279
    %v1312 = vunpack.c.l.b16 %v1280
    %v1313 = vunpack.c.l.b16 %v1281
    %v1314 = vunpack.c.l.b16 %v1282
    %v1315 = vunpack.c.l.b16 %v1283
    %v1316 = vunpack.c.l.b16 %v1284
    %v1317 = vunpack.c.l.b16 %v1285
    %v1318 = vunpack.c.l.b16 %v1286
    %v1319 = vunpack.c.l.b16 %v1287
    %v1320 = vunpack.c.l.b16 %v1288
    %v1321 = vunpack.c.l.b16 %v1289
    %v1322 = vunpack.c.l.b16 %v1290
    %v1323 = vunpack.c.l.b16 %v1291
    %v1324 = vunpack.c.l.b16 %v1292
    %v1325 = vunpack.c.l.b16 %v1293
    %v1326 = vpack.c.b16 %v1311, %v1310
    %v1327 = vpack.c.b16 %v1313, %v1312
    %v1328 = vpack.c.b16 %v1315, %v1314
    %v1329 = vpack.c.b16 %v1317, %v1316
    %v1330 = vpack.c.b16 %v1319, %v1318
    %v1331 = vpack.c.b16 %v1321, %v1320
    %v1332 = vpack.c.b16 %v1323, %v1322
    %v1333 = vpack.c.b16 %v1325, %v1324
    %1342 = vmatpush.bf16.msra.mxu0 %v1333
    %1343 = vmatpush.bf16.msra.mxu0 %v1332
    %1344 = vmatpush.bf16.msra.mxu0 %v1331
    %1345 = vmatpush.bf16.msra.mxu0 %v1330
    %1346 = vmatpush.bf16.msra.mxu0 %v1329
    %1347 = vmatpush.bf16.msra.mxu0 %v1328
    %1348 = vmatpush.bf16.msra.mxu0 %v1327
    %1349 = vmatpush.bf16.msra.mxu0 %v1326
    %1350 = vmatmul.bf16.gmra.mxu0 %v1262
    %v1351 = vpop.f32.mrf.mxu0
    %v1352 = vadd.f32 0.0, %v1351
    %v1353 = vpop.f32.mrf.mxu0
    %v1354 = vadd.f32 0.0, %v1353
    %1355 = vmatmul.bf16.gmra.mxu0 %v1263
    %v1356 = vpop.f32.mrf.mxu0
    %v1357 = vadd.f32 0.0, %v1356
    %v1358 = vpop.f32.mrf.mxu0
    %v1359 = vadd.f32 0.0, %v1358
    %1360 = vmatmul.bf16.gmra.mxu0 %v1264
    %v1361 = vpop.f32.mrf.mxu0
    %v1362 = vadd.f32 0.0, %v1361
    %v1363 = vpop.f32.mrf.mxu0
    %v1364 = vadd.f32 0.0, %v1363
    %1365 = vmatmul.bf16.gmra.mxu0 %v1265
    %v1366 = vpop.f32.mrf.mxu0
    %v1367 = vadd.f32 0.0, %v1366
    %v1368 = vpop.f32.mrf.mxu0
    %v1369 = vadd.f32 0.0, %v1368
    %1370 = vmatmul.bf16.gmra.mxu0 %v1266
    %v1371 = vpop.f32.mrf.mxu0
    %v1372 = vadd.f32 0.0, %v1371
    %v1373 = vpop.f32.mrf.mxu0
    %v1374 = vadd.f32 0.0, %v1373
    %1375 = vmatmul.bf16.gmra.mxu0 %v1267
    %v1376 = vpop.f32.mrf.mxu0
    %v1377 = vadd.f32 0.0, %v1376
    %v1378 = vpop.f32.mrf.mxu0
    %v1379 = vadd.f32 0.0, %v1378
    %1380 = vmatmul.bf16.gmra.mxu0 %v1268
    %v1381 = vpop.f32.mrf.mxu0
    %v1382 = vadd.f32 0.0, %v1381
    %v1383 = vpop.f32.mrf.mxu0
    %v1384 = vadd.f32 0.0, %v1383
    %1385 = vmatmul.bf16.gmra.mxu0 %v1269
    %v1386 = vpop.f32.mrf.mxu0
    %v1387 = vadd.f32 0.0, %v1386
    %v1388 = vpop.f32.mrf.mxu0
    %v1389 = vadd.f32 0.0, %v1388
    %1390 = vmatmul.bf16.gmra.mxu0 %v1270
    %v1391 = vpop.f32.mrf.mxu0
    %v1392 = vadd.f32 0.0, %v1391
    %v1393 = vpop.f32.mrf.mxu0
    %v1394 = vadd.f32 0.0, %v1393
    %1395 = vmatmul.bf16.gmra.mxu0 %v1271
    %v1396 = vpop.f32.mrf.mxu0
    %v1397 = vadd.f32 0.0, %v1396
    %v1398 = vpop.f32.mrf.mxu0
    %v1399 = vadd.f32 0.0, %v1398
    %1400 = vmatmul.bf16.gmra.mxu0 %v1272
    %v1401 = vpop.f32.mrf.mxu0
    %v1402 = vadd.f32 0.0, %v1401
    %v1403 = vpop.f32.mrf.mxu0
    %v1404 = vadd.f32 0.0, %v1403
    %1405 = vmatmul.bf16.gmra.mxu0 %v1273
    %v1406 = vpop.f32.mrf.mxu0
    %v1407 = vadd.f32 0.0, %v1406
    %v1408 = vpop.f32.mrf.mxu0
    %v1409 = vadd.f32 0.0, %v1408
    %1410 = vmatmul.bf16.gmra.mxu0 %v1274
    %v1411 = vpop.f32.mrf.mxu0
    %v1412 = vadd.f32 0.0, %v1411
    %v1413 = vpop.f32.mrf.mxu0
    %v1414 = vadd.f32 0.0, %v1413
    %1415 = vmatmul.bf16.gmra.mxu0 %v1275
    %v1416 = vpop.f32.mrf.mxu0
    %v1417 = vadd.f32 0.0, %v1416
    %v1418 = vpop.f32.mrf.mxu0
    %v1419 = vadd.f32 0.0, %v1418
    %1420 = vmatmul.bf16.gmra.mxu0 %v1276
    %v1421 = vpop.f32.mrf.mxu0
    %v1422 = vadd.f32 0.0, %v1421
    %v1423 = vpop.f32.mrf.mxu0
    %v1424 = vadd.f32 0.0, %v1423
    %1425 = vmatmul.bf16.gmra.mxu0 %v1277
    %v1426 = vpop.f32.mrf.mxu0
    %v1427 = vadd.f32 0.0, %v1426
    %v1428 = vpop.f32.mrf.mxu0
    %v1429 = vadd.f32 0.0, %v1428
    %1430 = vdwg.mxu0
    %v1431 = vsub.f32 %v1183, %v1352
    %v1432 = vsub.f32 %v1185, %v1354
    %v1433 = vsub.f32 %v1188, %v1357
    %v1434 = vsub.f32 %v1190, %v1359
    %v1435 = vsub.f32 %v1193, %v1362
    %v1436 = vsub.f32 %v1195, %v1364
    %v1437 = vsub.f32 %v1198, %v1367
    %v1438 = vsub.f32 %v1200, %v1369
    %v1439 = vsub.f32 %v1203, %v1372
    %v1440 = vsub.f32 %v1205, %v1374
    %v1441 = vsub.f32 %v1208, %v1377
    %v1442 = vsub.f32 %v1210, %v1379
    %v1443 = vsub.f32 %v1213, %v1382
    %v1444 = vsub.f32 %v1215, %v1384
    %v1445 = vsub.f32 %v1218, %v1387
    %v1446 = vsub.f32 %v1220, %v1389
    %v1447 = vsub.f32 %v1223, %v1392
    %v1448 = vsub.f32 %v1225, %v1394
    %v1449 = vsub.f32 %v1228, %v1397
    %v1450 = vsub.f32 %v1230, %v1399
    %v1451 = vsub.f32 %v1233, %v1402
    %v1452 = vsub.f32 %v1235, %v1404
    %v1453 = vsub.f32 %v1238, %v1407
    %v1454 = vsub.f32 %v1240, %v1409
    %v1455 = vsub.f32 %v1243, %v1412
    %v1456 = vsub.f32 %v1245, %v1414
    %v1457 = vsub.f32 %v1248, %v1417
    %v1458 = vsub.f32 %v1250, %v1419
    %v1459 = vsub.f32 %v1253, %v1422
    %v1460 = vsub.f32 %v1255, %v1424
    %v1461 = vsub.f32 %v1258, %v1427
    %v1462 = vsub.f32 %v1260, %v1429
    %v1463 = vpack.c.bf16 %v1431, %v1431
    %v1464 = vpack.c.bf16 %v1432, %v1432
    %v1465 = vpack.c.bf16 %v1433, %v1433
    %v1466 = vpack.c.bf16 %v1434, %v1434
    %v1467 = vpack.c.bf16 %v1435, %v1435
    %v1468 = vpack.c.bf16 %v1436, %v1436
    %v1469 = vpack.c.bf16 %v1437, %v1437
    %v1470 = vpack.c.bf16 %v1438, %v1438
    %v1471 = vpack.c.bf16 %v1439, %v1439
    %v1472 = vpack.c.bf16 %v1440, %v1440
    %v1473 = vpack.c.bf16 %v1441, %v1441
    %v1474 = vpack.c.bf16 %v1442, %v1442
    %v1475 = vpack.c.bf16 %v1443, %v1443
    %v1476 = vpack.c.bf16 %v1444, %v1444
    %v1477 = vpack.c.bf16 %v1445, %v1445
    %v1478 = vpack.c.bf16 %v1446, %v1446
    %v1479 = vpack.c.bf16 %v1447, %v1447
    %v1480 = vpack.c.bf16 %v1448, %v1448
    %v1481 = vpack.c.bf16 %v1449, %v1449
    %v1482 = vpack.c.bf16 %v1450, %v1450
    %v1483 = vpack.c.bf16 %v1451, %v1451
    %v1484 = vpack.c.bf16 %v1452, %v1452
    %v1485 = vpack.c.bf16 %v1453, %v1453
    %v1486 = vpack.c.bf16 %v1454, %v1454
    %v1487 = vpack.c.bf16 %v1455, %v1455
    %v1488 = vpack.c.bf16 %v1456, %v1456
    %v1489 = vpack.c.bf16 %v1457, %v1457
    %v1490 = vpack.c.bf16 %v1458, %v1458
    %v1491 = vpack.c.bf16 %v1459, %v1459
    %v1492 = vpack.c.bf16 %v1460, %v1460
    %v1493 = vpack.c.bf16 %v1461, %v1461
    %v1494 = vpack.c.bf16 %v1462, %v1462
    %1495 = vst [vmem:[%s5] sm:$0xf] %v1463
    %1496 = vst [vmem:[%s5 + $0x8] sm:$0xf] %v1464
    %1497 = vst [vmem:[%s5 + $0x10] sm:$0xf] %v1465
    %1498 = vst [vmem:[%s5 + $0x18] sm:$0xf] %v1466
    %1499 = vst [vmem:[%s5 + $0x20] sm:$0xf] %v1467
    %1500 = vst [vmem:[%s5 + $0x28] sm:$0xf] %v1468
    %1501 = vst [vmem:[%s5 + $0x30] sm:$0xf] %v1469
    %1502 = vst [vmem:[%s5 + $0x38] sm:$0xf] %v1470
    %1503 = vst [vmem:[%s5 + $0x40] sm:$0xf] %v1471
    %1504 = vst [vmem:[%s5 + $0x48] sm:$0xf] %v1472
    %1505 = vst [vmem:[%s5 + $0x50] sm:$0xf] %v1473
    %1506 = vst [vmem:[%s5 + $0x58] sm:$0xf] %v1474
    %1507 = vst [vmem:[%s5 + $0x60] sm:$0xf] %v1475
    %1508 = vst [vmem:[%s5 + $0x68] sm:$0xf] %v1476
    %1509 = vst [vmem:[%s5 + $0x70] sm:$0xf] %v1477
    %1510 = vst [vmem:[%s5 + $0x78] sm:$0xf] %v1478
    %1511 = vst [vmem:[%s5 + $0x80] sm:$0xf] %v1479
    %1512 = vst [vmem:[%s5 + $0x88] sm:$0xf] %v1480
    %1513 = vst [vmem:[%s5 + $0x90] sm:$0xf] %v1481
    %1514 = vst [vmem:[%s5 + $0x98] sm:$0xf] %v1482
    %1515 = vst [vmem:[%s5 + $0xa0] sm:$0xf] %v1483
    %1516 = vst [vmem:[%s5 + $0xa8] sm:$0xf] %v1484
    %1517 = vst [vmem:[%s5 + $0xb0] sm:$0xf] %v1485
    %1518 = vst [vmem:[%s5 + $0xb8] sm:$0xf] %v1486
    %1519 = vst [vmem:[%s5 + $0xc0] sm:$0xf] %v1487
    %1520 = vst [vmem:[%s5 + $0xc8] sm:$0xf] %v1488
    %1521 = vst [vmem:[%s5 + $0xd0] sm:$0xf] %v1489
    %1522 = vst [vmem:[%s5 + $0xd8] sm:$0xf] %v1490
    %1523 = vst [vmem:[%s5 + $0xe0] sm:$0xf] %v1491
    %1524 = vst [vmem:[%s5 + $0xe8] sm:$0xf] %v1492
    %1525 = vst [vmem:[%s5 + $0xf0] sm:$0xf] %v1493
    %1526 = vst [vmem:[%s5 + $0xf8] sm:$0xf] %v1494
    %v1527 = vadd.f32 %v1029, %v1061
    %v1528 = vadd.f32 %v1030, %v1062
    %v1529 = vadd.f32 %v1031, %v1063
    %v1530 = vadd.f32 %v1032, %v1064
    %v1531 = vadd.f32 %v1033, %v1065
    %v1532 = vadd.f32 %v1034, %v1066
    %v1533 = vadd.f32 %v1035, %v1067
    %v1534 = vadd.f32 %v1036, %v1068
    %v1535 = vadd.f32 %v1037, %v1069
    %v1536 = vadd.f32 %v1038, %v1070
    %v1537 = vadd.f32 %v1039, %v1071
    %v1538 = vadd.f32 %v1040, %v1072
    %v1539 = vadd.f32 %v1041, %v1073
    %v1540 = vadd.f32 %v1042, %v1074
    %v1541 = vadd.f32 %v1043, %v1075
    %v1542 = vadd.f32 %v1044, %v1076
    %v1543 = vadd.f32 %v1045, %v1077
    %v1544 = vadd.f32 %v1046, %v1078
    %v1545 = vadd.f32 %v1047, %v1079
    %v1546 = vadd.f32 %v1048, %v1080
    %v1547 = vadd.f32 %v1049, %v1081
    %v1548 = vadd.f32 %v1050, %v1082
    %v1549 = vadd.f32 %v1051, %v1083
    %v1550 = vadd.f32 %v1052, %v1084
    %v1551 = vadd.f32 %v1053, %v1085
    %v1552 = vadd.f32 %v1054, %v1086
    %v1553 = vadd.f32 %v1055, %v1087
    %v1554 = vadd.f32 %v1056, %v1088
    %v1555 = vadd.f32 %v1057, %v1089
    %v1556 = vadd.f32 %v1058, %v1090
    %v1557 = vadd.f32 %v1059, %v1091
    %v1558 = vadd.f32 %v1060, %v1092
    %v1559 = vpack.c.bf16 %v1528, %v1527
    %v1560 = vpack.c.bf16 %v1530, %v1529
    %v1561 = vpack.c.bf16 %v1532, %v1531
    %v1562 = vpack.c.bf16 %v1534, %v1533
    %v1563 = vpack.c.bf16 %v1536, %v1535
    %v1564 = vpack.c.bf16 %v1538, %v1537
    %v1565 = vpack.c.bf16 %v1540, %v1539
    %v1566 = vpack.c.bf16 %v1542, %v1541
    %v1567 = vpack.c.bf16 %v1544, %v1543
    %v1568 = vpack.c.bf16 %v1546, %v1545
    %v1569 = vpack.c.bf16 %v1548, %v1547
    %v1570 = vpack.c.bf16 %v1550, %v1549
    %v1571 = vpack.c.bf16 %v1552, %v1551
    %v1572 = vpack.c.bf16 %v1554, %v1553
    %v1573 = vpack.c.bf16 %v1556, %v1555
    %v1574 = vpack.c.bf16 %v1558, %v1557
    %v1575 = vld [vmem:[%s4] sm:$0xf]
    %v1576 = vld [vmem:[%s4 + $0x4] sm:$0xf]
    %v1577 = vld [vmem:[%s4 + $0x8] sm:$0xf]
    %v1578 = vld [vmem:[%s4 + $0xc] sm:$0xf]
    %v1579 = vld [vmem:[%s4 + $0x10] sm:$0xf]
    %v1580 = vld [vmem:[%s4 + $0x14] sm:$0xf]
    %v1581 = vld [vmem:[%s4 + $0x18] sm:$0xf]
    %v1582 = vld [vmem:[%s4 + $0x1c] sm:$0xf]
    %v1583 = vld [vmem:[%s4 + $0x20] sm:$0xf]
    %v1584 = vld [vmem:[%s4 + $0x24] sm:$0xf]
    %v1585 = vld [vmem:[%s4 + $0x28] sm:$0xf]
    %v1586 = vld [vmem:[%s4 + $0x2c] sm:$0xf]
    %v1587 = vld [vmem:[%s4 + $0x30] sm:$0xf]
    %v1588 = vld [vmem:[%s4 + $0x34] sm:$0xf]
    %v1589 = vld [vmem:[%s4 + $0x38] sm:$0xf]
    %v1590 = vld [vmem:[%s4 + $0x3c] sm:$0xf]
    %v1607 = vunpack.c.l.b16 %v1575
    %v1608 = vunpack.c.l.b16 %v1576
    %v1609 = vunpack.c.l.b16 %v1577
    %v1610 = vunpack.c.l.b16 %v1578
    %v1611 = vunpack.c.l.b16 %v1579
    %v1612 = vunpack.c.l.b16 %v1580
    %v1613 = vunpack.c.l.b16 %v1581
    %v1614 = vunpack.c.l.b16 %v1582
    %v1615 = vunpack.c.l.b16 %v1583
    %v1616 = vunpack.c.l.b16 %v1584
    %v1617 = vunpack.c.l.b16 %v1585
    %v1618 = vunpack.c.l.b16 %v1586
    %v1619 = vunpack.c.l.b16 %v1587
    %v1620 = vunpack.c.l.b16 %v1588
    %v1621 = vunpack.c.l.b16 %v1589
    %v1622 = vunpack.c.l.b16 %v1590
    %v1623 = vpack.c.b16 %v1608, %v1607
    %v1624 = vpack.c.b16 %v1610, %v1609
    %v1625 = vpack.c.b16 %v1612, %v1611
    %v1626 = vpack.c.b16 %v1614, %v1613
    %v1627 = vpack.c.b16 %v1616, %v1615
    %v1628 = vpack.c.b16 %v1618, %v1617
    %v1629 = vpack.c.b16 %v1620, %v1619
    %v1630 = vpack.c.b16 %v1622, %v1621
    %1639 = vmatpush.bf16.msra.mxu0 %v1630
    %1640 = vmatpush.bf16.msra.mxu0 %v1629
    %1641 = vmatpush.bf16.msra.mxu0 %v1628
    %1642 = vmatpush.bf16.msra.mxu0 %v1627
    %1643 = vmatpush.bf16.msra.mxu0 %v1626
    %1644 = vmatpush.bf16.msra.mxu0 %v1625
    %1645 = vmatpush.bf16.msra.mxu0 %v1624
    %1646 = vmatpush.bf16.msra.mxu0 %v1623
    %1647 = vmatmul.bf16.gmra.mxu0 %v1559
    %v1648 = vpop.f32.mrf.mxu0
    %v1649 = vadd.f32 0.0, %v1648
    %v1650 = vpop.f32.mrf.mxu0
    %v1651 = vadd.f32 0.0, %v1650
    %1652 = vmatmul.bf16.gmra.mxu0 %v1560
    %v1653 = vpop.f32.mrf.mxu0
    %v1654 = vadd.f32 0.0, %v1653
    %v1655 = vpop.f32.mrf.mxu0
    %v1656 = vadd.f32 0.0, %v1655
    %1657 = vmatmul.bf16.gmra.mxu0 %v1561
    %v1658 = vpop.f32.mrf.mxu0
    %v1659 = vadd.f32 0.0, %v1658
    %v1660 = vpop.f32.mrf.mxu0
    %v1661 = vadd.f32 0.0, %v1660
    %1662 = vmatmul.bf16.gmra.mxu0 %v1562
    %v1663 = vpop.f32.mrf.mxu0
    %v1664 = vadd.f32 0.0, %v1663
    %v1665 = vpop.f32.mrf.mxu0
    %v1666 = vadd.f32 0.0, %v1665
    %1667 = vmatmul.bf16.gmra.mxu0 %v1563
    %v1668 = vpop.f32.mrf.mxu0
    %v1669 = vadd.f32 0.0, %v1668
    %v1670 = vpop.f32.mrf.mxu0
    %v1671 = vadd.f32 0.0, %v1670
    %1672 = vmatmul.bf16.gmra.mxu0 %v1564
    %v1673 = vpop.f32.mrf.mxu0
    %v1674 = vadd.f32 0.0, %v1673
    %v1675 = vpop.f32.mrf.mxu0
    %v1676 = vadd.f32 0.0, %v1675
    %1677 = vmatmul.bf16.gmra.mxu0 %v1565
    %v1678 = vpop.f32.mrf.mxu0
    %v1679 = vadd.f32 0.0, %v1678
    %v1680 = vpop.f32.mrf.mxu0
    %v1681 = vadd.f32 0.0, %v1680
    %1682 = vmatmul.bf16.gmra.mxu0 %v1566
    %v1683 = vpop.f32.mrf.mxu0
    %v1684 = vadd.f32 0.0, %v1683
    %v1685 = vpop.f32.mrf.mxu0
    %v1686 = vadd.f32 0.0, %v1685
    %1687 = vmatmul.bf16.gmra.mxu0 %v1567
    %v1688 = vpop.f32.mrf.mxu0
    %v1689 = vadd.f32 0.0, %v1688
    %v1690 = vpop.f32.mrf.mxu0
    %v1691 = vadd.f32 0.0, %v1690
    %1692 = vmatmul.bf16.gmra.mxu0 %v1568
    %v1693 = vpop.f32.mrf.mxu0
    %v1694 = vadd.f32 0.0, %v1693
    %v1695 = vpop.f32.mrf.mxu0
    %v1696 = vadd.f32 0.0, %v1695
    %1697 = vmatmul.bf16.gmra.mxu0 %v1569
    %v1698 = vpop.f32.mrf.mxu0
    %v1699 = vadd.f32 0.0, %v1698
    %v1700 = vpop.f32.mrf.mxu0
    %v1701 = vadd.f32 0.0, %v1700
    %1702 = vmatmul.bf16.gmra.mxu0 %v1570
    %v1703 = vpop.f32.mrf.mxu0
    %v1704 = vadd.f32 0.0, %v1703
    %v1705 = vpop.f32.mrf.mxu0
    %v1706 = vadd.f32 0.0, %v1705
    %1707 = vmatmul.bf16.gmra.mxu0 %v1571
    %v1708 = vpop.f32.mrf.mxu0
    %v1709 = vadd.f32 0.0, %v1708
    %v1710 = vpop.f32.mrf.mxu0
    %v1711 = vadd.f32 0.0, %v1710
    %1712 = vmatmul.bf16.gmra.mxu0 %v1572
    %v1713 = vpop.f32.mrf.mxu0
    %v1714 = vadd.f32 0.0, %v1713
    %v1715 = vpop.f32.mrf.mxu0
    %v1716 = vadd.f32 0.0, %v1715
    %1717 = vmatmul.bf16.gmra.mxu0 %v1573
    %v1718 = vpop.f32.mrf.mxu0
    %v1719 = vadd.f32 0.0, %v1718
    %v1720 = vpop.f32.mrf.mxu0
    %v1721 = vadd.f32 0.0, %v1720
    %1722 = vmatmul.bf16.gmra.mxu0 %v1574
    %v1723 = vpop.f32.mrf.mxu0
    %v1724 = vadd.f32 0.0, %v1723
    %v1725 = vpop.f32.mrf.mxu0
    %v1726 = vadd.f32 0.0, %v1725
    %1727 = vdwg.mxu0
    %v1728 = vsub.f32 %v1649, %v1183
    %v1729 = vsub.f32 %v1651, %v1185
    %v1730 = vsub.f32 %v1654, %v1188
    %v1731 = vsub.f32 %v1656, %v1190
    %v1732 = vsub.f32 %v1659, %v1193
    %v1733 = vsub.f32 %v1661, %v1195
    %v1734 = vsub.f32 %v1664, %v1198
    %v1735 = vsub.f32 %v1666, %v1200
    %v1736 = vsub.f32 %v1669, %v1203
    %v1737 = vsub.f32 %v1671, %v1205
    %v1738 = vsub.f32 %v1674, %v1208
    %v1739 = vsub.f32 %v1676, %v1210
    %v1740 = vsub.f32 %v1679, %v1213
    %v1741 = vsub.f32 %v1681, %v1215
    %v1742 = vsub.f32 %v1684, %v1218
    %v1743 = vsub.f32 %v1686, %v1220
    %v1744 = vsub.f32 %v1689, %v1223
    %v1745 = vsub.f32 %v1691, %v1225
    %v1746 = vsub.f32 %v1694, %v1228
    %v1747 = vsub.f32 %v1696, %v1230
    %v1748 = vsub.f32 %v1699, %v1233
    %v1749 = vsub.f32 %v1701, %v1235
    %v1750 = vsub.f32 %v1704, %v1238
    %v1751 = vsub.f32 %v1706, %v1240
    %v1752 = vsub.f32 %v1709, %v1243
    %v1753 = vsub.f32 %v1711, %v1245
    %v1754 = vsub.f32 %v1714, %v1248
    %v1755 = vsub.f32 %v1716, %v1250
    %v1756 = vsub.f32 %v1719, %v1253
    %v1757 = vsub.f32 %v1721, %v1255
    %v1758 = vsub.f32 %v1724, %v1258
    %v1759 = vsub.f32 %v1726, %v1260
    %v1760 = vsub.f32 %v1728, %v1352
    %v1761 = vsub.f32 %v1729, %v1354
    %v1762 = vsub.f32 %v1730, %v1357
    %v1763 = vsub.f32 %v1731, %v1359
    %v1764 = vsub.f32 %v1732, %v1362
    %v1765 = vsub.f32 %v1733, %v1364
    %v1766 = vsub.f32 %v1734, %v1367
    %v1767 = vsub.f32 %v1735, %v1369
    %v1768 = vsub.f32 %v1736, %v1372
    %v1769 = vsub.f32 %v1737, %v1374
    %v1770 = vsub.f32 %v1738, %v1377
    %v1771 = vsub.f32 %v1739, %v1379
    %v1772 = vsub.f32 %v1740, %v1382
    %v1773 = vsub.f32 %v1741, %v1384
    %v1774 = vsub.f32 %v1742, %v1387
    %v1775 = vsub.f32 %v1743, %v1389
    %v1776 = vsub.f32 %v1744, %v1392
    %v1777 = vsub.f32 %v1745, %v1394
    %v1778 = vsub.f32 %v1746, %v1397
    %v1779 = vsub.f32 %v1747, %v1399
    %v1780 = vsub.f32 %v1748, %v1402
    %v1781 = vsub.f32 %v1749, %v1404
    %v1782 = vsub.f32 %v1750, %v1407
    %v1783 = vsub.f32 %v1751, %v1409
    %v1784 = vsub.f32 %v1752, %v1412
    %v1785 = vsub.f32 %v1753, %v1414
    %v1786 = vsub.f32 %v1754, %v1417
    %v1787 = vsub.f32 %v1755, %v1419
    %v1788 = vsub.f32 %v1756, %v1422
    %v1789 = vsub.f32 %v1757, %v1424
    %v1790 = vsub.f32 %v1758, %v1427
    %v1791 = vsub.f32 %v1759, %v1429
    %v1792 = vpack.c.bf16 %v1760, %v1760
    %v1793 = vpack.c.bf16 %v1761, %v1761
    %v1794 = vpack.c.bf16 %v1762, %v1762
    %v1795 = vpack.c.bf16 %v1763, %v1763
    %v1796 = vpack.c.bf16 %v1764, %v1764
    %v1797 = vpack.c.bf16 %v1765, %v1765
    %v1798 = vpack.c.bf16 %v1766, %v1766
    %v1799 = vpack.c.bf16 %v1767, %v1767
    %v1800 = vpack.c.bf16 %v1768, %v1768
    %v1801 = vpack.c.bf16 %v1769, %v1769
    %v1802 = vpack.c.bf16 %v1770, %v1770
    %v1803 = vpack.c.bf16 %v1771, %v1771
    %v1804 = vpack.c.bf16 %v1772, %v1772
    %v1805 = vpack.c.bf16 %v1773, %v1773
    %v1806 = vpack.c.bf16 %v1774, %v1774
    %v1807 = vpack.c.bf16 %v1775, %v1775
    %v1808 = vpack.c.bf16 %v1776, %v1776
    %v1809 = vpack.c.bf16 %v1777, %v1777
    %v1810 = vpack.c.bf16 %v1778, %v1778
    %v1811 = vpack.c.bf16 %v1779, %v1779
    %v1812 = vpack.c.bf16 %v1780, %v1780
    %v1813 = vpack.c.bf16 %v1781, %v1781
    %v1814 = vpack.c.bf16 %v1782, %v1782
    %v1815 = vpack.c.bf16 %v1783, %v1783
    %v1816 = vpack.c.bf16 %v1784, %v1784
    %v1817 = vpack.c.bf16 %v1785, %v1785
    %v1818 = vpack.c.bf16 %v1786, %v1786
    %v1819 = vpack.c.bf16 %v1787, %v1787
    %v1820 = vpack.c.bf16 %v1788, %v1788
    %v1821 = vpack.c.bf16 %v1789, %v1789
    %v1822 = vpack.c.bf16 %v1790, %v1790
    %v1823 = vpack.c.bf16 %v1791, %v1791
    %1824 = vst [vmem:[%s5 + $0x4] sm:$0xf] %v1792
    %1825 = vst [vmem:[%s5 + $0xc] sm:$0xf] %v1793
    %1826 = vst [vmem:[%s5 + $0x14] sm:$0xf] %v1794
    %1827 = vst [vmem:[%s5 + $0x1c] sm:$0xf] %v1795
    %1828 = vst [vmem:[%s5 + $0x24] sm:$0xf] %v1796
    %1829 = vst [vmem:[%s5 + $0x2c] sm:$0xf] %v1797
    %1830 = vst [vmem:[%s5 + $0x34] sm:$0xf] %v1798
    %1831 = vst [vmem:[%s5 + $0x3c] sm:$0xf] %v1799
    %1832 = vst [vmem:[%s5 + $0x44] sm:$0xf] %v1800
    %1833 = vst [vmem:[%s5 + $0x4c] sm:$0xf] %v1801
    %1834 = vst [vmem:[%s5 + $0x54] sm:$0xf] %v1802
    %1835 = vst [vmem:[%s5 + $0x5c] sm:$0xf] %v1803
    %1836 = vst [vmem:[%s5 + $0x64] sm:$0xf] %v1804
    %1837 = vst [vmem:[%s5 + $0x6c] sm:$0xf] %v1805
    %1838 = vst [vmem:[%s5 + $0x74] sm:$0xf] %v1806
    %1839 = vst [vmem:[%s5 + $0x7c] sm:$0xf] %v1807
    %1840 = vst [vmem:[%s5 + $0x84] sm:$0xf] %v1808
    %1841 = vst [vmem:[%s5 + $0x8c] sm:$0xf] %v1809
    %1842 = vst [vmem:[%s5 + $0x94] sm:$0xf] %v1810
    %1843 = vst [vmem:[%s5 + $0x9c] sm:$0xf] %v1811
    %1844 = vst [vmem:[%s5 + $0xa4] sm:$0xf] %v1812
    %1845 = vst [vmem:[%s5 + $0xac] sm:$0xf] %v1813
    %1846 = vst [vmem:[%s5 + $0xb4] sm:$0xf] %v1814
    %1847 = vst [vmem:[%s5 + $0xbc] sm:$0xf] %v1815
    %1848 = vst [vmem:[%s5 + $0xc4] sm:$0xf] %v1816
    %1849 = vst [vmem:[%s5 + $0xcc] sm:$0xf] %v1817
    %1850 = vst [vmem:[%s5 + $0xd4] sm:$0xf] %v1818
    %1851 = vst [vmem:[%s5 + $0xdc] sm:$0xf] %v1819
    %1852 = vst [vmem:[%s5 + $0xe4] sm:$0xf] %v1820
    %1853 = vst [vmem:[%s5 + $0xec] sm:$0xf] %v1821
    %1854 = vst [vmem:[%s5 + $0xf4] sm:$0xf] %v1822
    %1855 = vst [vmem:[%s5 + $0xfc] sm:$0xf] %v1823
  $region29: #{unitary_gcn_forward.4} parent=0 // pred_fallthru
    _
  // Predicated region
  $region30: #{unitary_gcn_forward.4} parent=0 // pred_check
    _
  $region31: #{unitary_gcn_forward.4} parent=0 // pred_check_branch
    %1857 = sbr.rel (0) target = $region33
  $region32: #{unitary_gcn_forward.4} parent=0 // pred_region
    _
  $region33: #{unitary_gcn_forward.4} parent=0 // pred_fallthru
    _
  // Predicated region
  $region34: #{unitary_gcn_forward.4} parent=0 // pred_check
    _
  $region35: #{unitary_gcn_forward.4} parent=0 // pred_check_branch
    %1859 = sbr.rel (0) target = $region37
  $region36: #{unitary_gcn_forward.4} parent=0 // pred_region
    _
  $region37: #{unitary_gcn_forward.4} parent=0 // pred_fallthru
    _

// kernel: unitary_gcn_forward.5
$region0: #{unitary_gcn_forward.5}
  #allocation0 [shape = 'u32[]', space=smem, size = 0x4, offset = 0x4, fixed_abs, tag = 'smem constant byte address 0x4 - core index']
  #allocation1 [shape = 'u32[72,128]{1,0:T(1,128)}', space=vmem, size = 0x9000, scoped, tag = 'internal scratch']
  #allocation2 [shape = 'f32[256,256]{1,0:T(8,128)}', space=vmem, size = 0x40000, scoped, tag = 'scratch operand']
  %s0 = inlined_call_operand.vmem [shape: bf16[256,256], index: 0, kind: input, shape index: {}]
  %s1 = inlined_call_operand.vmem [shape: bf16[256,256], index: 1, kind: input, shape index: {}]
  %s2 = inlined_call_operand.vmem [shape: bf16[128,128], index: 2, kind: input, shape index: {}]
  %s3 = inlined_call_operand.vmem [shape: bf16[128,128], index: 3, kind: input, shape index: {}]
  %s4 = inlined_call_operand.vmem [shape: bf16[128,128], index: 4, kind: input, shape index: {}]
  %s5 = inlined_call_operand.vmem [shape: f32[1,128], index: 5, kind: input, shape index: {}]
  %s6 = inlined_call_operand.vmem [shape: f32[256,128], index: 6, kind: output, shape index: {}]
  %s7 = sld [smem:[#allocation0]]
  $region42: #{unitary_gcn_forward.5} parent=0
    _
  %s9 = ssub.s32 1, %s7
  %s10 = scalar_select 0, %s9, %s7
  // Predicated region
  $region2: #{unitary_gcn_forward.5} parent=0 // pred_check
    _
  $region3: #{unitary_gcn_forward.5} parent=0 // pred_check_branch
    %12 = sbr.rel (0) target = $region5
  $region4: #{unitary_gcn_forward.5} parent=0 // pred_region
    _
  $region5: #{unitary_gcn_forward.5} parent=0 // pred_fallthru
    _
  // Predicated region
  $region6: #{unitary_gcn_forward.5} parent=0 // pred_check
    _
  $region7: #{unitary_gcn_forward.5} parent=0 // pred_check_branch
    %14 = sbr.rel (0) target = $region9
  $region8: #{unitary_gcn_forward.5} parent=0 // pred_region
    _
  $region9: #{unitary_gcn_forward.5} parent=0 // pred_fallthru
    _
  // Predicated region
  $region10: #{unitary_gcn_forward.5} parent=0 // pred_check
    _
  $region11: #{unitary_gcn_forward.5} parent=0 // pred_check_branch
    %16 = sbr.rel (0) target = $region13
  $region12: #{unitary_gcn_forward.5} parent=0 // pred_region
    _
  $region13: #{unitary_gcn_forward.5} parent=0 // pred_fallthru
    _
  // Predicated region
  $region14: #{unitary_gcn_forward.5} parent=0 // pred_check
    _
  $region15: #{unitary_gcn_forward.5} parent=0 // pred_check_branch
    %18 = sbr.rel (0) target = $region17
  $region16: #{unitary_gcn_forward.5} parent=0 // pred_region
    _
  $region17: #{unitary_gcn_forward.5} parent=0 // pred_fallthru
    _
  // Predicated region
  $region18: #{unitary_gcn_forward.5} parent=0 // pred_check
    _
  $region19: #{unitary_gcn_forward.5} parent=0 // pred_check_branch
    %20 = sbr.rel (0) target = $region21
  $region20: #{unitary_gcn_forward.5} parent=0 // pred_region
    _
  $region21: #{unitary_gcn_forward.5} parent=0 // pred_fallthru
    _
  // Predicated region
  $region22: #{unitary_gcn_forward.5} parent=0 // pred_check
    _
  $region23: #{unitary_gcn_forward.5} parent=0 // pred_check_branch
    %22 = sbr.rel (0) target = $region25
  $region24: #{unitary_gcn_forward.5} parent=0 // pred_region
    _
  $region25: #{unitary_gcn_forward.5} parent=0 // pred_fallthru
    _
  %p23 = scmp.eq.s32.totalorder 0, 0
  // Predicated region
  $region26: #{unitary_gcn_forward.5} parent=0 // pred_check
    %p24 = pneg %p23
  $region27: #{unitary_gcn_forward.5} parent=0 // pred_check_branch
    %26 = sbr.rel (%p24) target = $region29
  $region28: #{unitary_gcn_forward.5} parent=0 // pred_region
    %27 = vst [vmem:[#allocation2] sm:$0xff] 0.0
    %28 = vst [vmem:[#allocation2 + $0x8] sm:$0xff] 0.0
    %29 = vst [vmem:[#allocation2 + $0x10] sm:$0xff] 0.0
    %30 = vst [vmem:[#allocation2 + $0x18] sm:$0xff] 0.0
    %31 = vst [vmem:[#allocation2 + $0x20] sm:$0xff] 0.0
    %32 = vst [vmem:[#allocation2 + $0x28] sm:$0xff] 0.0
    %33 = vst [vmem:[#allocation2 + $0x30] sm:$0xff] 0.0
    %34 = vst [vmem:[#allocation2 + $0x38] sm:$0xff] 0.0
    %35 = vst [vmem:[#allocation2 + $0x40] sm:$0xff] 0.0
    %36 = vst [vmem:[#allocation2 + $0x48] sm:$0xff] 0.0
    %37 = vst [vmem:[#allocation2 + $0x50] sm:$0xff] 0.0
    %38 = vst [vmem:[#allocation2 + $0x58] sm:$0xff] 0.0
    %39 = vst [vmem:[#allocation2 + $0x60] sm:$0xff] 0.0
    %40 = vst [vmem:[#allocation2 + $0x68] sm:$0xff] 0.0
    %41 = vst [vmem:[#allocation2 + $0x70] sm:$0xff] 0.0
    %42 = vst [vmem:[#allocation2 + $0x78] sm:$0xff] 0.0
    %43 = vst [vmem:[#allocation2 + $0x80] sm:$0xff] 0.0
    %44 = vst [vmem:[#allocation2 + $0x88] sm:$0xff] 0.0
    %45 = vst [vmem:[#allocation2 + $0x90] sm:$0xff] 0.0
    %46 = vst [vmem:[#allocation2 + $0x98] sm:$0xff] 0.0
    %47 = vst [vmem:[#allocation2 + $0xa0] sm:$0xff] 0.0
    %48 = vst [vmem:[#allocation2 + $0xa8] sm:$0xff] 0.0
    %49 = vst [vmem:[#allocation2 + $0xb0] sm:$0xff] 0.0
    %50 = vst [vmem:[#allocation2 + $0xb8] sm:$0xff] 0.0
    %51 = vst [vmem:[#allocation2 + $0xc0] sm:$0xff] 0.0
    %52 = vst [vmem:[#allocation2 + $0xc8] sm:$0xff] 0.0
    %53 = vst [vmem:[#allocation2 + $0xd0] sm:$0xff] 0.0
    %54 = vst [vmem:[#allocation2 + $0xd8] sm:$0xff] 0.0
    %55 = vst [vmem:[#allocation2 + $0xe0] sm:$0xff] 0.0
    %56 = vst [vmem:[#allocation2 + $0xe8] sm:$0xff] 0.0
    %57 = vst [vmem:[#allocation2 + $0xf0] sm:$0xff] 0.0
    %58 = vst [vmem:[#allocation2 + $0xf8] sm:$0xff] 0.0
    %59 = vst [vmem:[#allocation2 + $0x100] sm:$0xff] 0.0
    %60 = vst [vmem:[#allocation2 + $0x108] sm:$0xff] 0.0
    %61 = vst [vmem:[#allocation2 + $0x110] sm:$0xff] 0.0
    %62 = vst [vmem:[#allocation2 + $0x118] sm:$0xff] 0.0
    %63 = vst [vmem:[#allocation2 + $0x120] sm:$0xff] 0.0
    %64 = vst [vmem:[#allocation2 + $0x128] sm:$0xff] 0.0
    %65 = vst [vmem:[#allocation2 + $0x130] sm:$0xff] 0.0
    %66 = vst [vmem:[#allocation2 + $0x138] sm:$0xff] 0.0
    %67 = vst [vmem:[#allocation2 + $0x140] sm:$0xff] 0.0
    %68 = vst [vmem:[#allocation2 + $0x148] sm:$0xff] 0.0
    %69 = vst [vmem:[#allocation2 + $0x150] sm:$0xff] 0.0
    %70 = vst [vmem:[#allocation2 + $0x158] sm:$0xff] 0.0
    %71 = vst [vmem:[#allocation2 + $0x160] sm:$0xff] 0.0
    %72 = vst [vmem:[#allocation2 + $0x168] sm:$0xff] 0.0
    %73 = vst [vmem:[#allocation2 + $0x170] sm:$0xff] 0.0
    %74 = vst [vmem:[#allocation2 + $0x178] sm:$0xff] 0.0
    %75 = vst [vmem:[#allocation2 + $0x180] sm:$0xff] 0.0
    %76 = vst [vmem:[#allocation2 + $0x188] sm:$0xff] 0.0
    %77 = vst [vmem:[#allocation2 + $0x190] sm:$0xff] 0.0
    %78 = vst [vmem:[#allocation2 + $0x198] sm:$0xff] 0.0
    %79 = vst [vmem:[#allocation2 + $0x1a0] sm:$0xff] 0.0
    %80 = vst [vmem:[#allocation2 + $0x1a8] sm:$0xff] 0.0
    %81 = vst [vmem:[#allocation2 + $0x1b0] sm:$0xff] 0.0
    %82 = vst [vmem:[#allocation2 + $0x1b8] sm:$0xff] 0.0
    %83 = vst [vmem:[#allocation2 + $0x1c0] sm:$0xff] 0.0
    %84 = vst [vmem:[#allocation2 + $0x1c8] sm:$0xff] 0.0
    %85 = vst [vmem:[#allocation2 + $0x1d0] sm:$0xff] 0.0
    %86 = vst [vmem:[#allocation2 + $0x1d8] sm:$0xff] 0.0
    %87 = vst [vmem:[#allocation2 + $0x1e0] sm:$0xff] 0.0
    %88 = vst [vmem:[#allocation2 + $0x1e8] sm:$0xff] 0.0
    %89 = vst [vmem:[#allocation2 + $0x1f0] sm:$0xff] 0.0
    %90 = vst [vmem:[#allocation2 + $0x1f8] sm:$0xff] 0.0
  $region29: #{unitary_gcn_forward.5} parent=0 // pred_fallthru
    _
  %s91 = smul.u32 0, 256
  %s92 = sshra.s32 %s91, 3
  %s93 = sand.u32 %s91, 7
  %s94 = smul.u32 %s92, 2
  %s95 = smul.addr %s94, 4
  %s96 = scalar_lea.vmem %s0, %s95
  %v97 = vld [vmem:[%s96] sm:$0xff]
  %v98 = vld [vmem:[%s96 + $0x8] sm:$0xff]
  %v99 = vld [vmem:[%s96 + $0x10] sm:$0xff]
  %v100 = vld [vmem:[%s96 + $0x18] sm:$0xff]
  %v101 = vld [vmem:[%s96 + $0x20] sm:$0xff]
  %v102 = vld [vmem:[%s96 + $0x28] sm:$0xff]
  %v103 = vld [vmem:[%s96 + $0x30] sm:$0xff]
  %v104 = vld [vmem:[%s96 + $0x38] sm:$0xff]
  %v105 = vld [vmem:[%s96 + $0x40] sm:$0xff]
  %v106 = vld [vmem:[%s96 + $0x48] sm:$0xff]
  %v107 = vld [vmem:[%s96 + $0x50] sm:$0xff]
  %v108 = vld [vmem:[%s96 + $0x58] sm:$0xff]
  %v109 = vld [vmem:[%s96 + $0x60] sm:$0xff]
  %v110 = vld [vmem:[%s96 + $0x68] sm:$0xff]
  %v111 = vld [vmem:[%s96 + $0x70] sm:$0xff]
  %v112 = vld [vmem:[%s96 + $0x78] sm:$0xff]
  %v113 = vld [vmem:[%s96 + $0x80] sm:$0xff]
  %v114 = vld [vmem:[%s96 + $0x88] sm:$0xff]
  %v115 = vld [vmem:[%s96 + $0x90] sm:$0xff]
  %v116 = vld [vmem:[%s96 + $0x98] sm:$0xff]
  %v117 = vld [vmem:[%s96 + $0xa0] sm:$0xff]
  %v118 = vld [vmem:[%s96 + $0xa8] sm:$0xff]
  %v119 = vld [vmem:[%s96 + $0xb0] sm:$0xff]
  %v120 = vld [vmem:[%s96 + $0xb8] sm:$0xff]
  %v121 = vld [vmem:[%s96 + $0xc0] sm:$0xff]
  %v122 = vld [vmem:[%s96 + $0xc8] sm:$0xff]
  %v123 = vld [vmem:[%s96 + $0xd0] sm:$0xff]
  %v124 = vld [vmem:[%s96 + $0xd8] sm:$0xff]
  %v125 = vld [vmem:[%s96 + $0xe0] sm:$0xff]
  %v126 = vld [vmem:[%s96 + $0xe8] sm:$0xff]
  %v127 = vld [vmem:[%s96 + $0xf0] sm:$0xff]
  %v128 = vld [vmem:[%s96 + $0xf8] sm:$0xff]
  %v129 = vld [vmem:[#allocation2] sm:$0xff]
  %v130 = vld [vmem:[#allocation2 + $0x8] sm:$0xff]
  %v131 = vld [vmem:[#allocation2 + $0x10] sm:$0xff]
  %v132 = vld [vmem:[#allocation2 + $0x18] sm:$0xff]
  %v133 = vld [vmem:[#allocation2 + $0x20] sm:$0xff]
  %v134 = vld [vmem:[#allocation2 + $0x28] sm:$0xff]
  %v135 = vld [vmem:[#allocation2 + $0x30] sm:$0xff]
  %v136 = vld [vmem:[#allocation2 + $0x38] sm:$0xff]
  %v137 = vld [vmem:[#allocation2 + $0x40] sm:$0xff]
  %v138 = vld [vmem:[#allocation2 + $0x48] sm:$0xff]
  %v139 = vld [vmem:[#allocation2 + $0x50] sm:$0xff]
  %v140 = vld [vmem:[#allocation2 + $0x58] sm:$0xff]
  %v141 = vld [vmem:[#allocation2 + $0x60] sm:$0xff]
  %v142 = vld [vmem:[#allocation2 + $0x68] sm:$0xff]
  %v143 = vld [vmem:[#allocation2 + $0x70] sm:$0xff]
  %v144 = vld [vmem:[#allocation2 + $0x78] sm:$0xff]
  %v145 = vld [vmem:[#allocation2 + $0x80] sm:$0xff]
  %v146 = vld [vmem:[#allocation2 + $0x88] sm:$0xff]
  %v147 = vld [vmem:[#allocation2 + $0x90] sm:$0xff]
  %v148 = vld [vmem:[#allocation2 + $0x98] sm:$0xff]
  %v149 = vld [vmem:[#allocation2 + $0xa0] sm:$0xff]
  %v150 = vld [vmem:[#allocation2 + $0xa8] sm:$0xff]
  %v151 = vld [vmem:[#allocation2 + $0xb0] sm:$0xff]
  %v152 = vld [vmem:[#allocation2 + $0xb8] sm:$0xff]
  %v153 = vld [vmem:[#allocation2 + $0xc0] sm:$0xff]
  %v154 = vld [vmem:[#allocation2 + $0xc8] sm:$0xff]
  %v155 = vld [vmem:[#allocation2 + $0xd0] sm:$0xff]
  %v156 = vld [vmem:[#allocation2 + $0xd8] sm:$0xff]
  %v157 = vld [vmem:[#allocation2 + $0xe0] sm:$0xff]
  %v158 = vld [vmem:[#allocation2 + $0xe8] sm:$0xff]
  %v159 = vld [vmem:[#allocation2 + $0xf0] sm:$0xff]
  %v160 = vld [vmem:[#allocation2 + $0xf8] sm:$0xff]
  %v161 = vld [vmem:[#allocation2 + $0x100] sm:$0xff]
  %v162 = vld [vmem:[#allocation2 + $0x108] sm:$0xff]
  %v163 = vld [vmem:[#allocation2 + $0x110] sm:$0xff]
  %v164 = vld [vmem:[#allocation2 + $0x118] sm:$0xff]
  %v165 = vld [vmem:[#allocation2 + $0x120] sm:$0xff]
  %v166 = vld [vmem:[#allocation2 + $0x128] sm:$0xff]
  %v167 = vld [vmem:[#allocation2 + $0x130] sm:$0xff]
  %v168 = vld [vmem:[#allocation2 + $0x138] sm:$0xff]
  %v169 = vld [vmem:[#allocation2 + $0x140] sm:$0xff]
  %v170 = vld [vmem:[#allocation2 + $0x148] sm:$0xff]
  %v171 = vld [vmem:[#allocation2 + $0x150] sm:$0xff]
  %v172 = vld [vmem:[#allocation2 + $0x158] sm:$0xff]
  %v173 = vld [vmem:[#allocation2 + $0x160] sm:$0xff]
  %v174 = vld [vmem:[#allocation2 + $0x168] sm:$0xff]
  %v175 = vld [vmem:[#allocation2 + $0x170] sm:$0xff]
  %v176 = vld [vmem:[#allocation2 + $0x178] sm:$0xff]
  %v177 = vld [vmem:[#allocation2 + $0x180] sm:$0xff]
  %v178 = vld [vmem:[#allocation2 + $0x188] sm:$0xff]
  %v179 = vld [vmem:[#allocation2 + $0x190] sm:$0xff]
  %v180 = vld [vmem:[#allocation2 + $0x198] sm:$0xff]
  %v181 = vld [vmem:[#allocation2 + $0x1a0] sm:$0xff]
  %v182 = vld [vmem:[#allocation2 + $0x1a8] sm:$0xff]
  %v183 = vld [vmem:[#allocation2 + $0x1b0] sm:$0xff]
  %v184 = vld [vmem:[#allocation2 + $0x1b8] sm:$0xff]
  %v185 = vld [vmem:[#allocation2 + $0x1c0] sm:$0xff]
  %v186 = vld [vmem:[#allocation2 + $0x1c8] sm:$0xff]
  %v187 = vld [vmem:[#allocation2 + $0x1d0] sm:$0xff]
  %v188 = vld [vmem:[#allocation2 + $0x1d8] sm:$0xff]
  %v189 = vld [vmem:[#allocation2 + $0x1e0] sm:$0xff]
  %v190 = vld [vmem:[#allocation2 + $0x1e8] sm:$0xff]
  %v191 = vld [vmem:[#allocation2 + $0x1f0] sm:$0xff]
  %v192 = vld [vmem:[#allocation2 + $0x1f8] sm:$0xff]
  %v193 = vld [vmem:[%s1] sm:$0xff]
  %v194 = vld [vmem:[%s1 + $0x8] sm:$0xff]
  %v195 = vld [vmem:[%s1 + $0x10] sm:$0xff]
  %v196 = vld [vmem:[%s1 + $0x18] sm:$0xff]
  %v197 = vld [vmem:[%s1 + $0x20] sm:$0xff]
  %v198 = vld [vmem:[%s1 + $0x28] sm:$0xff]
  %v199 = vld [vmem:[%s1 + $0x30] sm:$0xff]
  %v200 = vld [vmem:[%s1 + $0x38] sm:$0xff]
  %v201 = vld [vmem:[%s1 + $0x40] sm:$0xff]
  %v202 = vld [vmem:[%s1 + $0x48] sm:$0xff]
  %v203 = vld [vmem:[%s1 + $0x50] sm:$0xff]
  %v204 = vld [vmem:[%s1 + $0x58] sm:$0xff]
  %v205 = vld [vmem:[%s1 + $0x60] sm:$0xff]
  %v206 = vld [vmem:[%s1 + $0x68] sm:$0xff]
  %v207 = vld [vmem:[%s1 + $0x70] sm:$0xff]
  %v208 = vld [vmem:[%s1 + $0x78] sm:$0xff]
  %v209 = vld [vmem:[%s1 + $0x80] sm:$0xff]
  %v210 = vld [vmem:[%s1 + $0x88] sm:$0xff]
  %v211 = vld [vmem:[%s1 + $0x90] sm:$0xff]
  %v212 = vld [vmem:[%s1 + $0x98] sm:$0xff]
  %v213 = vld [vmem:[%s1 + $0xa0] sm:$0xff]
  %v214 = vld [vmem:[%s1 + $0xa8] sm:$0xff]
  %v215 = vld [vmem:[%s1 + $0xb0] sm:$0xff]
  %v216 = vld [vmem:[%s1 + $0xb8] sm:$0xff]
  %v217 = vld [vmem:[%s1 + $0xc0] sm:$0xff]
  %v218 = vld [vmem:[%s1 + $0xc8] sm:$0xff]
  %v219 = vld [vmem:[%s1 + $0xd0] sm:$0xff]
  %v220 = vld [vmem:[%s1 + $0xd8] sm:$0xff]
  %v221 = vld [vmem:[%s1 + $0xe0] sm:$0xff]
  %v222 = vld [vmem:[%s1 + $0xe8] sm:$0xff]
  %v223 = vld [vmem:[%s1 + $0xf0] sm:$0xff]
  %v224 = vld [vmem:[%s1 + $0xf8] sm:$0xff]
  %v257 = vunpack.c.l.b16 %v193
  %v258 = vunpack.c.h.b16 %v193
  %v259 = vunpack.c.l.b16 %v194
  %v260 = vunpack.c.h.b16 %v194
  %v261 = vunpack.c.l.b16 %v195
  %v262 = vunpack.c.h.b16 %v195
  %v263 = vunpack.c.l.b16 %v196
  %v264 = vunpack.c.h.b16 %v196
  %v265 = vunpack.c.l.b16 %v197
  %v266 = vunpack.c.h.b16 %v197
  %v267 = vunpack.c.l.b16 %v198
  %v268 = vunpack.c.h.b16 %v198
  %v269 = vunpack.c.l.b16 %v199
  %v270 = vunpack.c.h.b16 %v199
  %v271 = vunpack.c.l.b16 %v200
  %v272 = vunpack.c.h.b16 %v200
  %v273 = vunpack.c.l.b16 %v201
  %v274 = vunpack.c.h.b16 %v201
  %v275 = vunpack.c.l.b16 %v202
  %v276 = vunpack.c.h.b16 %v202
  %v277 = vunpack.c.l.b16 %v203
  %v278 = vunpack.c.h.b16 %v203
  %v279 = vunpack.c.l.b16 %v204
  %v280 = vunpack.c.h.b16 %v204
  %v281 = vunpack.c.l.b16 %v205
  %v282 = vunpack.c.h.b16 %v205
  %v283 = vunpack.c.l.b16 %v206
  %v284 = vunpack.c.h.b16 %v206
  %v285 = vunpack.c.l.b16 %v207
  %v286 = vunpack.c.h.b16 %v207
  %v287 = vunpack.c.l.b16 %v208
  %v288 = vunpack.c.h.b16 %v208
  %v289 = vunpack.c.l.b16 %v209
  %v290 = vunpack.c.h.b16 %v209
  %v291 = vunpack.c.l.b16 %v210
  %v292 = vunpack.c.h.b16 %v210
  %v293 = vunpack.c.l.b16 %v211
  %v294 = vunpack.c.h.b16 %v211
  %v295 = vunpack.c.l.b16 %v212
  %v296 = vunpack.c.h.b16 %v212
  %v297 = vunpack.c.l.b16 %v213
  %v298 = vunpack.c.h.b16 %v213
  %v299 = vunpack.c.l.b16 %v214
  %v300 = vunpack.c.h.b16 %v214
  %v301 = vunpack.c.l.b16 %v215
  %v302 = vunpack.c.h.b16 %v215
  %v303 = vunpack.c.l.b16 %v216
  %v304 = vunpack.c.h.b16 %v216
  %v305 = vunpack.c.l.b16 %v217
  %v306 = vunpack.c.h.b16 %v217
  %v307 = vunpack.c.l.b16 %v218
  %v308 = vunpack.c.h.b16 %v218
  %v309 = vunpack.c.l.b16 %v219
  %v310 = vunpack.c.h.b16 %v219
  %v311 = vunpack.c.l.b16 %v220
  %v312 = vunpack.c.h.b16 %v220
  %v313 = vunpack.c.l.b16 %v221
  %v314 = vunpack.c.h.b16 %v221
  %v315 = vunpack.c.l.b16 %v222
  %v316 = vunpack.c.h.b16 %v222
  %v317 = vunpack.c.l.b16 %v223
  %v318 = vunpack.c.h.b16 %v223
  %v319 = vunpack.c.l.b16 %v224
  %v320 = vunpack.c.h.b16 %v224
  %v321 = vpack.c.b16 %v259, %v257
  %v322 = vpack.c.b16 %v260, %v258
  %v323 = vpack.c.b16 %v263, %v261
  %v324 = vpack.c.b16 %v264, %v262
  %v325 = vpack.c.b16 %v267, %v265
  %v326 = vpack.c.b16 %v268, %v266
  %v327 = vpack.c.b16 %v271, %v269
  %v328 = vpack.c.b16 %v272, %v270
  %v329 = vpack.c.b16 %v275, %v273
  %v330 = vpack.c.b16 %v276, %v274
  %v331 = vpack.c.b16 %v279, %v277
  %v332 = vpack.c.b16 %v280, %v278
  %v333 = vpack.c.b16 %v283, %v281
  %v334 = vpack.c.b16 %v284, %v282
  %v335 = vpack.c.b16 %v287, %v285
  %v336 = vpack.c.b16 %v288, %v286
  %v337 = vpack.c.b16 %v291, %v289
  %v338 = vpack.c.b16 %v292, %v290
  %v339 = vpack.c.b16 %v295, %v293
  %v340 = vpack.c.b16 %v296, %v294
  %v341 = vpack.c.b16 %v299, %v297
  %v342 = vpack.c.b16 %v300, %v298
  %v343 = vpack.c.b16 %v303, %v301
  %v344 = vpack.c.b16 %v304, %v302
  %v345 = vpack.c.b16 %v307, %v305
  %v346 = vpack.c.b16 %v308, %v306
  %v347 = vpack.c.b16 %v311, %v309
  %v348 = vpack.c.b16 %v312, %v310
  %v349 = vpack.c.b16 %v315, %v313
  %v350 = vpack.c.b16 %v316, %v314
  %v351 = vpack.c.b16 %v319, %v317
  %v352 = vpack.c.b16 %v320, %v318
  %v417 = vunpack.c.l.b16 %v97
  %v418 = vunpack.c.h.b16 %v97
  %v419 = vunpack.c.l.b16 %v98
  %v420 = vunpack.c.h.b16 %v98
  %v421 = vunpack.c.l.b16 %v99
  %v422 = vunpack.c.h.b16 %v99
  %v423 = vunpack.c.l.b16 %v100
  %v424 = vunpack.c.h.b16 %v100
  %v425 = vunpack.c.l.b16 %v101
  %v426 = vunpack.c.h.b16 %v101
  %v427 = vunpack.c.l.b16 %v102
  %v428 = vunpack.c.h.b16 %v102
  %v429 = vunpack.c.l.b16 %v103
  %v430 = vunpack.c.h.b16 %v103
  %v431 = vunpack.c.l.b16 %v104
  %v432 = vunpack.c.h.b16 %v104
  %v433 = vunpack.c.l.b16 %v105
  %v434 = vunpack.c.h.b16 %v105
  %v435 = vunpack.c.l.b16 %v106
  %v436 = vunpack.c.h.b16 %v106
  %v437 = vunpack.c.l.b16 %v107
  %v438 = vunpack.c.h.b16 %v107
  %v439 = vunpack.c.l.b16 %v108
  %v440 = vunpack.c.h.b16 %v108
  %v441 = vunpack.c.l.b16 %v109
  %v442 = vunpack.c.h.b16 %v109
  %v443 = vunpack.c.l.b16 %v110
  %v444 = vunpack.c.h.b16 %v110
  %v445 = vunpack.c.l.b16 %v111
  %v446 = vunpack.c.h.b16 %v111
  %v447 = vunpack.c.l.b16 %v112
  %v448 = vunpack.c.h.b16 %v112
  %v449 = vunpack.c.l.b16 %v113
  %v450 = vunpack.c.h.b16 %v113
  %v451 = vunpack.c.l.b16 %v114
  %v452 = vunpack.c.h.b16 %v114
  %v453 = vunpack.c.l.b16 %v115
  %v454 = vunpack.c.h.b16 %v115
  %v455 = vunpack.c.l.b16 %v116
  %v456 = vunpack.c.h.b16 %v116
  %v457 = vunpack.c.l.b16 %v117
  %v458 = vunpack.c.h.b16 %v117
  %v459 = vunpack.c.l.b16 %v118
  %v460 = vunpack.c.h.b16 %v118
  %v461 = vunpack.c.l.b16 %v119
  %v462 = vunpack.c.h.b16 %v119
  %v463 = vunpack.c.l.b16 %v120
  %v464 = vunpack.c.h.b16 %v120
  %v465 = vunpack.c.l.b16 %v121
  %v466 = vunpack.c.h.b16 %v121
  %v467 = vunpack.c.l.b16 %v122
  %v468 = vunpack.c.h.b16 %v122
  %v469 = vunpack.c.l.b16 %v123
  %v470 = vunpack.c.h.b16 %v123
  %v471 = vunpack.c.l.b16 %v124
  %v472 = vunpack.c.h.b16 %v124
  %v473 = vunpack.c.l.b16 %v125
  %v474 = vunpack.c.h.b16 %v125
  %v475 = vunpack.c.l.b16 %v126
  %v476 = vunpack.c.h.b16 %v126
  %v477 = vunpack.c.l.b16 %v127
  %v478 = vunpack.c.h.b16 %v127
  %v479 = vunpack.c.l.b16 %v128
  %v480 = vunpack.c.h.b16 %v128
  %v481 = vpack.c.b16 %v419, %v417
  %v482 = vpack.c.b16 %v420, %v418
  %v483 = vpack.c.b16 %v423, %v421
  %v484 = vpack.c.b16 %v424, %v422
  %v485 = vpack.c.b16 %v427, %v425
  %v486 = vpack.c.b16 %v428, %v426
  %v487 = vpack.c.b16 %v431, %v429
  %v488 = vpack.c.b16 %v432, %v430
  %v489 = vpack.c.b16 %v435, %v433
  %v490 = vpack.c.b16 %v436, %v434
  %v491 = vpack.c.b16 %v439, %v437
  %v492 = vpack.c.b16 %v440, %v438
  %v493 = vpack.c.b16 %v443, %v441
  %v494 = vpack.c.b16 %v444, %v442
  %v495 = vpack.c.b16 %v447, %v445
  %v496 = vpack.c.b16 %v448, %v446
  %v497 = vpack.c.b16 %v451, %v449
  %v498 = vpack.c.b16 %v452, %v450
  %v499 = vpack.c.b16 %v455, %v453
  %v500 = vpack.c.b16 %v456, %v454
  %v501 = vpack.c.b16 %v459, %v457
  %v502 = vpack.c.b16 %v460, %v458
  %v503 = vpack.c.b16 %v463, %v461
  %v504 = vpack.c.b16 %v464, %v462
  %v505 = vpack.c.b16 %v467, %v465
  %v506 = vpack.c.b16 %v468, %v466
  %v507 = vpack.c.b16 %v471, %v469
  %v508 = vpack.c.b16 %v472, %v470
  %v509 = vpack.c.b16 %v475, %v473
  %v510 = vpack.c.b16 %v476, %v474
  %v511 = vpack.c.b16 %v479, %v477
  %v512 = vpack.c.b16 %v480, %v478
  %545 = vmatpush.bf16.msra.mxu0 %v495
  %546 = vmatpush.bf16.msra.mxu0 %v493
  %547 = vmatpush.bf16.msra.mxu0 %v491
  %548 = vmatpush.bf16.msra.mxu0 %v489
  %549 = vmatpush.bf16.msra.mxu0 %v487
  %550 = vmatpush.bf16.msra.mxu0 %v485
  %551 = vmatpush.bf16.msra.mxu0 %v483
  %552 = vmatpush.bf16.msra.mxu0 %v481
  %553 = vmatmul.bf16.gmra.mxu0 %v321
  %v554 = vpop.f32.mrf.mxu0
  %v555 = vadd.f32 0.0, %v554
  %v556 = vpop.f32.mrf.mxu0
  %v557 = vadd.f32 0.0, %v556
  %558 = vmatmul.bf16.gmra.mxu0 %v323
  %v559 = vpop.f32.mrf.mxu0
  %v560 = vadd.f32 0.0, %v559
  %v561 = vpop.f32.mrf.mxu0
  %v562 = vadd.f32 0.0, %v561
  %563 = vmatmul.bf16.gmra.mxu0 %v325
  %v564 = vpop.f32.mrf.mxu0
  %v565 = vadd.f32 0.0, %v564
  %v566 = vpop.f32.mrf.mxu0
  %v567 = vadd.f32 0.0, %v566
  %568 = vmatmul.bf16.gmra.mxu0 %v327
  %v569 = vpop.f32.mrf.mxu0
  %v570 = vadd.f32 0.0, %v569
  %v571 = vpop.f32.mrf.mxu0
  %v572 = vadd.f32 0.0, %v571
  %573 = vmatmul.bf16.gmra.mxu0 %v329
  %v574 = vpop.f32.mrf.mxu0
  %v575 = vadd.f32 0.0, %v574
  %v576 = vpop.f32.mrf.mxu0
  %v577 = vadd.f32 0.0, %v576
  %578 = vmatmul.bf16.gmra.mxu0 %v331
  %v579 = vpop.f32.mrf.mxu0
  %v580 = vadd.f32 0.0, %v579
  %v581 = vpop.f32.mrf.mxu0
  %v582 = vadd.f32 0.0, %v581
  %583 = vmatmul.bf16.gmra.mxu0 %v333
  %v584 = vpop.f32.mrf.mxu0
  %v585 = vadd.f32 0.0, %v584
  %v586 = vpop.f32.mrf.mxu0
  %v587 = vadd.f32 0.0, %v586
  %588 = vmatmul.bf16.gmra.mxu0 %v335
  %v589 = vpop.f32.mrf.mxu0
  %v590 = vadd.f32 0.0, %v589
  %v591 = vpop.f32.mrf.mxu0
  %v592 = vadd.f32 0.0, %v591
  %593 = vmatmul.bf16.gmra.mxu0 %v337
  %v594 = vpop.f32.mrf.mxu0
  %v595 = vadd.f32 0.0, %v594
  %v596 = vpop.f32.mrf.mxu0
  %v597 = vadd.f32 0.0, %v596
  %598 = vmatmul.bf16.gmra.mxu0 %v339
  %v599 = vpop.f32.mrf.mxu0
  %v600 = vadd.f32 0.0, %v599
  %v601 = vpop.f32.mrf.mxu0
  %v602 = vadd.f32 0.0, %v601
  %603 = vmatmul.bf16.gmra.mxu0 %v341
  %v604 = vpop.f32.mrf.mxu0
  %v605 = vadd.f32 0.0, %v604
  %v606 = vpop.f32.mrf.mxu0
  %v607 = vadd.f32 0.0, %v606
  %608 = vmatmul.bf16.gmra.mxu0 %v343
  %v609 = vpop.f32.mrf.mxu0
  %v610 = vadd.f32 0.0, %v609
  %v611 = vpop.f32.mrf.mxu0
  %v612 = vadd.f32 0.0, %v611
  %613 = vmatmul.bf16.gmra.mxu0 %v345
  %v614 = vpop.f32.mrf.mxu0
  %v615 = vadd.f32 0.0, %v614
  %v616 = vpop.f32.mrf.mxu0
  %v617 = vadd.f32 0.0, %v616
  %618 = vmatmul.bf16.gmra.mxu0 %v347
  %v619 = vpop.f32.mrf.mxu0
  %v620 = vadd.f32 0.0, %v619
  %v621 = vpop.f32.mrf.mxu0
  %v622 = vadd.f32 0.0, %v621
  %623 = vmatmul.bf16.gmra.mxu0 %v349
  %v624 = vpop.f32.mrf.mxu0
  %v625 = vadd.f32 0.0, %v624
  %v626 = vpop.f32.mrf.mxu0
  %v627 = vadd.f32 0.0, %v626
  %628 = vmatmul.bf16.gmra.mxu0 %v351
  %v629 = vpop.f32.mrf.mxu0
  %v630 = vadd.f32 0.0, %v629
  %v631 = vpop.f32.mrf.mxu0
  %v632 = vadd.f32 0.0, %v631
  %633 = vdwg.mxu0
  %634 = vmatpush.bf16.msra.mxu0 %v511
  %635 = vmatpush.bf16.msra.mxu0 %v509
  %636 = vmatpush.bf16.msra.mxu0 %v507
  %637 = vmatpush.bf16.msra.mxu0 %v505
  %638 = vmatpush.bf16.msra.mxu0 %v503
  %639 = vmatpush.bf16.msra.mxu0 %v501
  %640 = vmatpush.bf16.msra.mxu0 %v499
  %641 = vmatpush.bf16.msra.mxu0 %v497
  %642 = vmatmul.bf16.gmra.mxu0 %v322
  %v643 = vpop.f32.mrf.mxu0
  %v644 = vadd.f32 %v555, %v643
  %v645 = vpop.f32.mrf.mxu0
  %v646 = vadd.f32 %v557, %v645
  %647 = vmatmul.bf16.gmra.mxu0 %v324
  %v648 = vpop.f32.mrf.mxu0
  %v649 = vadd.f32 %v560, %v648
  %v650 = vpop.f32.mrf.mxu0
  %v651 = vadd.f32 %v562, %v650
  %652 = vmatmul.bf16.gmra.mxu0 %v326
  %v653 = vpop.f32.mrf.mxu0
  %v654 = vadd.f32 %v565, %v653
  %v655 = vpop.f32.mrf.mxu0
  %v656 = vadd.f32 %v567, %v655
  %657 = vmatmul.bf16.gmra.mxu0 %v328
  %v658 = vpop.f32.mrf.mxu0
  %v659 = vadd.f32 %v570, %v658
  %v660 = vpop.f32.mrf.mxu0
  %v661 = vadd.f32 %v572, %v660
  %662 = vmatmul.bf16.gmra.mxu0 %v330
  %v663 = vpop.f32.mrf.mxu0
  %v664 = vadd.f32 %v575, %v663
  %v665 = vpop.f32.mrf.mxu0
  %v666 = vadd.f32 %v577, %v665
  %667 = vmatmul.bf16.gmra.mxu0 %v332
  %v668 = vpop.f32.mrf.mxu0
  %v669 = vadd.f32 %v580, %v668
  %v670 = vpop.f32.mrf.mxu0
  %v671 = vadd.f32 %v582, %v670
  %672 = vmatmul.bf16.gmra.mxu0 %v334
  %v673 = vpop.f32.mrf.mxu0
  %v674 = vadd.f32 %v585, %v673
  %v675 = vpop.f32.mrf.mxu0
  %v676 = vadd.f32 %v587, %v675
  %677 = vmatmul.bf16.gmra.mxu0 %v336
  %v678 = vpop.f32.mrf.mxu0
  %v679 = vadd.f32 %v590, %v678
  %v680 = vpop.f32.mrf.mxu0
  %v681 = vadd.f32 %v592, %v680
  %682 = vmatmul.bf16.gmra.mxu0 %v338
  %v683 = vpop.f32.mrf.mxu0
  %v684 = vadd.f32 %v595, %v683
  %v685 = vpop.f32.mrf.mxu0
  %v686 = vadd.f32 %v597, %v685
  %687 = vmatmul.bf16.gmra.mxu0 %v340
  %v688 = vpop.f32.mrf.mxu0
  %v689 = vadd.f32 %v600, %v688
  %v690 = vpop.f32.mrf.mxu0
  %v691 = vadd.f32 %v602, %v690
  %692 = vmatmul.bf16.gmra.mxu0 %v342
  %v693 = vpop.f32.mrf.mxu0
  %v694 = vadd.f32 %v605, %v693
  %v695 = vpop.f32.mrf.mxu0
  %v696 = vadd.f32 %v607, %v695
  %697 = vmatmul.bf16.gmra.mxu0 %v344
  %v698 = vpop.f32.mrf.mxu0
  %v699 = vadd.f32 %v610, %v698
  %v700 = vpop.f32.mrf.mxu0
  %v701 = vadd.f32 %v612, %v700
  %702 = vmatmul.bf16.gmra.mxu0 %v346
  %v703 = vpop.f32.mrf.mxu0
  %v704 = vadd.f32 %v615, %v703
  %v705 = vpop.f32.mrf.mxu0
  %v706 = vadd.f32 %v617, %v705
  %707 = vmatmul.bf16.gmra.mxu0 %v348
  %v708 = vpop.f32.mrf.mxu0
  %v709 = vadd.f32 %v620, %v708
  %v710 = vpop.f32.mrf.mxu0
  %v711 = vadd.f32 %v622, %v710
  %712 = vmatmul.bf16.gmra.mxu0 %v350
  %v713 = vpop.f32.mrf.mxu0
  %v714 = vadd.f32 %v625, %v713
  %v715 = vpop.f32.mrf.mxu0
  %v716 = vadd.f32 %v627, %v715
  %717 = vmatmul.bf16.gmra.mxu0 %v352
  %v718 = vpop.f32.mrf.mxu0
  %v719 = vadd.f32 %v630, %v718
  %v720 = vpop.f32.mrf.mxu0
  %v721 = vadd.f32 %v632, %v720
  %722 = vdwg.mxu0
  %723 = vmatpush.bf16.msra.mxu0 %v496
  %724 = vmatpush.bf16.msra.mxu0 %v494
  %725 = vmatpush.bf16.msra.mxu0 %v492
  %726 = vmatpush.bf16.msra.mxu0 %v490
  %727 = vmatpush.bf16.msra.mxu0 %v488
  %728 = vmatpush.bf16.msra.mxu0 %v486
  %729 = vmatpush.bf16.msra.mxu0 %v484
  %730 = vmatpush.bf16.msra.mxu0 %v482
  %731 = vmatmul.bf16.gmra.mxu0 %v321
  %v732 = vpop.f32.mrf.mxu0
  %v733 = vadd.f32 0.0, %v732
  %v734 = vpop.f32.mrf.mxu0
  %v735 = vadd.f32 0.0, %v734
  %736 = vmatmul.bf16.gmra.mxu0 %v323
  %v737 = vpop.f32.mrf.mxu0
  %v738 = vadd.f32 0.0, %v737
  %v739 = vpop.f32.mrf.mxu0
  %v740 = vadd.f32 0.0, %v739
  %741 = vmatmul.bf16.gmra.mxu0 %v325
  %v742 = vpop.f32.mrf.mxu0
  %v743 = vadd.f32 0.0, %v742
  %v744 = vpop.f32.mrf.mxu0
  %v745 = vadd.f32 0.0, %v744
  %746 = vmatmul.bf16.gmra.mxu0 %v327
  %v747 = vpop.f32.mrf.mxu0
  %v748 = vadd.f32 0.0, %v747
  %v749 = vpop.f32.mrf.mxu0
  %v750 = vadd.f32 0.0, %v749
  %751 = vmatmul.bf16.gmra.mxu0 %v329
  %v752 = vpop.f32.mrf.mxu0
  %v753 = vadd.f32 0.0, %v752
  %v754 = vpop.f32.mrf.mxu0
  %v755 = vadd.f32 0.0, %v754
  %756 = vmatmul.bf16.gmra.mxu0 %v331
  %v757 = vpop.f32.mrf.mxu0
  %v758 = vadd.f32 0.0, %v757
  %v759 = vpop.f32.mrf.mxu0
  %v760 = vadd.f32 0.0, %v759
  %761 = vmatmul.bf16.gmra.mxu0 %v333
  %v762 = vpop.f32.mrf.mxu0
  %v763 = vadd.f32 0.0, %v762
  %v764 = vpop.f32.mrf.mxu0
  %v765 = vadd.f32 0.0, %v764
  %766 = vmatmul.bf16.gmra.mxu0 %v335
  %v767 = vpop.f32.mrf.mxu0
  %v768 = vadd.f32 0.0, %v767
  %v769 = vpop.f32.mrf.mxu0
  %v770 = vadd.f32 0.0, %v769
  %771 = vmatmul.bf16.gmra.mxu0 %v337
  %v772 = vpop.f32.mrf.mxu0
  %v773 = vadd.f32 0.0, %v772
  %v774 = vpop.f32.mrf.mxu0
  %v775 = vadd.f32 0.0, %v774
  %776 = vmatmul.bf16.gmra.mxu0 %v339
  %v777 = vpop.f32.mrf.mxu0
  %v778 = vadd.f32 0.0, %v777
  %v779 = vpop.f32.mrf.mxu0
  %v780 = vadd.f32 0.0, %v779
  %781 = vmatmul.bf16.gmra.mxu0 %v341
  %v782 = vpop.f32.mrf.mxu0
  %v783 = vadd.f32 0.0, %v782
  %v784 = vpop.f32.mrf.mxu0
  %v785 = vadd.f32 0.0, %v784
  %786 = vmatmul.bf16.gmra.mxu0 %v343
  %v787 = vpop.f32.mrf.mxu0
  %v788 = vadd.f32 0.0, %v787
  %v789 = vpop.f32.mrf.mxu0
  %v790 = vadd.f32 0.0, %v789
  %791 = vmatmul.bf16.gmra.mxu0 %v345
  %v792 = vpop.f32.mrf.mxu0
  %v793 = vadd.f32 0.0, %v792
  %v794 = vpop.f32.mrf.mxu0
  %v795 = vadd.f32 0.0, %v794
  %796 = vmatmul.bf16.gmra.mxu0 %v347
  %v797 = vpop.f32.mrf.mxu0
  %v798 = vadd.f32 0.0, %v797
  %v799 = vpop.f32.mrf.mxu0
  %v800 = vadd.f32 0.0, %v799
  %801 = vmatmul.bf16.gmra.mxu0 %v349
  %v802 = vpop.f32.mrf.mxu0
  %v803 = vadd.f32 0.0, %v802
  %v804 = vpop.f32.mrf.mxu0
  %v805 = vadd.f32 0.0, %v804
  %806 = vmatmul.bf16.gmra.mxu0 %v351
  %v807 = vpop.f32.mrf.mxu0
  %v808 = vadd.f32 0.0, %v807
  %v809 = vpop.f32.mrf.mxu0
  %v810 = vadd.f32 0.0, %v809
  %811 = vdwg.mxu0
  %812 = vmatpush.bf16.msra.mxu0 %v512
  %813 = vmatpush.bf16.msra.mxu0 %v510
  %814 = vmatpush.bf16.msra.mxu0 %v508
  %815 = vmatpush.bf16.msra.mxu0 %v506
  %816 = vmatpush.bf16.msra.mxu0 %v504
  %817 = vmatpush.bf16.msra.mxu0 %v502
  %818 = vmatpush.bf16.msra.mxu0 %v500
  %819 = vmatpush.bf16.msra.mxu0 %v498
  %820 = vmatmul.bf16.gmra.mxu0 %v322
  %v821 = vpop.f32.mrf.mxu0
  %v822 = vadd.f32 %v733, %v821
  %v823 = vpop.f32.mrf.mxu0
  %v824 = vadd.f32 %v735, %v823
  %825 = vmatmul.bf16.gmra.mxu0 %v324
  %v826 = vpop.f32.mrf.mxu0
  %v827 = vadd.f32 %v738, %v826
  %v828 = vpop.f32.mrf.mxu0
  %v829 = vadd.f32 %v740, %v828
  %830 = vmatmul.bf16.gmra.mxu0 %v326
  %v831 = vpop.f32.mrf.mxu0
  %v832 = vadd.f32 %v743, %v831
  %v833 = vpop.f32.mrf.mxu0
  %v834 = vadd.f32 %v745, %v833
  %835 = vmatmul.bf16.gmra.mxu0 %v328
  %v836 = vpop.f32.mrf.mxu0
  %v837 = vadd.f32 %v748, %v836
  %v838 = vpop.f32.mrf.mxu0
  %v839 = vadd.f32 %v750, %v838
  %840 = vmatmul.bf16.gmra.mxu0 %v330
  %v841 = vpop.f32.mrf.mxu0
  %v842 = vadd.f32 %v753, %v841
  %v843 = vpop.f32.mrf.mxu0
  %v844 = vadd.f32 %v755, %v843
  %845 = vmatmul.bf16.gmra.mxu0 %v332
  %v846 = vpop.f32.mrf.mxu0
  %v847 = vadd.f32 %v758, %v846
  %v848 = vpop.f32.mrf.mxu0
  %v849 = vadd.f32 %v760, %v848
  %850 = vmatmul.bf16.gmra.mxu0 %v334
  %v851 = vpop.f32.mrf.mxu0
  %v852 = vadd.f32 %v763, %v851
  %v853 = vpop.f32.mrf.mxu0
  %v854 = vadd.f32 %v765, %v853
  %855 = vmatmul.bf16.gmra.mxu0 %v336
  %v856 = vpop.f32.mrf.mxu0
  %v857 = vadd.f32 %v768, %v856
  %v858 = vpop.f32.mrf.mxu0
  %v859 = vadd.f32 %v770, %v858
  %860 = vmatmul.bf16.gmra.mxu0 %v338
  %v861 = vpop.f32.mrf.mxu0
  %v862 = vadd.f32 %v773, %v861
  %v863 = vpop.f32.mrf.mxu0
  %v864 = vadd.f32 %v775, %v863
  %865 = vmatmul.bf16.gmra.mxu0 %v340
  %v866 = vpop.f32.mrf.mxu0
  %v867 = vadd.f32 %v778, %v866
  %v868 = vpop.f32.mrf.mxu0
  %v869 = vadd.f32 %v780, %v868
  %870 = vmatmul.bf16.gmra.mxu0 %v342
  %v871 = vpop.f32.mrf.mxu0
  %v872 = vadd.f32 %v783, %v871
  %v873 = vpop.f32.mrf.mxu0
  %v874 = vadd.f32 %v785, %v873
  %875 = vmatmul.bf16.gmra.mxu0 %v344
  %v876 = vpop.f32.mrf.mxu0
  %v877 = vadd.f32 %v788, %v876
  %v878 = vpop.f32.mrf.mxu0
  %v879 = vadd.f32 %v790, %v878
  %880 = vmatmul.bf16.gmra.mxu0 %v346
  %v881 = vpop.f32.mrf.mxu0
  %v882 = vadd.f32 %v793, %v881
  %v883 = vpop.f32.mrf.mxu0
  %v884 = vadd.f32 %v795, %v883
  %885 = vmatmul.bf16.gmra.mxu0 %v348
  %v886 = vpop.f32.mrf.mxu0
  %v887 = vadd.f32 %v798, %v886
  %v888 = vpop.f32.mrf.mxu0
  %v889 = vadd.f32 %v800, %v888
  %890 = vmatmul.bf16.gmra.mxu0 %v350
  %v891 = vpop.f32.mrf.mxu0
  %v892 = vadd.f32 %v803, %v891
  %v893 = vpop.f32.mrf.mxu0
  %v894 = vadd.f32 %v805, %v893
  %895 = vmatmul.bf16.gmra.mxu0 %v352
  %v896 = vpop.f32.mrf.mxu0
  %v897 = vadd.f32 %v808, %v896
  %v898 = vpop.f32.mrf.mxu0
  %v899 = vadd.f32 %v810, %v898
  %900 = vdwg.mxu0
  %v901 = vadd.f32 %v129, %v644
  %v902 = vadd.f32 %v130, %v822
  %v903 = vadd.f32 %v131, %v646
  %v904 = vadd.f32 %v132, %v824
  %v905 = vadd.f32 %v133, %v649
  %v906 = vadd.f32 %v134, %v827
  %v907 = vadd.f32 %v135, %v651
  %v908 = vadd.f32 %v136, %v829
  %v909 = vadd.f32 %v137, %v654
  %v910 = vadd.f32 %v138, %v832
  %v911 = vadd.f32 %v139, %v656
  %v912 = vadd.f32 %v140, %v834
  %v913 = vadd.f32 %v141, %v659
  %v914 = vadd.f32 %v142, %v837
  %v915 = vadd.f32 %v143, %v661
  %v916 = vadd.f32 %v144, %v839
  %v917 = vadd.f32 %v145, %v664
  %v918 = vadd.f32 %v146, %v842
  %v919 = vadd.f32 %v147, %v666
  %v920 = vadd.f32 %v148, %v844
  %v921 = vadd.f32 %v149, %v669
  %v922 = vadd.f32 %v150, %v847
  %v923 = vadd.f32 %v151, %v671
  %v924 = vadd.f32 %v152, %v849
  %v925 = vadd.f32 %v153, %v674
  %v926 = vadd.f32 %v154, %v852
  %v927 = vadd.f32 %v155, %v676
  %v928 = vadd.f32 %v156, %v854
  %v929 = vadd.f32 %v157, %v679
  %v930 = vadd.f32 %v158, %v857
  %v931 = vadd.f32 %v159, %v681
  %v932 = vadd.f32 %v160, %v859
  %v933 = vadd.f32 %v161, %v684
  %v934 = vadd.f32 %v162, %v862
  %v935 = vadd.f32 %v163, %v686
  %v936 = vadd.f32 %v164, %v864
  %v937 = vadd.f32 %v165, %v689
  %v938 = vadd.f32 %v166, %v867
  %v939 = vadd.f32 %v167, %v691
  %v940 = vadd.f32 %v168, %v869
  %v941 = vadd.f32 %v169, %v694
  %v942 = vadd.f32 %v170, %v872
  %v943 = vadd.f32 %v171, %v696
  %v944 = vadd.f32 %v172, %v874
  %v945 = vadd.f32 %v173, %v699
  %v946 = vadd.f32 %v174, %v877
  %v947 = vadd.f32 %v175, %v701
  %v948 = vadd.f32 %v176, %v879
  %v949 = vadd.f32 %v177, %v704
  %v950 = vadd.f32 %v178, %v882
  %v951 = vadd.f32 %v179, %v706
  %v952 = vadd.f32 %v180, %v884
  %v953 = vadd.f32 %v181, %v709
  %v954 = vadd.f32 %v182, %v887
  %v955 = vadd.f32 %v183, %v711
  %v956 = vadd.f32 %v184, %v889
  %v957 = vadd.f32 %v185, %v714
  %v958 = vadd.f32 %v186, %v892
  %v959 = vadd.f32 %v187, %v716
  %v960 = vadd.f32 %v188, %v894
  %v961 = vadd.f32 %v189, %v719
  %v962 = vadd.f32 %v190, %v897
  %v963 = vadd.f32 %v191, %v721
  %v964 = vadd.f32 %v192, %v899
  %965 = vst [vmem:[#allocation2] sm:$0xff] %v901
  %966 = vst [vmem:[#allocation2 + $0x8] sm:$0xff] %v902
  %967 = vst [vmem:[#allocation2 + $0x10] sm:$0xff] %v903
  %968 = vst [vmem:[#allocation2 + $0x18] sm:$0xff] %v904
  %969 = vst [vmem:[#allocation2 + $0x20] sm:$0xff] %v905
  %970 = vst [vmem:[#allocation2 + $0x28] sm:$0xff] %v906
  %971 = vst [vmem:[#allocation2 + $0x30] sm:$0xff] %v907
  %972 = vst [vmem:[#allocation2 + $0x38] sm:$0xff] %v908
  %973 = vst [vmem:[#allocation2 + $0x40] sm:$0xff] %v909
  %974 = vst [vmem:[#allocation2 + $0x48] sm:$0xff] %v910
  %975 = vst [vmem:[#allocation2 + $0x50] sm:$0xff] %v911
  %976 = vst [vmem:[#allocation2 + $0x58] sm:$0xff] %v912
  %977 = vst [vmem:[#allocation2 + $0x60] sm:$0xff] %v913
  %978 = vst [vmem:[#allocation2 + $0x68] sm:$0xff] %v914
  %979 = vst [vmem:[#allocation2 + $0x70] sm:$0xff] %v915
  %980 = vst [vmem:[#allocation2 + $0x78] sm:$0xff] %v916
  %981 = vst [vmem:[#allocation2 + $0x80] sm:$0xff] %v917
  %982 = vst [vmem:[#allocation2 + $0x88] sm:$0xff] %v918
  %983 = vst [vmem:[#allocation2 + $0x90] sm:$0xff] %v919
  %984 = vst [vmem:[#allocation2 + $0x98] sm:$0xff] %v920
  %985 = vst [vmem:[#allocation2 + $0xa0] sm:$0xff] %v921
  %986 = vst [vmem:[#allocation2 + $0xa8] sm:$0xff] %v922
  %987 = vst [vmem:[#allocation2 + $0xb0] sm:$0xff] %v923
  %988 = vst [vmem:[#allocation2 + $0xb8] sm:$0xff] %v924
  %989 = vst [vmem:[#allocation2 + $0xc0] sm:$0xff] %v925
  %990 = vst [vmem:[#allocation2 + $0xc8] sm:$0xff] %v926
  %991 = vst [vmem:[#allocation2 + $0xd0] sm:$0xff] %v927
  %992 = vst [vmem:[#allocation2 + $0xd8] sm:$0xff] %v928
  %993 = vst [vmem:[#allocation2 + $0xe0] sm:$0xff] %v929
  %994 = vst [vmem:[#allocation2 + $0xe8] sm:$0xff] %v930
  %995 = vst [vmem:[#allocation2 + $0xf0] sm:$0xff] %v931
  %996 = vst [vmem:[#allocation2 + $0xf8] sm:$0xff] %v932
  %997 = vst [vmem:[#allocation2 + $0x100] sm:$0xff] %v933
  %998 = vst [vmem:[#allocation2 + $0x108] sm:$0xff] %v934
  %999 = vst [vmem:[#allocation2 + $0x110] sm:$0xff] %v935
  %1000 = vst [vmem:[#allocation2 + $0x118] sm:$0xff] %v936
  %1001 = vst [vmem:[#allocation2 + $0x120] sm:$0xff] %v937
  %1002 = vst [vmem:[#allocation2 + $0x128] sm:$0xff] %v938
  %1003 = vst [vmem:[#allocation2 + $0x130] sm:$0xff] %v939
  %1004 = vst [vmem:[#allocation2 + $0x138] sm:$0xff] %v940
  %1005 = vst [vmem:[#allocation2 + $0x140] sm:$0xff] %v941
  %1006 = vst [vmem:[#allocation2 + $0x148] sm:$0xff] %v942
  %1007 = vst [vmem:[#allocation2 + $0x150] sm:$0xff] %v943
  %1008 = vst [vmem:[#allocation2 + $0x158] sm:$0xff] %v944
  %1009 = vst [vmem:[#allocation2 + $0x160] sm:$0xff] %v945
  %1010 = vst [vmem:[#allocation2 + $0x168] sm:$0xff] %v946
  %1011 = vst [vmem:[#allocation2 + $0x170] sm:$0xff] %v947
  %1012 = vst [vmem:[#allocation2 + $0x178] sm:$0xff] %v948
  %1013 = vst [vmem:[#allocation2 + $0x180] sm:$0xff] %v949
  %1014 = vst [vmem:[#allocation2 + $0x188] sm:$0xff] %v950
  %1015 = vst [vmem:[#allocation2 + $0x190] sm:$0xff] %v951
  %1016 = vst [vmem:[#allocation2 + $0x198] sm:$0xff] %v952
  %1017 = vst [vmem:[#allocation2 + $0x1a0] sm:$0xff] %v953
  %1018 = vst [vmem:[#allocation2 + $0x1a8] sm:$0xff] %v954
  %1019 = vst [vmem:[#allocation2 + $0x1b0] sm:$0xff] %v955
  %1020 = vst [vmem:[#allocation2 + $0x1b8] sm:$0xff] %v956
  %1021 = vst [vmem:[#allocation2 + $0x1c0] sm:$0xff] %v957
  %1022 = vst [vmem:[#allocation2 + $0x1c8] sm:$0xff] %v958
  %1023 = vst [vmem:[#allocation2 + $0x1d0] sm:$0xff] %v959
  %1024 = vst [vmem:[#allocation2 + $0x1d8] sm:$0xff] %v960
  %1025 = vst [vmem:[#allocation2 + $0x1e0] sm:$0xff] %v961
  %1026 = vst [vmem:[#allocation2 + $0x1e8] sm:$0xff] %v962
  %1027 = vst [vmem:[#allocation2 + $0x1f0] sm:$0xff] %v963
  %1028 = vst [vmem:[#allocation2 + $0x1f8] sm:$0xff] %v964
  // Predicated region
  $region30: #{unitary_gcn_forward.5} parent=0 // pred_check
    %p1029 = pneg %p23
  $region31: #{unitary_gcn_forward.5} parent=0 // pred_check_branch
    %1031 = sbr.rel (%p1029) target = $region33
  $region32: #{unitary_gcn_forward.5} parent=0 // pred_region
    %v1032 = vld [vmem:[#allocation2] sm:$0xff]
    %v1033 = vld [vmem:[#allocation2 + $0x10] sm:$0xff]
    %v1034 = vld [vmem:[#allocation2 + $0x20] sm:$0xff]
    %v1035 = vld [vmem:[#allocation2 + $0x30] sm:$0xff]
    %v1036 = vld [vmem:[#allocation2 + $0x40] sm:$0xff]
    %v1037 = vld [vmem:[#allocation2 + $0x50] sm:$0xff]
    %v1038 = vld [vmem:[#allocation2 + $0x60] sm:$0xff]
    %v1039 = vld [vmem:[#allocation2 + $0x70] sm:$0xff]
    %v1040 = vld [vmem:[#allocation2 + $0x80] sm:$0xff]
    %v1041 = vld [vmem:[#allocation2 + $0x90] sm:$0xff]
    %v1042 = vld [vmem:[#allocation2 + $0xa0] sm:$0xff]
    %v1043 = vld [vmem:[#allocation2 + $0xb0] sm:$0xff]
    %v1044 = vld [vmem:[#allocation2 + $0xc0] sm:$0xff]
    %v1045 = vld [vmem:[#allocation2 + $0xd0] sm:$0xff]
    %v1046 = vld [vmem:[#allocation2 + $0xe0] sm:$0xff]
    %v1047 = vld [vmem:[#allocation2 + $0xf0] sm:$0xff]
    %v1048 = vld [vmem:[#allocation2 + $0x100] sm:$0xff]
    %v1049 = vld [vmem:[#allocation2 + $0x110] sm:$0xff]
    %v1050 = vld [vmem:[#allocation2 + $0x120] sm:$0xff]
    %v1051 = vld [vmem:[#allocation2 + $0x130] sm:$0xff]
    %v1052 = vld [vmem:[#allocation2 + $0x140] sm:$0xff]
    %v1053 = vld [vmem:[#allocation2 + $0x150] sm:$0xff]
    %v1054 = vld [vmem:[#allocation2 + $0x160] sm:$0xff]
    %v1055 = vld [vmem:[#allocation2 + $0x170] sm:$0xff]
    %v1056 = vld [vmem:[#allocation2 + $0x180] sm:$0xff]
    %v1057 = vld [vmem:[#allocation2 + $0x190] sm:$0xff]
    %v1058 = vld [vmem:[#allocation2 + $0x1a0] sm:$0xff]
    %v1059 = vld [vmem:[#allocation2 + $0x1b0] sm:$0xff]
    %v1060 = vld [vmem:[#allocation2 + $0x1c0] sm:$0xff]
    %v1061 = vld [vmem:[#allocation2 + $0x1d0] sm:$0xff]
    %v1062 = vld [vmem:[#allocation2 + $0x1e0] sm:$0xff]
    %v1063 = vld [vmem:[#allocation2 + $0x1f0] sm:$0xff]
    %v1064 = vpack.c.bf16 %v1033, %v1032
    %v1065 = vpack.c.bf16 %v1035, %v1034
    %v1066 = vpack.c.bf16 %v1037, %v1036
    %v1067 = vpack.c.bf16 %v1039, %v1038
    %v1068 = vpack.c.bf16 %v1041, %v1040
    %v1069 = vpack.c.bf16 %v1043, %v1042
    %v1070 = vpack.c.bf16 %v1045, %v1044
    %v1071 = vpack.c.bf16 %v1047, %v1046
    %v1072 = vpack.c.bf16 %v1049, %v1048
    %v1073 = vpack.c.bf16 %v1051, %v1050
    %v1074 = vpack.c.bf16 %v1053, %v1052
    %v1075 = vpack.c.bf16 %v1055, %v1054
    %v1076 = vpack.c.bf16 %v1057, %v1056
    %v1077 = vpack.c.bf16 %v1059, %v1058
    %v1078 = vpack.c.bf16 %v1061, %v1060
    %v1079 = vpack.c.bf16 %v1063, %v1062
    %v1080 = vld [vmem:[%s2] sm:$0xf]
    %v1081 = vld [vmem:[%s2 + $0x4] sm:$0xf]
    %v1082 = vld [vmem:[%s2 + $0x8] sm:$0xf]
    %v1083 = vld [vmem:[%s2 + $0xc] sm:$0xf]
    %v1084 = vld [vmem:[%s2 + $0x10] sm:$0xf]
    %v1085 = vld [vmem:[%s2 + $0x14] sm:$0xf]
    %v1086 = vld [vmem:[%s2 + $0x18] sm:$0xf]
    %v1087 = vld [vmem:[%s2 + $0x1c] sm:$0xf]
    %v1088 = vld [vmem:[%s2 + $0x20] sm:$0xf]
    %v1089 = vld [vmem:[%s2 + $0x24] sm:$0xf]
    %v1090 = vld [vmem:[%s2 + $0x28] sm:$0xf]
    %v1091 = vld [vmem:[%s2 + $0x2c] sm:$0xf]
    %v1092 = vld [vmem:[%s2 + $0x30] sm:$0xf]
    %v1093 = vld [vmem:[%s2 + $0x34] sm:$0xf]
    %v1094 = vld [vmem:[%s2 + $0x38] sm:$0xf]
    %v1095 = vld [vmem:[%s2 + $0x3c] sm:$0xf]
    %v1112 = vunpack.c.l.b16 %v1080
    %v1113 = vunpack.c.l.b16 %v1081
    %v1114 = vunpack.c.l.b16 %v1082
    %v1115 = vunpack.c.l.b16 %v1083
    %v1116 = vunpack.c.l.b16 %v1084
    %v1117 = vunpack.c.l.b16 %v1085
    %v1118 = vunpack.c.l.b16 %v1086
    %v1119 = vunpack.c.l.b16 %v1087
    %v1120 = vunpack.c.l.b16 %v1088
    %v1121 = vunpack.c.l.b16 %v1089
    %v1122 = vunpack.c.l.b16 %v1090
    %v1123 = vunpack.c.l.b16 %v1091
    %v1124 = vunpack.c.l.b16 %v1092
    %v1125 = vunpack.c.l.b16 %v1093
    %v1126 = vunpack.c.l.b16 %v1094
    %v1127 = vunpack.c.l.b16 %v1095
    %v1128 = vpack.c.b16 %v1113, %v1112
    %v1129 = vpack.c.b16 %v1115, %v1114
    %v1130 = vpack.c.b16 %v1117, %v1116
    %v1131 = vpack.c.b16 %v1119, %v1118
    %v1132 = vpack.c.b16 %v1121, %v1120
    %v1133 = vpack.c.b16 %v1123, %v1122
    %v1134 = vpack.c.b16 %v1125, %v1124
    %v1135 = vpack.c.b16 %v1127, %v1126
    %1144 = vmatpush.bf16.msra.mxu0 %v1135
    %1145 = vmatpush.bf16.msra.mxu0 %v1134
    %1146 = vmatpush.bf16.msra.mxu0 %v1133
    %1147 = vmatpush.bf16.msra.mxu0 %v1132
    %1148 = vmatpush.bf16.msra.mxu0 %v1131
    %1149 = vmatpush.bf16.msra.mxu0 %v1130
    %1150 = vmatpush.bf16.msra.mxu0 %v1129
    %1151 = vmatpush.bf16.msra.mxu0 %v1128
    %1152 = vmatmul.bf16.gmra.mxu0 %v1064
    %v1153 = vpop.f32.mrf.mxu0
    %v1154 = vadd.f32 0.0, %v1153
    %v1155 = vpop.f32.mrf.mxu0
    %v1156 = vadd.f32 0.0, %v1155
    %1157 = vmatmul.bf16.gmra.mxu0 %v1065
    %v1158 = vpop.f32.mrf.mxu0
    %v1159 = vadd.f32 0.0, %v1158
    %v1160 = vpop.f32.mrf.mxu0
    %v1161 = vadd.f32 0.0, %v1160
    %1162 = vmatmul.bf16.gmra.mxu0 %v1066
    %v1163 = vpop.f32.mrf.mxu0
    %v1164 = vadd.f32 0.0, %v1163
    %v1165 = vpop.f32.mrf.mxu0
    %v1166 = vadd.f32 0.0, %v1165
    %1167 = vmatmul.bf16.gmra.mxu0 %v1067
    %v1168 = vpop.f32.mrf.mxu0
    %v1169 = vadd.f32 0.0, %v1168
    %v1170 = vpop.f32.mrf.mxu0
    %v1171 = vadd.f32 0.0, %v1170
    %1172 = vmatmul.bf16.gmra.mxu0 %v1068
    %v1173 = vpop.f32.mrf.mxu0
    %v1174 = vadd.f32 0.0, %v1173
    %v1175 = vpop.f32.mrf.mxu0
    %v1176 = vadd.f32 0.0, %v1175
    %1177 = vmatmul.bf16.gmra.mxu0 %v1069
    %v1178 = vpop.f32.mrf.mxu0
    %v1179 = vadd.f32 0.0, %v1178
    %v1180 = vpop.f32.mrf.mxu0
    %v1181 = vadd.f32 0.0, %v1180
    %1182 = vmatmul.bf16.gmra.mxu0 %v1070
    %v1183 = vpop.f32.mrf.mxu0
    %v1184 = vadd.f32 0.0, %v1183
    %v1185 = vpop.f32.mrf.mxu0
    %v1186 = vadd.f32 0.0, %v1185
    %1187 = vmatmul.bf16.gmra.mxu0 %v1071
    %v1188 = vpop.f32.mrf.mxu0
    %v1189 = vadd.f32 0.0, %v1188
    %v1190 = vpop.f32.mrf.mxu0
    %v1191 = vadd.f32 0.0, %v1190
    %1192 = vmatmul.bf16.gmra.mxu0 %v1072
    %v1193 = vpop.f32.mrf.mxu0
    %v1194 = vadd.f32 0.0, %v1193
    %v1195 = vpop.f32.mrf.mxu0
    %v1196 = vadd.f32 0.0, %v1195
    %1197 = vmatmul.bf16.gmra.mxu0 %v1073
    %v1198 = vpop.f32.mrf.mxu0
    %v1199 = vadd.f32 0.0, %v1198
    %v1200 = vpop.f32.mrf.mxu0
    %v1201 = vadd.f32 0.0, %v1200
    %1202 = vmatmul.bf16.gmra.mxu0 %v1074
    %v1203 = vpop.f32.mrf.mxu0
    %v1204 = vadd.f32 0.0, %v1203
    %v1205 = vpop.f32.mrf.mxu0
    %v1206 = vadd.f32 0.0, %v1205
    %1207 = vmatmul.bf16.gmra.mxu0 %v1075
    %v1208 = vpop.f32.mrf.mxu0
    %v1209 = vadd.f32 0.0, %v1208
    %v1210 = vpop.f32.mrf.mxu0
    %v1211 = vadd.f32 0.0, %v1210
    %1212 = vmatmul.bf16.gmra.mxu0 %v1076
    %v1213 = vpop.f32.mrf.mxu0
    %v1214 = vadd.f32 0.0, %v1213
    %v1215 = vpop.f32.mrf.mxu0
    %v1216 = vadd.f32 0.0, %v1215
    %1217 = vmatmul.bf16.gmra.mxu0 %v1077
    %v1218 = vpop.f32.mrf.mxu0
    %v1219 = vadd.f32 0.0, %v1218
    %v1220 = vpop.f32.mrf.mxu0
    %v1221 = vadd.f32 0.0, %v1220
    %1222 = vmatmul.bf16.gmra.mxu0 %v1078
    %v1223 = vpop.f32.mrf.mxu0
    %v1224 = vadd.f32 0.0, %v1223
    %v1225 = vpop.f32.mrf.mxu0
    %v1226 = vadd.f32 0.0, %v1225
    %1227 = vmatmul.bf16.gmra.mxu0 %v1079
    %v1228 = vpop.f32.mrf.mxu0
    %v1229 = vadd.f32 0.0, %v1228
    %v1230 = vpop.f32.mrf.mxu0
    %v1231 = vadd.f32 0.0, %v1230
    %1232 = vdwg.mxu0
    %v1233 = vld [vmem:[#allocation2 + $0x8] sm:$0xff]
    %v1234 = vld [vmem:[#allocation2 + $0x18] sm:$0xff]
    %v1235 = vld [vmem:[#allocation2 + $0x28] sm:$0xff]
    %v1236 = vld [vmem:[#allocation2 + $0x38] sm:$0xff]
    %v1237 = vld [vmem:[#allocation2 + $0x48] sm:$0xff]
    %v1238 = vld [vmem:[#allocation2 + $0x58] sm:$0xff]
    %v1239 = vld [vmem:[#allocation2 + $0x68] sm:$0xff]
    %v1240 = vld [vmem:[#allocation2 + $0x78] sm:$0xff]
    %v1241 = vld [vmem:[#allocation2 + $0x88] sm:$0xff]
    %v1242 = vld [vmem:[#allocation2 + $0x98] sm:$0xff]
    %v1243 = vld [vmem:[#allocation2 + $0xa8] sm:$0xff]
    %v1244 = vld [vmem:[#allocation2 + $0xb8] sm:$0xff]
    %v1245 = vld [vmem:[#allocation2 + $0xc8] sm:$0xff]
    %v1246 = vld [vmem:[#allocation2 + $0xd8] sm:$0xff]
    %v1247 = vld [vmem:[#allocation2 + $0xe8] sm:$0xff]
    %v1248 = vld [vmem:[#allocation2 + $0xf8] sm:$0xff]
    %v1249 = vld [vmem:[#allocation2 + $0x108] sm:$0xff]
    %v1250 = vld [vmem:[#allocation2 + $0x118] sm:$0xff]
    %v1251 = vld [vmem:[#allocation2 + $0x128] sm:$0xff]
    %v1252 = vld [vmem:[#allocation2 + $0x138] sm:$0xff]
    %v1253 = vld [vmem:[#allocation2 + $0x148] sm:$0xff]
    %v1254 = vld [vmem:[#allocation2 + $0x158] sm:$0xff]
    %v1255 = vld [vmem:[#allocation2 + $0x168] sm:$0xff]
    %v1256 = vld [vmem:[#allocation2 + $0x178] sm:$0xff]
    %v1257 = vld [vmem:[#allocation2 + $0x188] sm:$0xff]
    %v1258 = vld [vmem:[#allocation2 + $0x198] sm:$0xff]
    %v1259 = vld [vmem:[#allocation2 + $0x1a8] sm:$0xff]
    %v1260 = vld [vmem:[#allocation2 + $0x1b8] sm:$0xff]
    %v1261 = vld [vmem:[#allocation2 + $0x1c8] sm:$0xff]
    %v1262 = vld [vmem:[#allocation2 + $0x1d8] sm:$0xff]
    %v1263 = vld [vmem:[#allocation2 + $0x1e8] sm:$0xff]
    %v1264 = vld [vmem:[#allocation2 + $0x1f8] sm:$0xff]
    %v1265 = vpack.c.bf16 %v1234, %v1233
    %v1266 = vpack.c.bf16 %v1236, %v1235
    %v1267 = vpack.c.bf16 %v1238, %v1237
    %v1268 = vpack.c.bf16 %v1240, %v1239
    %v1269 = vpack.c.bf16 %v1242, %v1241
    %v1270 = vpack.c.bf16 %v1244, %v1243
    %v1271 = vpack.c.bf16 %v1246, %v1245
    %v1272 = vpack.c.bf16 %v1248, %v1247
    %v1273 = vpack.c.bf16 %v1250, %v1249
    %v1274 = vpack.c.bf16 %v1252, %v1251
    %v1275 = vpack.c.bf16 %v1254, %v1253
    %v1276 = vpack.c.bf16 %v1256, %v1255
    %v1277 = vpack.c.bf16 %v1258, %v1257
    %v1278 = vpack.c.bf16 %v1260, %v1259
    %v1279 = vpack.c.bf16 %v1262, %v1261
    %v1280 = vpack.c.bf16 %v1264, %v1263
    %v1281 = vld [vmem:[%s3] sm:$0xf]
    %v1282 = vld [vmem:[%s3 + $0x4] sm:$0xf]
    %v1283 = vld [vmem:[%s3 + $0x8] sm:$0xf]
    %v1284 = vld [vmem:[%s3 + $0xc] sm:$0xf]
    %v1285 = vld [vmem:[%s3 + $0x10] sm:$0xf]
    %v1286 = vld [vmem:[%s3 + $0x14] sm:$0xf]
    %v1287 = vld [vmem:[%s3 + $0x18] sm:$0xf]
    %v1288 = vld [vmem:[%s3 + $0x1c] sm:$0xf]
    %v1289 = vld [vmem:[%s3 + $0x20] sm:$0xf]
    %v1290 = vld [vmem:[%s3 + $0x24] sm:$0xf]
    %v1291 = vld [vmem:[%s3 + $0x28] sm:$0xf]
    %v1292 = vld [vmem:[%s3 + $0x2c] sm:$0xf]
    %v1293 = vld [vmem:[%s3 + $0x30] sm:$0xf]
    %v1294 = vld [vmem:[%s3 + $0x34] sm:$0xf]
    %v1295 = vld [vmem:[%s3 + $0x38] sm:$0xf]
    %v1296 = vld [vmem:[%s3 + $0x3c] sm:$0xf]
    %v1313 = vunpack.c.l.b16 %v1281
    %v1314 = vunpack.c.l.b16 %v1282
    %v1315 = vunpack.c.l.b16 %v1283
    %v1316 = vunpack.c.l.b16 %v1284
    %v1317 = vunpack.c.l.b16 %v1285
    %v1318 = vunpack.c.l.b16 %v1286
    %v1319 = vunpack.c.l.b16 %v1287
    %v1320 = vunpack.c.l.b16 %v1288
    %v1321 = vunpack.c.l.b16 %v1289
    %v1322 = vunpack.c.l.b16 %v1290
    %v1323 = vunpack.c.l.b16 %v1291
    %v1324 = vunpack.c.l.b16 %v1292
    %v1325 = vunpack.c.l.b16 %v1293
    %v1326 = vunpack.c.l.b16 %v1294
    %v1327 = vunpack.c.l.b16 %v1295
    %v1328 = vunpack.c.l.b16 %v1296
    %v1329 = vpack.c.b16 %v1314, %v1313
    %v1330 = vpack.c.b16 %v1316, %v1315
    %v1331 = vpack.c.b16 %v1318, %v1317
    %v1332 = vpack.c.b16 %v1320, %v1319
    %v1333 = vpack.c.b16 %v1322, %v1321
    %v1334 = vpack.c.b16 %v1324, %v1323
    %v1335 = vpack.c.b16 %v1326, %v1325
    %v1336 = vpack.c.b16 %v1328, %v1327
    %1345 = vmatpush.bf16.msra.mxu0 %v1336
    %1346 = vmatpush.bf16.msra.mxu0 %v1335
    %1347 = vmatpush.bf16.msra.mxu0 %v1334
    %1348 = vmatpush.bf16.msra.mxu0 %v1333
    %1349 = vmatpush.bf16.msra.mxu0 %v1332
    %1350 = vmatpush.bf16.msra.mxu0 %v1331
    %1351 = vmatpush.bf16.msra.mxu0 %v1330
    %1352 = vmatpush.bf16.msra.mxu0 %v1329
    %1353 = vmatmul.bf16.gmra.mxu0 %v1265
    %v1354 = vpop.f32.mrf.mxu0
    %v1355 = vadd.f32 0.0, %v1354
    %v1356 = vpop.f32.mrf.mxu0
    %v1357 = vadd.f32 0.0, %v1356
    %1358 = vmatmul.bf16.gmra.mxu0 %v1266
    %v1359 = vpop.f32.mrf.mxu0
    %v1360 = vadd.f32 0.0, %v1359
    %v1361 = vpop.f32.mrf.mxu0
    %v1362 = vadd.f32 0.0, %v1361
    %1363 = vmatmul.bf16.gmra.mxu0 %v1267
    %v1364 = vpop.f32.mrf.mxu0
    %v1365 = vadd.f32 0.0, %v1364
    %v1366 = vpop.f32.mrf.mxu0
    %v1367 = vadd.f32 0.0, %v1366
    %1368 = vmatmul.bf16.gmra.mxu0 %v1268
    %v1369 = vpop.f32.mrf.mxu0
    %v1370 = vadd.f32 0.0, %v1369
    %v1371 = vpop.f32.mrf.mxu0
    %v1372 = vadd.f32 0.0, %v1371
    %1373 = vmatmul.bf16.gmra.mxu0 %v1269
    %v1374 = vpop.f32.mrf.mxu0
    %v1375 = vadd.f32 0.0, %v1374
    %v1376 = vpop.f32.mrf.mxu0
    %v1377 = vadd.f32 0.0, %v1376
    %1378 = vmatmul.bf16.gmra.mxu0 %v1270
    %v1379 = vpop.f32.mrf.mxu0
    %v1380 = vadd.f32 0.0, %v1379
    %v1381 = vpop.f32.mrf.mxu0
    %v1382 = vadd.f32 0.0, %v1381
    %1383 = vmatmul.bf16.gmra.mxu0 %v1271
    %v1384 = vpop.f32.mrf.mxu0
    %v1385 = vadd.f32 0.0, %v1384
    %v1386 = vpop.f32.mrf.mxu0
    %v1387 = vadd.f32 0.0, %v1386
    %1388 = vmatmul.bf16.gmra.mxu0 %v1272
    %v1389 = vpop.f32.mrf.mxu0
    %v1390 = vadd.f32 0.0, %v1389
    %v1391 = vpop.f32.mrf.mxu0
    %v1392 = vadd.f32 0.0, %v1391
    %1393 = vmatmul.bf16.gmra.mxu0 %v1273
    %v1394 = vpop.f32.mrf.mxu0
    %v1395 = vadd.f32 0.0, %v1394
    %v1396 = vpop.f32.mrf.mxu0
    %v1397 = vadd.f32 0.0, %v1396
    %1398 = vmatmul.bf16.gmra.mxu0 %v1274
    %v1399 = vpop.f32.mrf.mxu0
    %v1400 = vadd.f32 0.0, %v1399
    %v1401 = vpop.f32.mrf.mxu0
    %v1402 = vadd.f32 0.0, %v1401
    %1403 = vmatmul.bf16.gmra.mxu0 %v1275
    %v1404 = vpop.f32.mrf.mxu0
    %v1405 = vadd.f32 0.0, %v1404
    %v1406 = vpop.f32.mrf.mxu0
    %v1407 = vadd.f32 0.0, %v1406
    %1408 = vmatmul.bf16.gmra.mxu0 %v1276
    %v1409 = vpop.f32.mrf.mxu0
    %v1410 = vadd.f32 0.0, %v1409
    %v1411 = vpop.f32.mrf.mxu0
    %v1412 = vadd.f32 0.0, %v1411
    %1413 = vmatmul.bf16.gmra.mxu0 %v1277
    %v1414 = vpop.f32.mrf.mxu0
    %v1415 = vadd.f32 0.0, %v1414
    %v1416 = vpop.f32.mrf.mxu0
    %v1417 = vadd.f32 0.0, %v1416
    %1418 = vmatmul.bf16.gmra.mxu0 %v1278
    %v1419 = vpop.f32.mrf.mxu0
    %v1420 = vadd.f32 0.0, %v1419
    %v1421 = vpop.f32.mrf.mxu0
    %v1422 = vadd.f32 0.0, %v1421
    %1423 = vmatmul.bf16.gmra.mxu0 %v1279
    %v1424 = vpop.f32.mrf.mxu0
    %v1425 = vadd.f32 0.0, %v1424
    %v1426 = vpop.f32.mrf.mxu0
    %v1427 = vadd.f32 0.0, %v1426
    %1428 = vmatmul.bf16.gmra.mxu0 %v1280
    %v1429 = vpop.f32.mrf.mxu0
    %v1430 = vadd.f32 0.0, %v1429
    %v1431 = vpop.f32.mrf.mxu0
    %v1432 = vadd.f32 0.0, %v1431
    %1433 = vdwg.mxu0
    %v1434 = vsub.f32 %v1154, %v1355
    %v1435 = vsub.f32 %v1156, %v1357
    %v1436 = vsub.f32 %v1159, %v1360
    %v1437 = vsub.f32 %v1161, %v1362
    %v1438 = vsub.f32 %v1164, %v1365
    %v1439 = vsub.f32 %v1166, %v1367
    %v1440 = vsub.f32 %v1169, %v1370
    %v1441 = vsub.f32 %v1171, %v1372
    %v1442 = vsub.f32 %v1174, %v1375
    %v1443 = vsub.f32 %v1176, %v1377
    %v1444 = vsub.f32 %v1179, %v1380
    %v1445 = vsub.f32 %v1181, %v1382
    %v1446 = vsub.f32 %v1184, %v1385
    %v1447 = vsub.f32 %v1186, %v1387
    %v1448 = vsub.f32 %v1189, %v1390
    %v1449 = vsub.f32 %v1191, %v1392
    %v1450 = vsub.f32 %v1194, %v1395
    %v1451 = vsub.f32 %v1196, %v1397
    %v1452 = vsub.f32 %v1199, %v1400
    %v1453 = vsub.f32 %v1201, %v1402
    %v1454 = vsub.f32 %v1204, %v1405
    %v1455 = vsub.f32 %v1206, %v1407
    %v1456 = vsub.f32 %v1209, %v1410
    %v1457 = vsub.f32 %v1211, %v1412
    %v1458 = vsub.f32 %v1214, %v1415
    %v1459 = vsub.f32 %v1216, %v1417
    %v1460 = vsub.f32 %v1219, %v1420
    %v1461 = vsub.f32 %v1221, %v1422
    %v1462 = vsub.f32 %v1224, %v1425
    %v1463 = vsub.f32 %v1226, %v1427
    %v1464 = vsub.f32 %v1229, %v1430
    %v1465 = vsub.f32 %v1231, %v1432
    %v1466 = vpack.c.bf16 %v1435, %v1434
    %v1467 = vpack.c.bf16 %v1437, %v1436
    %v1468 = vpack.c.bf16 %v1439, %v1438
    %v1469 = vpack.c.bf16 %v1441, %v1440
    %v1470 = vpack.c.bf16 %v1443, %v1442
    %v1471 = vpack.c.bf16 %v1445, %v1444
    %v1472 = vpack.c.bf16 %v1447, %v1446
    %v1473 = vpack.c.bf16 %v1449, %v1448
    %v1474 = vpack.c.bf16 %v1451, %v1450
    %v1475 = vpack.c.bf16 %v1453, %v1452
    %v1476 = vpack.c.bf16 %v1455, %v1454
    %v1477 = vpack.c.bf16 %v1457, %v1456
    %v1478 = vpack.c.bf16 %v1459, %v1458
    %v1479 = vpack.c.bf16 %v1461, %v1460
    %v1480 = vpack.c.bf16 %v1463, %v1462
    %v1481 = vpack.c.bf16 %v1465, %v1464
    %v1482 = vld [vmem:[%s4] sm:$0xf]
    %v1483 = vld [vmem:[%s4 + $0x4] sm:$0xf]
    %v1484 = vld [vmem:[%s4 + $0x8] sm:$0xf]
    %v1485 = vld [vmem:[%s4 + $0xc] sm:$0xf]
    %v1486 = vld [vmem:[%s4 + $0x10] sm:$0xf]
    %v1487 = vld [vmem:[%s4 + $0x14] sm:$0xf]
    %v1488 = vld [vmem:[%s4 + $0x18] sm:$0xf]
    %v1489 = vld [vmem:[%s4 + $0x1c] sm:$0xf]
    %v1490 = vld [vmem:[%s4 + $0x20] sm:$0xf]
    %v1491 = vld [vmem:[%s4 + $0x24] sm:$0xf]
    %v1492 = vld [vmem:[%s4 + $0x28] sm:$0xf]
    %v1493 = vld [vmem:[%s4 + $0x2c] sm:$0xf]
    %v1494 = vld [vmem:[%s4 + $0x30] sm:$0xf]
    %v1495 = vld [vmem:[%s4 + $0x34] sm:$0xf]
    %v1496 = vld [vmem:[%s4 + $0x38] sm:$0xf]
    %v1497 = vld [vmem:[%s4 + $0x3c] sm:$0xf]
    %v1498 = vld [vmem:[%s5] sm:$0x1]
    %v1500 = vperm.slane %v1498, 0
    %v1518 = vunpack.c.l.b16 %v1482
    %v1519 = vunpack.c.l.b16 %v1483
    %v1520 = vunpack.c.l.b16 %v1484
    %v1521 = vunpack.c.l.b16 %v1485
    %v1522 = vunpack.c.l.b16 %v1486
    %v1523 = vunpack.c.l.b16 %v1487
    %v1524 = vunpack.c.l.b16 %v1488
    %v1525 = vunpack.c.l.b16 %v1489
    %v1526 = vunpack.c.l.b16 %v1490
    %v1527 = vunpack.c.l.b16 %v1491
    %v1528 = vunpack.c.l.b16 %v1492
    %v1529 = vunpack.c.l.b16 %v1493
    %v1530 = vunpack.c.l.b16 %v1494
    %v1531 = vunpack.c.l.b16 %v1495
    %v1532 = vunpack.c.l.b16 %v1496
    %v1533 = vunpack.c.l.b16 %v1497
    %v1534 = vpack.c.b16 %v1519, %v1518
    %v1535 = vpack.c.b16 %v1521, %v1520
    %v1536 = vpack.c.b16 %v1523, %v1522
    %v1537 = vpack.c.b16 %v1525, %v1524
    %v1538 = vpack.c.b16 %v1527, %v1526
    %v1539 = vpack.c.b16 %v1529, %v1528
    %v1540 = vpack.c.b16 %v1531, %v1530
    %v1541 = vpack.c.b16 %v1533, %v1532
    %1550 = vmatpush.bf16.msra.mxu0 %v1541
    %1551 = vmatpush.bf16.msra.mxu0 %v1540
    %1552 = vmatpush.bf16.msra.mxu0 %v1539
    %1553 = vmatpush.bf16.msra.mxu0 %v1538
    %1554 = vmatpush.bf16.msra.mxu0 %v1537
    %1555 = vmatpush.bf16.msra.mxu0 %v1536
    %1556 = vmatpush.bf16.msra.mxu0 %v1535
    %1557 = vmatpush.bf16.msra.mxu0 %v1534
    %1558 = vmatmul.bf16.gmra.mxu0 %v1466
    %v1559 = vpop.f32.mrf.mxu0
    %v1560 = vadd.f32 %v1500, %v1559
    %v1561 = vpop.f32.mrf.mxu0
    %v1562 = vadd.f32 %v1500, %v1561
    %1563 = vmatmul.bf16.gmra.mxu0 %v1467
    %v1564 = vpop.f32.mrf.mxu0
    %v1565 = vadd.f32 %v1500, %v1564
    %v1566 = vpop.f32.mrf.mxu0
    %v1567 = vadd.f32 %v1500, %v1566
    %1568 = vmatmul.bf16.gmra.mxu0 %v1468
    %v1569 = vpop.f32.mrf.mxu0
    %v1570 = vadd.f32 %v1500, %v1569
    %v1571 = vpop.f32.mrf.mxu0
    %v1572 = vadd.f32 %v1500, %v1571
    %1573 = vmatmul.bf16.gmra.mxu0 %v1469
    %v1574 = vpop.f32.mrf.mxu0
    %v1575 = vadd.f32 %v1500, %v1574
    %v1576 = vpop.f32.mrf.mxu0
    %v1577 = vadd.f32 %v1500, %v1576
    %1578 = vmatmul.bf16.gmra.mxu0 %v1470
    %v1579 = vpop.f32.mrf.mxu0
    %v1580 = vadd.f32 %v1500, %v1579
    %v1581 = vpop.f32.mrf.mxu0
    %v1582 = vadd.f32 %v1500, %v1581
    %1583 = vmatmul.bf16.gmra.mxu0 %v1471
    %v1584 = vpop.f32.mrf.mxu0
    %v1585 = vadd.f32 %v1500, %v1584
    %v1586 = vpop.f32.mrf.mxu0
    %v1587 = vadd.f32 %v1500, %v1586
    %1588 = vmatmul.bf16.gmra.mxu0 %v1472
    %v1589 = vpop.f32.mrf.mxu0
    %v1590 = vadd.f32 %v1500, %v1589
    %v1591 = vpop.f32.mrf.mxu0
    %v1592 = vadd.f32 %v1500, %v1591
    %1593 = vmatmul.bf16.gmra.mxu0 %v1473
    %v1594 = vpop.f32.mrf.mxu0
    %v1595 = vadd.f32 %v1500, %v1594
    %v1596 = vpop.f32.mrf.mxu0
    %v1597 = vadd.f32 %v1500, %v1596
    %1598 = vmatmul.bf16.gmra.mxu0 %v1474
    %v1599 = vpop.f32.mrf.mxu0
    %v1600 = vadd.f32 %v1500, %v1599
    %v1601 = vpop.f32.mrf.mxu0
    %v1602 = vadd.f32 %v1500, %v1601
    %1603 = vmatmul.bf16.gmra.mxu0 %v1475
    %v1604 = vpop.f32.mrf.mxu0
    %v1605 = vadd.f32 %v1500, %v1604
    %v1606 = vpop.f32.mrf.mxu0
    %v1607 = vadd.f32 %v1500, %v1606
    %1608 = vmatmul.bf16.gmra.mxu0 %v1476
    %v1609 = vpop.f32.mrf.mxu0
    %v1610 = vadd.f32 %v1500, %v1609
    %v1611 = vpop.f32.mrf.mxu0
    %v1612 = vadd.f32 %v1500, %v1611
    %1613 = vmatmul.bf16.gmra.mxu0 %v1477
    %v1614 = vpop.f32.mrf.mxu0
    %v1615 = vadd.f32 %v1500, %v1614
    %v1616 = vpop.f32.mrf.mxu0
    %v1617 = vadd.f32 %v1500, %v1616
    %1618 = vmatmul.bf16.gmra.mxu0 %v1478
    %v1619 = vpop.f32.mrf.mxu0
    %v1620 = vadd.f32 %v1500, %v1619
    %v1621 = vpop.f32.mrf.mxu0
    %v1622 = vadd.f32 %v1500, %v1621
    %1623 = vmatmul.bf16.gmra.mxu0 %v1479
    %v1624 = vpop.f32.mrf.mxu0
    %v1625 = vadd.f32 %v1500, %v1624
    %v1626 = vpop.f32.mrf.mxu0
    %v1627 = vadd.f32 %v1500, %v1626
    %1628 = vmatmul.bf16.gmra.mxu0 %v1480
    %v1629 = vpop.f32.mrf.mxu0
    %v1630 = vadd.f32 %v1500, %v1629
    %v1631 = vpop.f32.mrf.mxu0
    %v1632 = vadd.f32 %v1500, %v1631
    %1633 = vmatmul.bf16.gmra.mxu0 %v1481
    %v1634 = vpop.f32.mrf.mxu0
    %v1635 = vadd.f32 %v1500, %v1634
    %v1636 = vpop.f32.mrf.mxu0
    %v1637 = vadd.f32 %v1500, %v1636
    %1638 = vdwg.mxu0
    %1639 = vst [vmem:[%s6] sm:$0xff] %v1560
    %1640 = vst [vmem:[%s6 + $0x8] sm:$0xff] %v1562
    %1641 = vst [vmem:[%s6 + $0x10] sm:$0xff] %v1565
    %1642 = vst [vmem:[%s6 + $0x18] sm:$0xff] %v1567
    %1643 = vst [vmem:[%s6 + $0x20] sm:$0xff] %v1570
    %1644 = vst [vmem:[%s6 + $0x28] sm:$0xff] %v1572
    %1645 = vst [vmem:[%s6 + $0x30] sm:$0xff] %v1575
    %1646 = vst [vmem:[%s6 + $0x38] sm:$0xff] %v1577
    %1647 = vst [vmem:[%s6 + $0x40] sm:$0xff] %v1580
    %1648 = vst [vmem:[%s6 + $0x48] sm:$0xff] %v1582
    %1649 = vst [vmem:[%s6 + $0x50] sm:$0xff] %v1585
    %1650 = vst [vmem:[%s6 + $0x58] sm:$0xff] %v1587
    %1651 = vst [vmem:[%s6 + $0x60] sm:$0xff] %v1590
    %1652 = vst [vmem:[%s6 + $0x68] sm:$0xff] %v1592
    %1653 = vst [vmem:[%s6 + $0x70] sm:$0xff] %v1595
    %1654 = vst [vmem:[%s6 + $0x78] sm:$0xff] %v1597
    %1655 = vst [vmem:[%s6 + $0x80] sm:$0xff] %v1600
    %1656 = vst [vmem:[%s6 + $0x88] sm:$0xff] %v1602
    %1657 = vst [vmem:[%s6 + $0x90] sm:$0xff] %v1605
    %1658 = vst [vmem:[%s6 + $0x98] sm:$0xff] %v1607
    %1659 = vst [vmem:[%s6 + $0xa0] sm:$0xff] %v1610
    %1660 = vst [vmem:[%s6 + $0xa8] sm:$0xff] %v1612
    %1661 = vst [vmem:[%s6 + $0xb0] sm:$0xff] %v1615
    %1662 = vst [vmem:[%s6 + $0xb8] sm:$0xff] %v1617
    %1663 = vst [vmem:[%s6 + $0xc0] sm:$0xff] %v1620
    %1664 = vst [vmem:[%s6 + $0xc8] sm:$0xff] %v1622
    %1665 = vst [vmem:[%s6 + $0xd0] sm:$0xff] %v1625
    %1666 = vst [vmem:[%s6 + $0xd8] sm:$0xff] %v1627
    %1667 = vst [vmem:[%s6 + $0xe0] sm:$0xff] %v1630
    %1668 = vst [vmem:[%s6 + $0xe8] sm:$0xff] %v1632
    %1669 = vst [vmem:[%s6 + $0xf0] sm:$0xff] %v1635
    %1670 = vst [vmem:[%s6 + $0xf8] sm:$0xff] %v1637
  $region33: #{unitary_gcn_forward.5} parent=0 // pred_fallthru
    _
  // Predicated region
  $region34: #{unitary_gcn_forward.5} parent=0 // pred_check
    _
  $region35: #{unitary_gcn_forward.5} parent=0 // pred_check_branch
    %1672 = sbr.rel (0) target = $region37
  $region36: #{unitary_gcn_forward.5} parent=0 // pred_region
    _
  $region37: #{unitary_gcn_forward.5} parent=0 // pred_fallthru
    _
  // Predicated region
  $region38: #{unitary_gcn_forward.5} parent=0 // pred_check
    _
  $region39: #{unitary_gcn_forward.5} parent=0 // pred_check_branch
    %1674 = sbr.rel (0) target = $region41
  $region40: #{unitary_gcn_forward.5} parent=0 // pred_region
    _
  $region41: #{unitary_gcn_forward.5} parent=0 // pred_fallthru
    _

</llo_original>
